<compile_context>
chip_gen: v5e
topology: v5e:2x2
jax: 0.10.0
libtpu: 0.0.40
codegen_flags: <defaults>
</compile_context>

<pallas_src>
import functools

import jax
import jax.numpy as jnp
from jax.experimental import pallas as pl
from jax.experimental.pallas import tpu as pltpu

EPS = 1e-5


def _round_up(x, m):
    return (x + m - 1) // m * m


def _conv_silu_stats_kernel(xa_ref, xh_ref, w_ref, b_ref, mask_ref,
                            y_ref, psum_ref, pssq_ref, xx_ref,
                            *, tq, offsets):
    """One row tile: in-kernel im2col (kh*kw shifted matmuls) + bias + SiLU,
    plus per-tile partial channel sums / sums-of-squares for BatchNorm."""
    halo_pad = xh_ref.shape[2]

    # Stitch the row tile and its halo rows (start of the next tile) into one
    # contiguous scratch slab so each (dy, dx) tap is a static row-offset
    # slice of the same buffer.
    xx_ref[0:tq, :] = xa_ref[0]
    xx_ref[tq:tq + halo_pad, :] = xh_ref[0, 0]

    cout_p = y_ref.shape[-1]
    acc = jnp.zeros((tq, cout_p), jnp.float32)
    for j, off in enumerate(offsets):          # kh*kw taps, fully unrolled
        acc = acc + jnp.dot(xx_ref[off:off + tq, :], w_ref[j],
                            preferred_element_type=jnp.float32)
    acc = acc + b_ref[...]                     # (tq, Cout_p) + (1, Cout_p)

    # SiLU = x * sigmoid(x); exp and the approx reciprocal run on the EUP,
    # leaving the VALU free for the stats math below.
    sig = pl.reciprocal(1.0 + jnp.exp(-acc), approx=True)
    y = acc * sig
    y_ref[0] = y

    # Partial BatchNorm statistics over valid output positions only (mask
    # kills phantom columns w' >= Wo and rows padded past the true output
    # range).  Partials are reduced outside the kernel, so both grid axes
    # stay "parallel".
    yv = y * mask_ref[...]                     # (tq, Cout_p) * (tq, 1)
    psum_ref[0, 0] = jnp.sum(yv, axis=0, keepdims=True)
    pssq_ref[0, 0] = jnp.sum(yv * y, axis=0, keepdims=True)


def _bn_apply_kernel(y_ref, scale_ref, shift_ref, o_ref):
    """One row tile of BatchNorm: fused multiply-add with precomputed
    scale = gamma * rsqrt(var + eps) and shift = beta - mean * scale."""
    o_ref[...] = y_ref[...] * scale_ref[...] + shift_ref[...]


def base_block_forward(x_nchw, w, b, gamma, beta, *, stride=1, padding=1,
                       tile_q=512, compute_dtype=jnp.float32):
    """Conv2d(k=3,s=1,p=1) -> SiLU -> BatchNorm2d(training).  NCHW in/out.

    compute_dtype=jnp.bfloat16 feeds the MXU with bf16 operands (f32
    accumulate) — recommended on v6e/v7x if the tolerance budget allows.
    """
    N, Cin, H, W = x_nchw.shape
    Cout, _, kh, kw = w.shape
    assert stride == 1, "kernel specialized for stride=1 (module default)"

    hp, wp = H + 2 * padding, W + 2 * padding          # padded spatial dims
    ho, wo = hp - kh + 1, wp - kw + 1                  # true output dims
    mq = ho * wp                                       # "wide" rows per batch
    cin_p = _round_up(Cin, 16 if compute_dtype == jnp.bfloat16 else 8)
    cout_p = _round_up(Cout, 128)                      # lane-dense stores

    # Row tiling over the flattened (ho, w') axis.  Each tile additionally
    # needs the first `halo` rows of the next tile, supplied via a small
    # pre-sliced halo array, so tq only needs to cover halo_pad rows.
    halo = (kh - 1) * wp + (kw - 1)
    halo_pad = _round_up(halo, 8)
    tq = min(_round_up(tile_q, 8), _round_up(mq, 8))
    tq = max(tq, halo_pad)
    nq = pl.cdiv(mq, tq)
    mq_pad = nq * tq
    l_pad = mq_pad + tq                                # flat input rows (+1 tile)
    assert l_pad >= hp * wp

    # --- glue: pad + flatten input, reshape weights (all tiny/XLA) ----------
    x = jnp.transpose(x_nchw, (0, 2, 3, 1)).astype(compute_dtype)      # NHWC
    xp = jnp.pad(x, ((0, 0), (padding, padding), (padding, padding),
                     (0, cin_p - Cin)))
    xf = xp.reshape(N, hp * wp, cin_p)
    xf = jnp.pad(xf, ((0, 0), (0, l_pad - hp * wp), (0, 0)))
    # Halo rows for tile i = first halo_pad rows of tile i+1 (small array, so
    # the kernel does not re-read the whole next tile from HBM).
    xh = xf[:, tq:].reshape(N, nq, tq, cin_p)[:, :, :halo_pad]

    # (Cout, Cin, kh, kw) -> (kh*kw, Cin_p, Cout_p), tap j = dy*kw + dx.
    wt = jnp.transpose(w, (2, 3, 1, 0)).astype(compute_dtype)
    wt = jnp.pad(wt, ((0, 0), (0, 0), (0, cin_p - Cin), (0, cout_p - Cout)))
    wk = wt.reshape(kh * kw, cin_p, cout_p)
    b2 = jnp.pad(b.astype(jnp.float32).reshape(1, Cout),
                 ((0, 0), (0, cout_p - Cout)))

    # Row shift of tap (dy, dx) on the flattened (h, w) axis.
    offsets = tuple(dy * wp + dx for dy in range(kh) for dx in range(kw))

    # Validity mask for BN statistics: drop phantom columns (w' >= Wo) and
    # rows padded past the true output range.
    q_idx = jnp.arange(mq_pad, dtype=jnp.int32).reshape(mq_pad, 1)
    maskv = jnp.logical_and(q_idx < mq, (q_idx % wp) < wo).astype(jnp.float32)

    kernel1 = functools.partial(_conv_silu_stats_kernel, tq=tq,
                                offsets=offsets)

    # --- kernel 1: conv (in-kernel im2col) + bias + SiLU + partial stats ----
    # TODO(synk): for very large Cin*Cout the resident (9, Cin_p, Cout_p)
    # weight slab can exceed VMEM; add a K/N grid axis + VMEM accumulator.
    y, ps, pss = pl.pallas_call(
        kernel1,
        out_shape=(
            jax.ShapeDtypeStruct((N, mq_pad, cout_p), jnp.float32),
            jax.ShapeDtypeStruct((N, nq, 1, cout_p), jnp.float32),
            jax.ShapeDtypeStruct((N, nq, 1, cout_p), jnp.float32),
        ),
        grid_spec=pltpu.PrefetchScalarGridSpec(
            num_scalar_prefetch=0,
            grid=(N, nq),
            in_specs=[
                pl.BlockSpec((1, tq, cin_p), lambda n, i: (n, i, 0)),       # tile
                pl.BlockSpec((1, 1, halo_pad, cin_p),
                             lambda n, i: (n, i, 0, 0)),                    # halo
                pl.BlockSpec((kh * kw, cin_p, cout_p), lambda n, i: (0, 0, 0)),
                pl.BlockSpec((1, cout_p), lambda n, i: (0, 0)),
                pl.BlockSpec((tq, 1), lambda n, i: (i, 0)),
            ],
            out_specs=[
                pl.BlockSpec((1, tq, cout_p), lambda n, i: (n, i, 0)),
                pl.BlockSpec((1, 1, 1, cout_p), lambda n, i: (n, i, 0, 0)),
                pl.BlockSpec((1, 1, 1, cout_p), lambda n, i: (n, i, 0, 0)),
            ],
            scratch_shapes=[pltpu.VMEM((tq + halo_pad, cin_p), compute_dtype)],
        ),
        compiler_params=pltpu.CompilerParams(
            dimension_semantics=("parallel", "parallel"),
            vmem_limit_bytes=32 * 1024 * 1024),
    )(xf, xh, wk, b2, maskv)

    # --- tiny (1, Cout) BN parameter math in plain XLA ----------------------
    count = float(N * ho * wo)
    s = jnp.sum(ps, axis=(0, 1, 2)).reshape(1, cout_p)
    ss = jnp.sum(pss, axis=(0, 1, 2)).reshape(1, cout_p)
    mean = s / count
    var = jnp.maximum(ss / count - mean * mean, 0.0)      # biased, clamped
    inv = jax.lax.rsqrt(var + EPS)
    g2 = jnp.pad(gamma.astype(jnp.float32).reshape(1, Cout),
                 ((0, 0), (0, cout_p - Cout)), constant_values=1.0)
    be2 = jnp.pad(beta.astype(jnp.float32).reshape(1, Cout),
                  ((0, 0), (0, cout_p - Cout)))
    scale = g2 * inv
    shift = be2 - mean * scale

    # --- kernel 2: BN apply (streaming FMA, in-place over y) ----------------
    out_flat = pl.pallas_call(
        _bn_apply_kernel,
        out_shape=jax.ShapeDtypeStruct((N, mq_pad, cout_p), jnp.float32),
        grid_spec=pltpu.PrefetchScalarGridSpec(
            num_scalar_prefetch=0,
            grid=(N, nq),
            in_specs=[
                pl.BlockSpec((1, tq, cout_p), lambda n, i: (n, i, 0)),
                pl.BlockSpec((1, cout_p), lambda n, i: (0, 0)),
                pl.BlockSpec((1, cout_p), lambda n, i: (0, 0)),
            ],
            out_specs=pl.BlockSpec((1, tq, cout_p), lambda n, i: (n, i, 0)),
        ),
        compiler_params=pltpu.CompilerParams(
            dimension_semantics=("parallel", "parallel"),
            vmem_limit_bytes=32 * 1024 * 1024),
        input_output_aliases={0: 0},
    )(y, scale, shift)

    # Drop padded rows, phantom columns and padded channels; back to NCHW.
    out = out_flat[:, :mq, :Cout].reshape(N, ho, wp, Cout)[:, :, :wo, :]
    return jnp.transpose(out, (0, 3, 1, 2))


def _reference(x_nchw, w, b, gamma, beta):
    Cout = w.shape[0]
    y = jax.lax.conv_general_dilated(
        x_nchw, w, window_strides=(1, 1), padding=((1, 1), (1, 1)),
        dimension_numbers=("NCHW", "OIHW", "NCHW"))
    y = y + b.reshape(1, Cout, 1, 1)
    y = y * jax.nn.sigmoid(y)
    mean = y.mean(axis=(0, 2, 3), keepdims=True)
    var = y.var(axis=(0, 2, 3), keepdims=True)            # biased, like PyTorch BN
    return (y - mean) / jnp.sqrt(var + EPS) * gamma.reshape(1, Cout, 1, 1) \
        + beta.reshape(1, Cout, 1, 1)


if __name__ == "__main__":
    # small shapes consistent with the module: N=2, Cin=4, Cout=8, H=W=16
    N, Cin, Cout, H, W = 2, 4, 8, 16, 16
    key = jax.random.PRNGKey(0)
    kx, kw_, kb, kg, kbe = jax.random.split(key, 5)

    x = jax.random.normal(kx, (N, Cin, H, W), dtype=jnp.float32)
    # deterministic synthetic parameters (shapes from nn.Conv2d / nn.BatchNorm2d)
    w = jax.random.normal(kw_, (Cout, Cin, 3, 3), dtype=jnp.float32) * 0.1
    b = jax.random.normal(kb, (Cout,), dtype=jnp.float32) * 0.1
    gamma = 1.0 + 0.1 * jax.random.normal(kg, (Cout,), dtype=jnp.float32)
    beta = 0.1 * jax.random.normal(kbe, (Cout,), dtype=jnp.float32)

    fwd = jax.jit(base_block_forward)
    out = jax.block_until_ready(fwd(x, w, b, gamma, beta))

    ref = _reference(x, w, b, gamma, beta)
    assert out.shape == (N, Cout, H, W), out.shape
    # tolerance 5e-3 leaves headroom for the EUP approx-reciprocal in SiLU.
    err = float(jnp.max(jnp.abs(out - ref)))
    assert jnp.allclose(out, ref, atol=5e-3, rtol=5e-3), err

    print("KERNEL_OK")
</pallas_src>

<mosaic_0001>
module attributes {stable_mosaic.version = 11 : i64} {
  func.func @_bn_apply_kernel(%arg0: i32, %arg1: i32, %arg2: memref<1x288x128xf32, #tpu.memory_space<vmem>>, %arg3: memref<1x128xf32, #tpu.memory_space<vmem>>, %arg4: memref<1x128xf32, #tpu.memory_space<vmem>>, %arg5: memref<1x288x128xf32, #tpu.memory_space<vmem>>) attributes {dimension_semantics = [#tpu.dimension_semantics<parallel>, #tpu.dimension_semantics<parallel>], iteration_bounds = array<i64: 2, 1>, scalar_prefetch = 0 : i64, scratch_operands = 0 : i64, tpu.core_type = #tpu.core_type<tc>, window_params = [{transform_indices = @transform_0, window_bounds = array<i64: 1, 288, 128>}, {pipeline_mode = #tpu.pipeline_mode<synchronous>, transform_indices = @transform_1, window_bounds = array<i64: 1, 128>}, {pipeline_mode = #tpu.pipeline_mode<synchronous>, transform_indices = @transform_2, window_bounds = array<i64: 1, 128>}, {transform_indices = @transform_3, window_bounds = array<i64: 1, 288, 128>}]} {
    %c0 = arith.constant 0 : index
    %c0_0 = arith.constant 0 : index
    %c0_1 = arith.constant 0 : index
    %0 = vector.load %arg2[%c0, %c0_0, %c0_1] : memref<1x288x128xf32, #tpu.memory_space<vmem>>, vector<1x288x128xf32>
    %c0_2 = arith.constant 0 : index
    %c0_3 = arith.constant 0 : index
    %1 = vector.load %arg3[%c0_2, %c0_3] : memref<1x128xf32, #tpu.memory_space<vmem>>, vector<1x128xf32>
    %2 = vector.shape_cast %1 : vector<1x128xf32> to vector<1x1x128xf32>
    %3 = vector.broadcast %2 : vector<1x1x128xf32> to vector<1x288x128xf32>
    %4 = arith.mulf %0, %3 : vector<1x288x128xf32>
    %c0_4 = arith.constant 0 : index
    %c0_5 = arith.constant 0 : index
    %5 = vector.load %arg4[%c0_4, %c0_5] : memref<1x128xf32, #tpu.memory_space<vmem>>, vector<1x128xf32>
    %6 = vector.shape_cast %5 : vector<1x128xf32> to vector<1x1x128xf32>
    %7 = vector.broadcast %6 : vector<1x1x128xf32> to vector<1x288x128xf32>
    %8 = arith.addf %4, %7 : vector<1x288x128xf32>
    %c0_6 = arith.constant 0 : index
    %c0_7 = arith.constant 0 : index
    %c0_8 = arith.constant 0 : index
    %9 = vector.load %arg5[%c0_6, %c0_7, %c0_8] : memref<1x288x128xf32, #tpu.memory_space<vmem>>, vector<1x288x128xf32>
    tpu.vector_store %arg5[%c0_6, %c0_7, %c0_8], %8 {strides = array<i32>} : memref<1x288x128xf32, #tpu.memory_space<vmem>>, vector<1x288x128xf32>,
    return
  }
  func.func @transform_0(%arg0: i32, %arg1: i32) -> (i32, i32, i32) {
    %c0_i32 = arith.constant 0 : i32
    %c0_i32_0 = arith.constant 0 : i32
    return %arg0, %arg1, %c0_i32 : i32, i32, i32
  }
  func.func @transform_1(%arg0: i32, %arg1: i32) -> (i32, i32) {
    %c0_i32 = arith.constant 0 : i32
    %c0_i32_0 = arith.constant 0 : i32
    %c0_i32_1 = arith.constant 0 : i32
    return %c0_i32, %c0_i32_0 : i32, i32
  }
  func.func @transform_2(%arg0: i32, %arg1: i32) -> (i32, i32) {
    %c0_i32 = arith.constant 0 : i32
    %c0_i32_0 = arith.constant 0 : i32
    %c0_i32_1 = arith.constant 0 : i32
    return %c0_i32, %c0_i32_0 : i32, i32
  }
  func.func @transform_3(%arg0: i32, %arg1: i32) -> (i32, i32, i32) {
    %c0_i32 = arith.constant 0 : i32
    %c0_i32_0 = arith.constant 0 : i32
    return %arg0, %arg1, %c0_i32 : i32, i32, i32
  }
}

module attributes {stable_mosaic.version = 11 : i64} {
  func.func @_conv_silu_stats_kernel(%arg0: i32, %arg1: i32, %arg2: memref<1x288x8xf32, #tpu.memory_space<vmem>>, %arg3: memref<1x1x40x8xf32, #tpu.memory_space<vmem>>, %arg4: memref<9x8x128xf32, #tpu.memory_space<vmem>>, %arg5: memref<1x128xf32, #tpu.memory_space<vmem>>, %arg6: memref<288x1xf32, #tpu.memory_space<vmem>>, %arg7: memref<1x288x128xf32, #tpu.memory_space<vmem>>, %arg8: memref<1x1x1x128xf32, #tpu.memory_space<vmem>>, %arg9: memref<1x1x1x128xf32, #tpu.memory_space<vmem>>, %arg10: memref<328x8xf32, #tpu.memory_space<vmem>>) attributes {dimension_semantics = [#tpu.dimension_semantics<parallel>, #tpu.dimension_semantics<parallel>], iteration_bounds = array<i64: 2, 1>, scalar_prefetch = 0 : i64, scratch_operands = 1 : i64, tpu.core_type = #tpu.core_type<tc>, window_params = [{transform_indices = @transform_0, window_bounds = array<i64: 1, 288, 8>}, {transform_indices = @transform_1, window_bounds = array<i64: 1, 1, 40, 8>}, {pipeline_mode = #tpu.pipeline_mode<synchronous>, transform_indices = @transform_2, window_bounds = array<i64: 9, 8, 128>}, {pipeline_mode = #tpu.pipeline_mode<synchronous>, transform_indices = @transform_3, window_bounds = array<i64: 1, 128>}, {transform_indices = @transform_4, window_bounds = array<i64: 288, 1>}, {transform_indices = @transform_5, window_bounds = array<i64: 1, 288, 128>}, {transform_indices = @transform_6, window_bounds = array<i64: 1, 1, 1, 128>}, {transform_indices = @transform_7, window_bounds = array<i64: 1, 1, 1, 128>}]} {
    %c0 = arith.constant 0 : index
    %c0_0 = arith.constant 0 : index
    %c0_1 = arith.constant 0 : index
    %0 = vector.load %arg2[%c0, %c0_0, %c0_1] : memref<1x288x8xf32, #tpu.memory_space<vmem>>, vector<1x288x8xf32>
    %1 = vector.shape_cast %0 : vector<1x288x8xf32> to vector<288x8xf32>
    %c0_2 = arith.constant 0 : index
    %c0_3 = arith.constant 0 : index
    %2 = vector.load %arg10[%c0_2, %c0_3] : memref<328x8xf32, #tpu.memory_space<vmem>>, vector<288x8xf32>
    tpu.vector_store %arg10[%c0_2, %c0_3], %1 {strides = array<i32>} : memref<328x8xf32, #tpu.memory_space<vmem>>, vector<288x8xf32>,
    %c0_4 = arith.constant 0 : index
    %c0_5 = arith.constant 0 : index
    %c0_6 = arith.constant 0 : index
    %c0_7 = arith.constant 0 : index
    %3 = vector.load %arg3[%c0_4, %c0_5, %c0_6, %c0_7] : memref<1x1x40x8xf32, #tpu.memory_space<vmem>>, vector<1x1x40x8xf32>
    %4 = vector.shape_cast %3 : vector<1x1x40x8xf32> to vector<40x8xf32>
    %c288 = arith.constant 288 : index
    %c0_8 = arith.constant 0 : index
    %5 = vector.load %arg10[%c288, %c0_8] : memref<328x8xf32, #tpu.memory_space<vmem>>, vector<40x8xf32>
    tpu.vector_store %arg10[%c288, %c0_8], %4 {strides = array<i32>} : memref<328x8xf32, #tpu.memory_space<vmem>>, vector<40x8xf32>,
    %cst = arith.constant 0.000000e+00 : f32
    %6 = vector.broadcast %cst : f32 to vector<288x128xf32>
    %c0_9 = arith.constant 0 : index
    %c0_10 = arith.constant 0 : index
    %7 = vector.load %arg10[%c0_9, %c0_10] : memref<328x8xf32, #tpu.memory_space<vmem>>, vector<288x8xf32>
    %c0_11 = arith.constant 0 : index
    %c0_12 = arith.constant 0 : index
    %c0_13 = arith.constant 0 : index
    %8 = vector.load %arg4[%c0_11, %c0_12, %c0_13] : memref<9x8x128xf32, #tpu.memory_space<vmem>>, vector<1x8x128xf32>
    %9 = vector.shape_cast %8 : vector<1x8x128xf32> to vector<8x128xf32>
    %cst_14 = arith.constant dense<0.000000e+00> : vector<288x128xf32>
    %10 = tpu.matmul %7, %9, %cst_14 {dimension_numbers = #tpu.dot_dimension_numbers<[1], [0], [0], [1], [0, 0, 1, 1], [], []>} : vector<288x8xf32>, vector<8x128xf32>, vector<288x128xf32> -> vector<288x128xf32>
    %11 = arith.addf %6, %10 : vector<288x128xf32>
    %c1 = arith.constant 1 : index
    %c0_15 = arith.constant 0 : index
    %12 = vector.load %arg10[%c1, %c0_15] : memref<328x8xf32, #tpu.memory_space<vmem>>, vector<288x8xf32>
    %c1_16 = arith.constant 1 : index
    %c0_17 = arith.constant 0 : index
    %c0_18 = arith.constant 0 : index
    %13 = vector.load %arg4[%c1_16, %c0_17, %c0_18] : memref<9x8x128xf32, #tpu.memory_space<vmem>>, vector<1x8x128xf32>
    %14 = vector.shape_cast %13 : vector<1x8x128xf32> to vector<8x128xf32>
    %cst_19 = arith.constant dense<0.000000e+00> : vector<288x128xf32>
    %15 = tpu.matmul %12, %14, %cst_19 {dimension_numbers = #tpu.dot_dimension_numbers<[1], [0], [0], [1], [0, 0, 1, 1], [], []>} : vector<288x8xf32>, vector<8x128xf32>, vector<288x128xf32> -> vector<288x128xf32>
    %16 = arith.addf %11, %15 : vector<288x128xf32>
    %c2 = arith.constant 2 : index
    %c0_20 = arith.constant 0 : index
    %17 = vector.load %arg10[%c2, %c0_20] : memref<328x8xf32, #tpu.memory_space<vmem>>, vector<288x8xf32>
    %c2_21 = arith.constant 2 : index
    %c0_22 = arith.constant 0 : index
    %c0_23 = arith.constant 0 : index
    %18 = vector.load %arg4[%c2_21, %c0_22, %c0_23] : memref<9x8x128xf32, #tpu.memory_space<vmem>>, vector<1x8x128xf32>
    %19 = vector.shape_cast %18 : vector<1x8x128xf32> to vector<8x128xf32>
    %cst_24 = arith.constant dense<0.000000e+00> : vector<288x128xf32>
    %20 = tpu.matmul %17, %19, %cst_24 {dimension_numbers = #tpu.dot_dimension_numbers<[1], [0], [0], [1], [0, 0, 1, 1], [], []>} : vector<288x8xf32>, vector<8x128xf32>, vector<288x128xf32> -> vector<288x128xf32>
    %21 = arith.addf %16, %20 : vector<288x128xf32>
    %c18 = arith.constant 18 : index
    %c0_25 = arith.constant 0 : index
    %22 = vector.load %arg10[%c18, %c0_25] : memref<328x8xf32, #tpu.memory_space<vmem>>, vector<288x8xf32>
    %c3 = arith.constant 3 : index
    %c0_26 = arith.constant 0 : index
    %c0_27 = arith.constant 0 : index
    %23 = vector.load %arg4[%c3, %c0_26, %c0_27] : memref<9x8x128xf32, #tpu.memory_space<vmem>>, vector<1x8x128xf32>
    %24 = vector.shape_cast %23 : vector<1x8x128xf32> to vector<8x128xf32>
    %cst_28 = arith.constant dense<0.000000e+00> : vector<288x128xf32>
    %25 = tpu.matmul %22, %24, %cst_28 {dimension_numbers = #tpu.dot_dimension_numbers<[1], [0], [0], [1], [0, 0, 1, 1], [], []>} : vector<288x8xf32>, vector<8x128xf32>, vector<288x128xf32> -> vector<288x128xf32>
    %26 = arith.addf %21, %25 : vector<288x128xf32>
    %c19 = arith.constant 19 : index
    %c0_29 = arith.constant 0 : index
    %27 = vector.load %arg10[%c19, %c0_29] : memref<328x8xf32, #tpu.memory_space<vmem>>, vector<288x8xf32>
    %c4 = arith.constant 4 : index
    %c0_30 = arith.constant 0 : index
    %c0_31 = arith.constant 0 : index
    %28 = vector.load %arg4[%c4, %c0_30, %c0_31] : memref<9x8x128xf32, #tpu.memory_space<vmem>>, vector<1x8x128xf32>
    %29 = vector.shape_cast %28 : vector<1x8x128xf32> to vector<8x128xf32>
    %cst_32 = arith.constant dense<0.000000e+00> : vector<288x128xf32>
    %30 = tpu.matmul %27, %29, %cst_32 {dimension_numbers = #tpu.dot_dimension_numbers<[1], [0], [0], [1], [0, 0, 1, 1], [], []>} : vector<288x8xf32>, vector<8x128xf32>, vector<288x128xf32> -> vector<288x128xf32>
    %31 = arith.addf %26, %30 : vector<288x128xf32>
    %c20 = arith.constant 20 : index
    %c0_33 = arith.constant 0 : index
    %32 = vector.load %arg10[%c20, %c0_33] : memref<328x8xf32, #tpu.memory_space<vmem>>, vector<288x8xf32>
    %c5 = arith.constant 5 : index
    %c0_34 = arith.constant 0 : index
    %c0_35 = arith.constant 0 : index
    %33 = vector.load %arg4[%c5, %c0_34, %c0_35] : memref<9x8x128xf32, #tpu.memory_space<vmem>>, vector<1x8x128xf32>
    %34 = vector.shape_cast %33 : vector<1x8x128xf32> to vector<8x128xf32>
    %cst_36 = arith.constant dense<0.000000e+00> : vector<288x128xf32>
    %35 = tpu.matmul %32, %34, %cst_36 {dimension_numbers = #tpu.dot_dimension_numbers<[1], [0], [0], [1], [0, 0, 1, 1], [], []>} : vector<288x8xf32>, vector<8x128xf32>, vector<288x128xf32> -> vector<288x128xf32>
    %36 = arith.addf %31, %35 : vector<288x128xf32>
    %c36 = arith.constant 36 : index
    %c0_37 = arith.constant 0 : index
    %37 = vector.load %arg10[%c36, %c0_37] : memref<328x8xf32, #tpu.memory_space<vmem>>, vector<288x8xf32>
    %c6 = arith.constant 6 : index
    %c0_38 = arith.constant 0 : index
    %c0_39 = arith.constant 0 : index
    %38 = vector.load %arg4[%c6, %c0_38, %c0_39] : memref<9x8x128xf32, #tpu.memory_space<vmem>>, vector<1x8x128xf32>
    %39 = vector.shape_cast %38 : vector<1x8x128xf32> to vector<8x128xf32>
    %cst_40 = arith.constant dense<0.000000e+00> : vector<288x128xf32>
    %40 = tpu.matmul %37, %39, %cst_40 {dimension_numbers = #tpu.dot_dimension_numbers<[1], [0], [0], [1], [0, 0, 1, 1], [], []>} : vector<288x8xf32>, vector<8x128xf32>, vector<288x128xf32> -> vector<288x128xf32>
    %41 = arith.addf %36, %40 : vector<288x128xf32>
    %c37 = arith.constant 37 : index
    %c0_41 = arith.constant 0 : index
    %42 = vector.load %arg10[%c37, %c0_41] : memref<328x8xf32, #tpu.memory_space<vmem>>, vector<288x8xf32>
    %c7 = arith.constant 7 : index
    %c0_42 = arith.constant 0 : index
    %c0_43 = arith.constant 0 : index
    %43 = vector.load %arg4[%c7, %c0_42, %c0_43] : memref<9x8x128xf32, #tpu.memory_space<vmem>>, vector<1x8x128xf32>
    %44 = vector.shape_cast %43 : vector<1x8x128xf32> to vector<8x128xf32>
    %cst_44 = arith.constant dense<0.000000e+00> : vector<288x128xf32>
    %45 = tpu.matmul %42, %44, %cst_44 {dimension_numbers = #tpu.dot_dimension_numbers<[1], [0], [0], [1], [0, 0, 1, 1], [], []>} : vector<288x8xf32>, vector<8x128xf32>, vector<288x128xf32> -> vector<288x128xf32>
    %46 = arith.addf %41, %45 : vector<288x128xf32>
    %c38 = arith.constant 38 : index
    %c0_45 = arith.constant 0 : index
    %47 = vector.load %arg10[%c38, %c0_45] : memref<328x8xf32, #tpu.memory_space<vmem>>, vector<288x8xf32>
    %c8 = arith.constant 8 : index
    %c0_46 = arith.constant 0 : index
    %c0_47 = arith.constant 0 : index
    %48 = vector.load %arg4[%c8, %c0_46, %c0_47] : memref<9x8x128xf32, #tpu.memory_space<vmem>>, vector<1x8x128xf32>
    %49 = vector.shape_cast %48 : vector<1x8x128xf32> to vector<8x128xf32>
    %cst_48 = arith.constant dense<0.000000e+00> : vector<288x128xf32>
    %50 = tpu.matmul %47, %49, %cst_48 {dimension_numbers = #tpu.dot_dimension_numbers<[1], [0], [0], [1], [0, 0, 1, 1], [], []>} : vector<288x8xf32>, vector<8x128xf32>, vector<288x128xf32> -> vector<288x128xf32>
    %51 = arith.addf %46, %50 : vector<288x128xf32>
    %c0_49 = arith.constant 0 : index
    %c0_50 = arith.constant 0 : index
    %52 = vector.load %arg5[%c0_49, %c0_50] : memref<1x128xf32, #tpu.memory_space<vmem>>, vector<1x128xf32>
    %53 = vector.broadcast %52 : vector<1x128xf32> to vector<288x128xf32>
    %54 = arith.addf %51, %53 : vector<288x128xf32>
    %cst_51 = arith.constant 0.000000e+00 : f32
    %55 = vector.broadcast %cst_51 : f32 to vector<288x128xf32>
    %56 = arith.subf %55, %54 : vector<288x128xf32>
    %57 = math.exp %56 : vector<288x128xf32>
    %cst_52 = arith.constant 1.000000e+00 : f32
    %58 = vector.broadcast %cst_52 : f32 to vector<288x128xf32>
    %59 = arith.addf %58, %57 : vector<288x128xf32>
    %60 = tpu.reciprocal %59 {approx = true} : vector<288x128xf32> -> vector<288x128xf32>
    %61 = arith.mulf %54, %60 : vector<288x128xf32>
    %c0_53 = arith.constant 0 : index
    %c0_54 = arith.constant 0 : index
    %c0_55 = arith.constant 0 : index
    %62 = vector.load %arg7[%c0_53, %c0_54, %c0_55] : memref<1x288x128xf32, #tpu.memory_space<vmem>>, vector<1x288x128xf32>
    %63 = vector.shape_cast %62 : vector<1x288x128xf32> to vector<288x128xf32>
    %64 = vector.shape_cast %61 : vector<288x128xf32> to vector<1x288x128xf32>
    tpu.vector_store %arg7[%c0_53, %c0_54, %c0_55], %64 {strides = array<i32>} : memref<1x288x128xf32, #tpu.memory_space<vmem>>, vector<1x288x128xf32>,
    %c0_56 = arith.constant 0 : index
    %c0_57 = arith.constant 0 : index
    %65 = vector.load %arg6[%c0_56, %c0_57] : memref<288x1xf32, #tpu.memory_space<vmem>>, vector<288x1xf32>
    %66 = vector.broadcast %65 : vector<288x1xf32> to vector<288x128xf32>
    %67 = arith.mulf %61, %66 : vector<288x128xf32>
    %cst_58 = arith.constant dense<0.000000e+00> : vector<128xf32>
    %68 = vector.multi_reduction <add>, %67, %cst_58 [0] : vector<288x128xf32> to vector<128xf32>
    %69 = vector.shape_cast %68 : vector<128xf32> to vector<1x128xf32>
    %c0_59 = arith.constant 0 : index
    %c0_60 = arith.constant 0 : index
    %c0_61 = arith.constant 0 : index
    %c0_62 = arith.constant 0 : index
    %70 = vector.load %arg8[%c0_59, %c0_60, %c0_61, %c0_62] : memref<1x1x1x128xf32, #tpu.memory_space<vmem>>, vector<1x1x1x128xf32>
    %71 = vector.shape_cast %70 : vector<1x1x1x128xf32> to vector<1x128xf32>
    %72 = vector.shape_cast %69 : vector<1x128xf32> to vector<1x1x1x128xf32>
    tpu.vector_store %arg8[%c0_59, %c0_60, %c0_61, %c0_62], %72 {strides = array<i32>} : memref<1x1x1x128xf32, #tpu.memory_space<vmem>>, vector<1x1x1x128xf32>,
    %73 = arith.mulf %67, %61 : vector<288x128xf32>
    %cst_63 = arith.constant dense<0.000000e+00> : vector<128xf32>
    %74 = vector.multi_reduction <add>, %73, %cst_63 [0] : vector<288x128xf32> to vector<128xf32>
    %75 = vector.shape_cast %74 : vector<128xf32> to vector<1x128xf32>
    %c0_64 = arith.constant 0 : index
    %c0_65 = arith.constant 0 : index
    %c0_66 = arith.constant 0 : index
    %c0_67 = arith.constant 0 : index
    %76 = vector.load %arg9[%c0_64, %c0_65, %c0_66, %c0_67] : memref<1x1x1x128xf32, #tpu.memory_space<vmem>>, vector<1x1x1x128xf32>
    %77 = vector.shape_cast %76 : vector<1x1x1x128xf32> to vector<1x128xf32>
    %78 = vector.shape_cast %75 : vector<1x128xf32> to vector<1x1x1x128xf32>
    tpu.vector_store %arg9[%c0_64, %c0_65, %c0_66, %c0_67], %78 {strides = array<i32>} : memref<1x1x1x128xf32, #tpu.memory_space<vmem>>, vector<1x1x1x128xf32>,
    return
  }
  func.func @transform_0(%arg0: i32, %arg1: i32) -> (i32, i32, i32) {
    %c0_i32 = arith.constant 0 : i32
    %c0_i32_0 = arith.constant 0 : i32
    return %arg0, %arg1, %c0_i32 : i32, i32, i32
  }
  func.func @transform_1(%arg0: i32, %arg1: i32) -> (i32, i32, i32, i32) {
    %c0_i32 = arith.constant 0 : i32
    %c0_i32_0 = arith.constant 0 : i32
    %c0_i32_1 = arith.constant 0 : i32
    return %arg0, %arg1, %c0_i32, %c0_i32_0 : i32, i32, i32, i32
  }
  func.func @transform_2(%arg0: i32, %arg1: i32) -> (i32, i32, i32) {
    %c0_i32 = arith.constant 0 : i32
    %c0_i32_0 = arith.constant 0 : i32
    %c0_i32_1 = arith.constant 0 : i32
    %c0_i32_2 = arith.constant 0 : i32
    return %c0_i32, %c0_i32_0, %c0_i32_1 : i32, i32, i32
  }
  func.func @transform_3(%arg0: i32, %arg1: i32) -> (i32, i32) {
    %c0_i32 = arith.constant 0 : i32
    %c0_i32_0 = arith.constant 0 : i32
    %c0_i32_1 = arith.constant 0 : i32
    return %c0_i32, %c0_i32_0 : i32, i32
  }
  func.func @transform_4(%arg0: i32, %arg1: i32) -> (i32, i32) {
    %c0_i32 = arith.constant 0 : i32
    %c0_i32_0 = arith.constant 0 : i32
    return %arg1, %c0_i32 : i32, i32
  }
  func.func @transform_5(%arg0: i32, %arg1: i32) -> (i32, i32, i32) {
    %c0_i32 = arith.constant 0 : i32
    %c0_i32_0 = arith.constant 0 : i32
    return %arg0, %arg1, %c0_i32 : i32, i32, i32
  }
  func.func @transform_6(%arg0: i32, %arg1: i32) -> (i32, i32, i32, i32) {
    %c0_i32 = arith.constant 0 : i32
    %c0_i32_0 = arith.constant 0 : i32
    %c0_i32_1 = arith.constant 0 : i32
    return %arg0, %arg1, %c0_i32, %c0_i32_0 : i32, i32, i32, i32
  }
  func.func @transform_7(%arg0: i32, %arg1: i32) -> (i32, i32, i32, i32) {
    %c0_i32 = arith.constant 0 : i32
    %c0_i32_0 = arith.constant 0 : i32
    %c0_i32_1 = arith.constant 0 : i32
    return %arg0, %arg1, %c0_i32, %c0_i32_0 : i32, i32, i32, i32
  }
}

</mosaic_0001>

<llo_original>
// kernel: base_block_forward.3
$region0: #{base_block_forward.3}
  #allocation0 [shape = 'u32[]', space=smem, size = 0x4, offset = 0x4, fixed_abs, tag = 'smem constant byte address 0x4 - core index']
  #allocation1 [shape = 'u32[72,128]{1,0:T(1,128)}', space=vmem, size = 0x9000, scoped, tag = 'internal scratch']
  %s0 = inlined_call_operand.vmem [shape: f32[2,288,128], index: 0, kind: input, shape index: {}, may-alias: {0,3}]
  %s1 = inlined_call_operand.vmem [shape: f32[1,128], index: 1, kind: input, shape index: {}]
  %s2 = inlined_call_operand.vmem [shape: f32[1,128], index: 2, kind: input, shape index: {}]
  %s3 = inlined_call_operand.vmem [shape: f32[2,288,128], index: 3, kind: output, shape index: {}, may-alias: {0,3}]
  %s4 = sld [smem:[#allocation0]]
  $region45: #{base_block_forward.3} parent=0
    _
  %s6 = ssub.s32 1, %s4
  %s7 = scalar_select 0, %s6, %s4
  loop: start=0, step=1, limit=4
  $region2: #{base_block_forward.3} parent=0 // loop_pre_header
    _
  $region3: #{base_block_forward.3} parent=0 // loop_header
    %s9 = sphi 0, %s13
    %p10 = scmp.ge.s32.totalorder %s9, 4
    %s16 = sphi 0, %s28
    %s17 = sphi 0, %s24
    %s18 = sphi 0, %s16
    %s19 = sphi 0, %s17
    %s20 = sphi 0, %s18
    %s21 = sphi 0, %s19
    %s33 = sphi 0, %s35
    %s36 = sphi 0, %s33
    %s37 = sphi 0, %s36
    %s53 = sphi 0, %s37
    %s57 = sphi 0, %s57
    %s59 = sphi 0, %s57
    %s60 = sphi 0, %s59
    %s74 = sphi 0, %s60
    %s78 = sphi 0, %s78
    %s80 = sphi 0, %s78
    %s81 = sphi 0, %s80
    %s95 = sphi 0, %s81
    %s103 = sphi 0, %s105
    %s106 = sphi 0, %s103
    %s107 = sphi 0, %s106
    %s123 = sphi 0, %s107
  $region4: #{base_block_forward.3} parent=0 // loop_header_branch
    %12 = sbr.rel (%p10) target = $region8
  $region5: #{base_block_forward.3} parent=0 // loop_body
    %s14 = ssub.s32 %s9, 1
    %s15 = ssub.s32 %s9, 2
    %s22 = sadd.s32 1, %s17
    %p23 = scmp.ge.s32.totalorder %s22, 1
    %s24 = scalar_select %p23, 0, %s22
    %s25 = sadd.s32 1, %s16
    %s26 = scalar_select %p23, %s25, %s16
    %p27 = scmp.ge.s32.totalorder %s26, 2
    %s28 = scalar_select %p27, 0, %s26
    %s29 = ssub.s32 %s16, %s28
    %s30 = ssub.s32 %s17, %s24
    %s31 = sor.u32 %s29, %s30
    %p32 = scmp.eq.s32.totalorder %s31, 0
    %s34 = sadd.s32 %s33, 1
    %s35 = scalar_select %p32, %s33, %s34
    %p38 = pneg %p32
    %p39 = scmp.eq.s32.totalorder %s9, 1
    %p40 = por %p38, %p39
    %p41 = scmp.ne.s32.totalorder %s33, %s36
    %p42 = scmp.eq.s32.totalorder %s9, 0
    %p43 = por %p41, %p42
    %p44 = scmp.ne.s32.totalorder %s33, %s36
    %p45 = scmp.eq.s32.totalorder %s14, 1
    %p46 = por %p44, %p45
    %p47 = scmp.ne.s32.totalorder %s36, %s37
    %p48 = scmp.eq.s32.totalorder %s14, 0
    %p49 = por %p47, %p48
    %p50 = scmp.ne.s32.totalorder %s36, %s37
    %p51 = scmp.eq.s32.totalorder %s15, 1
    %p52 = por %p50, %p51
    %p54 = scmp.ne.s32.totalorder %s37, %s53
    %p55 = scmp.eq.s32.totalorder %s15, 0
    %p56 = por %p54, %p55
    %s58 = sadd.s32 %s57, 1
    %p61 = scmp.eq.s32.totalorder %s9, 1
    %p62 = scmp.ne.s32.totalorder %s57, %s59
    %p63 = scmp.eq.s32.totalorder %s9, 0
    %p64 = por %p62, %p63
    %p65 = scmp.ne.s32.totalorder %s57, %s59
    %p66 = scmp.eq.s32.totalorder %s14, 1
    %p67 = por %p65, %p66
    %p68 = scmp.ne.s32.totalorder %s59, %s60
    %p69 = scmp.eq.s32.totalorder %s14, 0
    %p70 = por %p68, %p69
    %p71 = scmp.ne.s32.totalorder %s59, %s60
    %p72 = scmp.eq.s32.totalorder %s15, 1
    %p73 = por %p71, %p72
    %p75 = scmp.ne.s32.totalorder %s60, %s74
    %p76 = scmp.eq.s32.totalorder %s15, 0
    %p77 = por %p75, %p76
    %s79 = sadd.s32 %s78, 1
    %p82 = scmp.eq.s32.totalorder %s9, 1
    %p83 = scmp.ne.s32.totalorder %s78, %s80
    %p84 = scmp.eq.s32.totalorder %s9, 0
    %p85 = por %p83, %p84
    %p86 = scmp.ne.s32.totalorder %s78, %s80
    %p87 = scmp.eq.s32.totalorder %s14, 1
    %p88 = por %p86, %p87
    %p89 = scmp.ne.s32.totalorder %s80, %s81
    %p90 = scmp.eq.s32.totalorder %s14, 0
    %p91 = por %p89, %p90
    %p92 = scmp.ne.s32.totalorder %s80, %s81
    %p93 = scmp.eq.s32.totalorder %s15, 1
    %p94 = por %p92, %p93
    %p96 = scmp.ne.s32.totalorder %s81, %s95
    %p97 = scmp.eq.s32.totalorder %s15, 0
    %p98 = por %p96, %p97
    %s99 = ssub.s32 %s16, %s28
    %s100 = ssub.s32 %s17, %s24
    %s101 = sor.u32 %s99, %s100
    %p102 = scmp.eq.s32.totalorder %s101, 0
    %s104 = sadd.s32 %s103, 1
    %s105 = scalar_select %p102, %s103, %s104
    %p108 = pneg %p102
    %p109 = scmp.eq.s32.totalorder %s9, 1
    %p110 = por %p108, %p109
    %p111 = scmp.ne.s32.totalorder %s103, %s106
    %p112 = scmp.eq.s32.totalorder %s9, 0
    %p113 = por %p111, %p112
    %p114 = scmp.ne.s32.totalorder %s103, %s106
    %p115 = scmp.eq.s32.totalorder %s14, 1
    %p116 = por %p114, %p115
    %p117 = scmp.ne.s32.totalorder %s106, %s107
    %p118 = scmp.eq.s32.totalorder %s14, 0
    %p119 = por %p117, %p118
    %p120 = scmp.ne.s32.totalorder %s106, %s107
    %p121 = scmp.eq.s32.totalorder %s15, 1
    %p122 = por %p120, %p121
    %p124 = scmp.ne.s32.totalorder %s107, %s123
    %p125 = scmp.eq.s32.totalorder %s15, 0
    %p126 = por %p124, %p125
    %p127 = scmp.le.s32.totalorder 1, %s9
    %p128 = scmp.lt.s32.totalorder %s9, 3
    %p129 = pnand %p127, %p128
    %p130 = pneg %p129
    // Predicated region
    $region9: #{base_block_forward.3} parent=5 // pred_check
      _
    $region10: #{base_block_forward.3} parent=5 // pred_check_branch
      %132 = sbr.rel (%p129) target = $region12
    $region11: #{base_block_forward.3} parent=5 // pred_region
      %s133 = ssub.s32 %s9, 1
      // Predicated region
      $region13: #{base_block_forward.3} parent=11 // pred_check
        %p134 = pneg %p70
      $region14: #{base_block_forward.3} parent=11 // pred_check_branch
        %136 = sbr.rel (%p134) target = $region16
      $region15: #{base_block_forward.3} parent=11 // pred_region
        _
      $region16: #{base_block_forward.3} parent=11 // pred_fallthru
        _
      // Predicated region
      $region17: #{base_block_forward.3} parent=11 // pred_check
        %p137 = pneg %p91
      $region18: #{base_block_forward.3} parent=11 // pred_check_branch
        %139 = sbr.rel (%p137) target = $region20
      $region19: #{base_block_forward.3} parent=11 // pred_region
        _
      $region20: #{base_block_forward.3} parent=11 // pred_fallthru
        _
    $region12: #{base_block_forward.3} parent=5 // pred_fallthru
      _
    %p140 = scmp.lt.s32.totalorder %s9, 2
    // Predicated region
    $region21: #{base_block_forward.3} parent=5 // pred_check
      %p141 = pneg %p140
    $region22: #{base_block_forward.3} parent=5 // pred_check_branch
      %143 = sbr.rel (%p141) target = $region24
    $region23: #{base_block_forward.3} parent=5 // pred_region
      // Predicated region
      $region25: #{base_block_forward.3} parent=23 // pred_check
        %p144 = pneg %p43
      $region26: #{base_block_forward.3} parent=23 // pred_check_branch
        %146 = sbr.rel (%p144) target = $region28
      $region27: #{base_block_forward.3} parent=23 // pred_region
        %s147 = smul.u32 36, %s17
        %p148 = scmp.lt.s32.totalorder %s16, 1
        %s149 = scalar_select %p148, %s16, 1
        %p150 = scmp.lt.s32.totalorder %s147, 35
        %s151 = scalar_select %p150, %s147, 35
        %s152 = smul.addr %s149, 36
        %s153 = sadd.s32 %s151, %s152
        %s154 = smul.addr %s153, 8
        %s155 = scalar_lea.vmem %s0, %s154
        %s156 = smul.u32 36, %s17
      $region28: #{base_block_forward.3} parent=23 // pred_fallthru
        _
    $region24: #{base_block_forward.3} parent=5 // pred_fallthru
      _
    %p157 = scmp.le.s32.totalorder 1, %s9
    %p158 = scmp.lt.s32.totalorder %s9, 3
    %p159 = pnand %p157, %p158
    %p160 = pneg %p159
    // Predicated region
    $region29: #{base_block_forward.3} parent=5 // pred_check
      _
    $region30: #{base_block_forward.3} parent=5 // pred_check_branch
      %162 = sbr.rel (%p159) target = $region32
    $region31: #{base_block_forward.3} parent=5 // pred_region
      %s163 = ssub.s32 %s9, 1
      %s164 = smul.u32 36, %s19
      %p165 = scmp.lt.s32.totalorder %s18, 1
      %s166 = scalar_select %p165, %s18, 1
      %p167 = scmp.lt.s32.totalorder %s164, 35
      %s168 = scalar_select %p167, %s164, 35
      %s169 = smul.addr %s166, 36
      %s170 = sadd.s32 %s168, %s169
      %s171 = smul.addr %s170, 8
      %s172 = scalar_lea.vmem %s0, %s171
      %p173 = pneg %p49
      %p174 = pneg %p46
      %p175 = pneg %p70
      %p176 = pneg %p67
      %p177 = pneg %p91
      %p178 = pneg %p88
      %p179 = pneg %p119
      %p180 = pneg %p116
      %s181 = smul.u32 36, %s19
      %p182 = scmp.lt.s32.totalorder %s18, 1
      %s183 = scalar_select %p182, %s18, 1
      %p184 = scmp.lt.s32.totalorder %s181, 35
      %s185 = scalar_select %p184, %s181, 35
      %s186 = smul.addr %s183, 36
      %s187 = sadd.s32 %s185, %s186
      %s188 = smul.addr %s187, 8
      %s189 = scalar_lea.vmem %s3, %s188
      %s190 = smul.u32 36, %s19
      %p191 = scmp.lt.s32.totalorder %s18, 1
      %s192 = scalar_select %p191, %s18, 1
      %p193 = scmp.lt.s32.totalorder %s190, 35
      %s194 = scalar_select %p193, %s190, 35
      %s195 = smul.addr %s192, 36
      %s196 = sadd.s32 %s194, %s195
      %s197 = smul.addr %s196, 8
      %s198 = scalar_lea.vmem %s0, %s197
      %s199 = smul.u32 36, %s19
      %s200 = smul.u32 36, %s19
      %p201 = scmp.lt.s32.totalorder %s18, 1
      %s202 = scalar_select %p201, %s18, 1
      %p203 = scmp.lt.s32.totalorder %s200, 35
      %s204 = scalar_select %p203, %s200, 35
      %s205 = smul.addr %s202, 36
      %s206 = sadd.s32 %s204, %s205
      %s207 = smul.addr %s206, 8
      %s208 = scalar_lea.vmem %s3, %s207
      %s209 = smul.u32 36, %s19
      %v210 = vld [vmem:[%s198] sm:$0xff]
      %v211 = vld [vmem:[%s198 + $0x8] sm:$0xff]
      %v212 = vld [vmem:[%s198 + $0x10] sm:$0xff]
      %v213 = vld [vmem:[%s198 + $0x18] sm:$0xff]
      %v214 = vld [vmem:[%s198 + $0x20] sm:$0xff]
      %v215 = vld [vmem:[%s198 + $0x28] sm:$0xff]
      %v216 = vld [vmem:[%s198 + $0x30] sm:$0xff]
      %v217 = vld [vmem:[%s198 + $0x38] sm:$0xff]
      %v218 = vld [vmem:[%s198 + $0x40] sm:$0xff]
      %v219 = vld [vmem:[%s198 + $0x48] sm:$0xff]
      %v220 = vld [vmem:[%s198 + $0x50] sm:$0xff]
      %v221 = vld [vmem:[%s198 + $0x58] sm:$0xff]
      %v222 = vld [vmem:[%s198 + $0x60] sm:$0xff]
      %v223 = vld [vmem:[%s198 + $0x68] sm:$0xff]
      %v224 = vld [vmem:[%s198 + $0x70] sm:$0xff]
      %v225 = vld [vmem:[%s198 + $0x78] sm:$0xff]
      %v226 = vld [vmem:[%s198 + $0x80] sm:$0xff]
      %v227 = vld [vmem:[%s198 + $0x88] sm:$0xff]
      %v228 = vld [vmem:[%s198 + $0x90] sm:$0xff]
      %v229 = vld [vmem:[%s198 + $0x98] sm:$0xff]
      %v230 = vld [vmem:[%s198 + $0xa0] sm:$0xff]
      %v231 = vld [vmem:[%s198 + $0xa8] sm:$0xff]
      %v232 = vld [vmem:[%s198 + $0xb0] sm:$0xff]
      %v233 = vld [vmem:[%s198 + $0xb8] sm:$0xff]
      %v234 = vld [vmem:[%s198 + $0xc0] sm:$0xff]
      %v235 = vld [vmem:[%s198 + $0xc8] sm:$0xff]
      %v236 = vld [vmem:[%s198 + $0xd0] sm:$0xff]
      %v237 = vld [vmem:[%s198 + $0xd8] sm:$0xff]
      %v238 = vld [vmem:[%s198 + $0xe0] sm:$0xff]
      %v239 = vld [vmem:[%s198 + $0xe8] sm:$0xff]
      %v240 = vld [vmem:[%s198 + $0xf0] sm:$0xff]
      %v241 = vld [vmem:[%s198 + $0xf8] sm:$0xff]
      %v242 = vld [vmem:[%s198 + $0x100] sm:$0xff]
      %v243 = vld [vmem:[%s198 + $0x108] sm:$0xff]
      %v244 = vld [vmem:[%s198 + $0x110] sm:$0xff]
      %v245 = vld [vmem:[%s198 + $0x118] sm:$0xff]
      %v246 = vld [vmem:[%s1] sm:$0x1]
      %v248 = vperm.slane %v246, 0
      %v250 = vmul.f32 %v210, %v248
      %v251 = vmul.f32 %v211, %v248
      %v252 = vmul.f32 %v212, %v248
      %v253 = vmul.f32 %v213, %v248
      %v254 = vmul.f32 %v214, %v248
      %v255 = vmul.f32 %v215, %v248
      %v256 = vmul.f32 %v216, %v248
      %v257 = vmul.f32 %v217, %v248
      %v258 = vmul.f32 %v218, %v248
      %v259 = vmul.f32 %v219, %v248
      %v260 = vmul.f32 %v220, %v248
      %v261 = vmul.f32 %v221, %v248
      %v262 = vmul.f32 %v222, %v248
      %v263 = vmul.f32 %v223, %v248
      %v264 = vmul.f32 %v224, %v248
      %v265 = vmul.f32 %v225, %v248
      %v266 = vmul.f32 %v226, %v248
      %v267 = vmul.f32 %v227, %v248
      %v268 = vmul.f32 %v228, %v248
      %v269 = vmul.f32 %v229, %v248
      %v270 = vmul.f32 %v230, %v248
      %v271 = vmul.f32 %v231, %v248
      %v272 = vmul.f32 %v232, %v248
      %v273 = vmul.f32 %v233, %v248
      %v274 = vmul.f32 %v234, %v248
      %v275 = vmul.f32 %v235, %v248
      %v276 = vmul.f32 %v236, %v248
      %v277 = vmul.f32 %v237, %v248
      %v278 = vmul.f32 %v238, %v248
      %v279 = vmul.f32 %v239, %v248
      %v280 = vmul.f32 %v240, %v248
      %v281 = vmul.f32 %v241, %v248
      %v282 = vmul.f32 %v242, %v248
      %v283 = vmul.f32 %v243, %v248
      %v284 = vmul.f32 %v244, %v248
      %v285 = vmul.f32 %v245, %v248
      %v286 = vld [vmem:[%s2] sm:$0x1]
      %v288 = vperm.slane %v286, 0
      %v290 = vadd.f32 %v250, %v288
      %v291 = vadd.f32 %v251, %v288
      %v292 = vadd.f32 %v252, %v288
      %v293 = vadd.f32 %v253, %v288
      %v294 = vadd.f32 %v254, %v288
      %v295 = vadd.f32 %v255, %v288
      %v296 = vadd.f32 %v256, %v288
      %v297 = vadd.f32 %v257, %v288
      %v298 = vadd.f32 %v258, %v288
      %v299 = vadd.f32 %v259, %v288
      %v300 = vadd.f32 %v260, %v288
      %v301 = vadd.f32 %v261, %v288
      %v302 = vadd.f32 %v262, %v288
      %v303 = vadd.f32 %v263, %v288
      %v304 = vadd.f32 %v264, %v288
      %v305 = vadd.f32 %v265, %v288
      %v306 = vadd.f32 %v266, %v288
      %v307 = vadd.f32 %v267, %v288
      %v308 = vadd.f32 %v268, %v288
      %v309 = vadd.f32 %v269, %v288
      %v310 = vadd.f32 %v270, %v288
      %v311 = vadd.f32 %v271, %v288
      %v312 = vadd.f32 %v272, %v288
      %v313 = vadd.f32 %v273, %v288
      %v314 = vadd.f32 %v274, %v288
      %v315 = vadd.f32 %v275, %v288
      %v316 = vadd.f32 %v276, %v288
      %v317 = vadd.f32 %v277, %v288
      %v318 = vadd.f32 %v278, %v288
      %v319 = vadd.f32 %v279, %v288
      %v320 = vadd.f32 %v280, %v288
      %v321 = vadd.f32 %v281, %v288
      %v322 = vadd.f32 %v282, %v288
      %v323 = vadd.f32 %v283, %v288
      %v324 = vadd.f32 %v284, %v288
      %v325 = vadd.f32 %v285, %v288
      %326 = vst [vmem:[%s208] sm:$0xff] %v290
      %327 = vst [vmem:[%s208 + $0x8] sm:$0xff] %v291
      %328 = vst [vmem:[%s208 + $0x10] sm:$0xff] %v292
      %329 = vst [vmem:[%s208 + $0x18] sm:$0xff] %v293
      %330 = vst [vmem:[%s208 + $0x20] sm:$0xff] %v294
      %331 = vst [vmem:[%s208 + $0x28] sm:$0xff] %v295
      %332 = vst [vmem:[%s208 + $0x30] sm:$0xff] %v296
      %333 = vst [vmem:[%s208 + $0x38] sm:$0xff] %v297
      %334 = vst [vmem:[%s208 + $0x40] sm:$0xff] %v298
      %335 = vst [vmem:[%s208 + $0x48] sm:$0xff] %v299
      %336 = vst [vmem:[%s208 + $0x50] sm:$0xff] %v300
      %337 = vst [vmem:[%s208 + $0x58] sm:$0xff] %v301
      %338 = vst [vmem:[%s208 + $0x60] sm:$0xff] %v302
      %339 = vst [vmem:[%s208 + $0x68] sm:$0xff] %v303
      %340 = vst [vmem:[%s208 + $0x70] sm:$0xff] %v304
      %341 = vst [vmem:[%s208 + $0x78] sm:$0xff] %v305
      %342 = vst [vmem:[%s208 + $0x80] sm:$0xff] %v306
      %343 = vst [vmem:[%s208 + $0x88] sm:$0xff] %v307
      %344 = vst [vmem:[%s208 + $0x90] sm:$0xff] %v308
      %345 = vst [vmem:[%s208 + $0x98] sm:$0xff] %v309
      %346 = vst [vmem:[%s208 + $0xa0] sm:$0xff] %v310
      %347 = vst [vmem:[%s208 + $0xa8] sm:$0xff] %v311
      %348 = vst [vmem:[%s208 + $0xb0] sm:$0xff] %v312
      %349 = vst [vmem:[%s208 + $0xb8] sm:$0xff] %v313
      %350 = vst [vmem:[%s208 + $0xc0] sm:$0xff] %v314
      %351 = vst [vmem:[%s208 + $0xc8] sm:$0xff] %v315
      %352 = vst [vmem:[%s208 + $0xd0] sm:$0xff] %v316
      %353 = vst [vmem:[%s208 + $0xd8] sm:$0xff] %v317
      %354 = vst [vmem:[%s208 + $0xe0] sm:$0xff] %v318
      %355 = vst [vmem:[%s208 + $0xe8] sm:$0xff] %v319
      %356 = vst [vmem:[%s208 + $0xf0] sm:$0xff] %v320
      %357 = vst [vmem:[%s208 + $0xf8] sm:$0xff] %v321
      %358 = vst [vmem:[%s208 + $0x100] sm:$0xff] %v322
      %359 = vst [vmem:[%s208 + $0x108] sm:$0xff] %v323
      %360 = vst [vmem:[%s208 + $0x110] sm:$0xff] %v324
      %361 = vst [vmem:[%s208 + $0x118] sm:$0xff] %v325
      %s362 = smul.u32 36, %s19
      %p363 = scmp.lt.s32.totalorder %s18, 1
      %s364 = scalar_select %p363, %s18, 1
      %p365 = scmp.lt.s32.totalorder %s362, 35
      %s366 = scalar_select %p365, %s362, 35
      %s367 = smul.addr %s364, 36
      %s368 = sadd.s32 %s366, %s367
      %s369 = smul.addr %s368, 8
      %s370 = scalar_lea.vmem %s3, %s369
      // Predicated region
      $region33: #{base_block_forward.3} parent=31 // pred_check
        %p371 = pneg %p116
      $region34: #{base_block_forward.3} parent=31 // pred_check_branch
        %373 = sbr.rel (%p371) target = $region36
      $region35: #{base_block_forward.3} parent=31 // pred_region
        %s374 = smul.u32 36, %s19
      $region36: #{base_block_forward.3} parent=31 // pred_fallthru
        _
    $region32: #{base_block_forward.3} parent=5 // pred_fallthru
      _
    %p375 = scmp.le.s32.totalorder 2, %s9
    // Predicated region
    $region37: #{base_block_forward.3} parent=5 // pred_check
      %p376 = pneg %p375
    $region38: #{base_block_forward.3} parent=5 // pred_check_branch
      %378 = sbr.rel (%p376) target = $region40
    $region39: #{base_block_forward.3} parent=5 // pred_region
      %s379 = ssub.s32 %s9, 2
      // Predicated region
      $region41: #{base_block_forward.3} parent=39 // pred_check
        %p380 = pneg %p122
      $region42: #{base_block_forward.3} parent=39 // pred_check_branch
        %382 = sbr.rel (%p380) target = $region44
      $region43: #{base_block_forward.3} parent=39 // pred_region
        %s383 = smul.u32 36, %s21
        %p384 = scmp.lt.s32.totalorder %s20, 1
        %s385 = scalar_select %p384, %s20, 1
        %p386 = scmp.lt.s32.totalorder %s383, 35
        %s387 = scalar_select %p386, %s383, 35
        %s388 = smul.addr %s385, 36
        %s389 = sadd.s32 %s387, %s388
        %s390 = smul.addr %s389, 8
        %s391 = scalar_lea.vmem %s3, %s390
      $region44: #{base_block_forward.3} parent=39 // pred_fallthru
        _
    $region40: #{base_block_forward.3} parent=5 // pred_fallthru
      _
  $region6: #{base_block_forward.3} parent=0 // loop_footer
    %s13 = sadd.s32 1, %s9
  $region7: #{base_block_forward.3} parent=0 // loop_footer_branch
    %8 = sbr.rel target = $region3
  $region8: #{base_block_forward.3} parent=0 // loop_exit
    _

// kernel: base_block_forward.2
$region0: #{base_block_forward.2}
  #allocation0 [shape = 'u32[]', space=smem, size = 0x4, offset = 0x4, fixed_abs, tag = 'smem constant byte address 0x4 - core index']
  #allocation1 [shape = 'u32[72,128]{1,0:T(1,128)}', space=vmem, size = 0x9000, scoped, tag = 'internal scratch']
  #allocation2 [shape = 'f32[328,8]{1,0:T(8,128)}', space=vmem, size = 0x29000, scoped, tag = 'scratch operand']
  %s0 = inlined_call_operand.vmem [shape: f32[2,576,8], index: 0, kind: input, shape index: {}]
  %s1 = inlined_call_operand.vmem [shape: f32[2,1,40,8], index: 1, kind: input, shape index: {}]
  %s2 = inlined_call_operand.vmem [shape: f32[9,8,128], index: 2, kind: input, shape index: {}]
  %s3 = inlined_call_operand.vmem [shape: f32[1,128], index: 3, kind: input, shape index: {}]
  %s4 = inlined_call_operand.vmem [shape: f32[288,1], index: 4, kind: input, shape index: {}]
  %s5 = inlined_call_operand.vmem [shape: f32[2,288,128], index: 5, kind: output, shape index: {0}]
  %s6 = inlined_call_operand.vmem [shape: f32[2,1,1,128], index: 6, kind: output, shape index: {1}]
  %s7 = inlined_call_operand.vmem [shape: f32[2,1,1,128], index: 7, kind: output, shape index: {2}]
  %8 = xla_tuple %s5, %s6, %s7
  %s9 = sld [smem:[#allocation0]]
  $region69: #{base_block_forward.2} parent=0
    _
  %s11 = ssub.s32 1, %s9
  %s12 = scalar_select 0, %s11, %s9
  loop: start=0, step=1, limit=4
  $region2: #{base_block_forward.2} parent=0 // loop_pre_header
    _
  $region3: #{base_block_forward.2} parent=0 // loop_header
    %s14 = sphi 0, %s18
    %p15 = scmp.ge.s32.totalorder %s14, 4
    %s21 = sphi 0, %s33
    %s22 = sphi 0, %s29
    %s23 = sphi 0, %s21
    %s24 = sphi 0, %s22
    %s25 = sphi 0, %s23
    %s26 = sphi 0, %s24
    %s38 = sphi 0, %s40
    %s41 = sphi 0, %s38
    %s42 = sphi 0, %s41
    %s58 = sphi 0, %s42
    %s66 = sphi 0, %s68
    %s69 = sphi 0, %s66
    %s70 = sphi 0, %s69
    %s86 = sphi 0, %s70
    %s90 = sphi 0, %s90
    %s92 = sphi 0, %s90
    %s93 = sphi 0, %s92
    %s107 = sphi 0, %s93
    %s111 = sphi 0, %s111
    %s113 = sphi 0, %s111
    %s114 = sphi 0, %s113
    %s128 = sphi 0, %s114
    %s134 = sphi 0, %s136
    %s137 = sphi 0, %s134
    %s138 = sphi 0, %s137
    %s154 = sphi 0, %s138
    %s162 = sphi 0, %s164
    %s165 = sphi 0, %s162
    %s166 = sphi 0, %s165
    %s182 = sphi 0, %s166
    %s190 = sphi 0, %s192
    %s193 = sphi 0, %s190
    %s194 = sphi 0, %s193
    %s210 = sphi 0, %s194
    %s218 = sphi 0, %s220
    %s221 = sphi 0, %s218
    %s222 = sphi 0, %s221
    %s238 = sphi 0, %s222
  $region4: #{base_block_forward.2} parent=0 // loop_header_branch
    %17 = sbr.rel (%p15) target = $region8
  $region5: #{base_block_forward.2} parent=0 // loop_body
    %s19 = ssub.s32 %s14, 1
    %s20 = ssub.s32 %s14, 2
    %s27 = sadd.s32 1, %s22
    %p28 = scmp.ge.s32.totalorder %s27, 1
    %s29 = scalar_select %p28, 0, %s27
    %s30 = sadd.s32 1, %s21
    %s31 = scalar_select %p28, %s30, %s21
    %p32 = scmp.ge.s32.totalorder %s31, 2
    %s33 = scalar_select %p32, 0, %s31
    %s34 = ssub.s32 %s21, %s33
    %s35 = ssub.s32 %s22, %s29
    %s36 = sor.u32 %s34, %s35
    %p37 = scmp.eq.s32.totalorder %s36, 0
    %s39 = sadd.s32 %s38, 1
    %s40 = scalar_select %p37, %s38, %s39
    %p43 = pneg %p37
    %p44 = scmp.eq.s32.totalorder %s14, 1
    %p45 = por %p43, %p44
    %p46 = scmp.ne.s32.totalorder %s38, %s41
    %p47 = scmp.eq.s32.totalorder %s14, 0
    %p48 = por %p46, %p47
    %p49 = scmp.ne.s32.totalorder %s38, %s41
    %p50 = scmp.eq.s32.totalorder %s19, 1
    %p51 = por %p49, %p50
    %p52 = scmp.ne.s32.totalorder %s41, %s42
    %p53 = scmp.eq.s32.totalorder %s19, 0
    %p54 = por %p52, %p53
    %p55 = scmp.ne.s32.totalorder %s41, %s42
    %p56 = scmp.eq.s32.totalorder %s20, 1
    %p57 = por %p55, %p56
    %p59 = scmp.ne.s32.totalorder %s42, %s58
    %p60 = scmp.eq.s32.totalorder %s20, 0
    %p61 = por %p59, %p60
    %s62 = ssub.s32 %s21, %s33
    %s63 = ssub.s32 %s22, %s29
    %s64 = sor.u32 %s62, %s63
    %p65 = scmp.eq.s32.totalorder %s64, 0
    %s67 = sadd.s32 %s66, 1
    %s68 = scalar_select %p65, %s66, %s67
    %p71 = pneg %p65
    %p72 = scmp.eq.s32.totalorder %s14, 1
    %p73 = por %p71, %p72
    %p74 = scmp.ne.s32.totalorder %s66, %s69
    %p75 = scmp.eq.s32.totalorder %s14, 0
    %p76 = por %p74, %p75
    %p77 = scmp.ne.s32.totalorder %s66, %s69
    %p78 = scmp.eq.s32.totalorder %s19, 1
    %p79 = por %p77, %p78
    %p80 = scmp.ne.s32.totalorder %s69, %s70
    %p81 = scmp.eq.s32.totalorder %s19, 0
    %p82 = por %p80, %p81
    %p83 = scmp.ne.s32.totalorder %s69, %s70
    %p84 = scmp.eq.s32.totalorder %s20, 1
    %p85 = por %p83, %p84
    %p87 = scmp.ne.s32.totalorder %s70, %s86
    %p88 = scmp.eq.s32.totalorder %s20, 0
    %p89 = por %p87, %p88
    %s91 = sadd.s32 %s90, 1
    %p94 = scmp.eq.s32.totalorder %s14, 1
    %p95 = scmp.ne.s32.totalorder %s90, %s92
    %p96 = scmp.eq.s32.totalorder %s14, 0
    %p97 = por %p95, %p96
    %p98 = scmp.ne.s32.totalorder %s90, %s92
    %p99 = scmp.eq.s32.totalorder %s19, 1
    %p100 = por %p98, %p99
    %p101 = scmp.ne.s32.totalorder %s92, %s93
    %p102 = scmp.eq.s32.totalorder %s19, 0
    %p103 = por %p101, %p102
    %p104 = scmp.ne.s32.totalorder %s92, %s93
    %p105 = scmp.eq.s32.totalorder %s20, 1
    %p106 = por %p104, %p105
    %p108 = scmp.ne.s32.totalorder %s93, %s107
    %p109 = scmp.eq.s32.totalorder %s20, 0
    %p110 = por %p108, %p109
    %s112 = sadd.s32 %s111, 1
    %p115 = scmp.eq.s32.totalorder %s14, 1
    %p116 = scmp.ne.s32.totalorder %s111, %s113
    %p117 = scmp.eq.s32.totalorder %s14, 0
    %p118 = por %p116, %p117
    %p119 = scmp.ne.s32.totalorder %s111, %s113
    %p120 = scmp.eq.s32.totalorder %s19, 1
    %p121 = por %p119, %p120
    %p122 = scmp.ne.s32.totalorder %s113, %s114
    %p123 = scmp.eq.s32.totalorder %s19, 0
    %p124 = por %p122, %p123
    %p125 = scmp.ne.s32.totalorder %s113, %s114
    %p126 = scmp.eq.s32.totalorder %s20, 1
    %p127 = por %p125, %p126
    %p129 = scmp.ne.s32.totalorder %s114, %s128
    %p130 = scmp.eq.s32.totalorder %s20, 0
    %p131 = por %p129, %p130
    %s132 = ssub.s32 %s22, %s29
    %p133 = scmp.eq.s32.totalorder %s132, 0
    %s135 = sadd.s32 %s134, 1
    %s136 = scalar_select %p133, %s134, %s135
    %p139 = pneg %p133
    %p140 = scmp.eq.s32.totalorder %s14, 1
    %p141 = por %p139, %p140
    %p142 = scmp.ne.s32.totalorder %s134, %s137
    %p143 = scmp.eq.s32.totalorder %s14, 0
    %p144 = por %p142, %p143
    %p145 = scmp.ne.s32.totalorder %s134, %s137
    %p146 = scmp.eq.s32.totalorder %s19, 1
    %p147 = por %p145, %p146
    %p148 = scmp.ne.s32.totalorder %s137, %s138
    %p149 = scmp.eq.s32.totalorder %s19, 0
    %p150 = por %p148, %p149
    %p151 = scmp.ne.s32.totalorder %s137, %s138
    %p152 = scmp.eq.s32.totalorder %s20, 1
    %p153 = por %p151, %p152
    %p155 = scmp.ne.s32.totalorder %s138, %s154
    %p156 = scmp.eq.s32.totalorder %s20, 0
    %p157 = por %p155, %p156
    %s158 = ssub.s32 %s21, %s33
    %s159 = ssub.s32 %s22, %s29
    %s160 = sor.u32 %s158, %s159
    %p161 = scmp.eq.s32.totalorder %s160, 0
    %s163 = sadd.s32 %s162, 1
    %s164 = scalar_select %p161, %s162, %s163
    %p167 = pneg %p161
    %p168 = scmp.eq.s32.totalorder %s14, 1
    %p169 = por %p167, %p168
    %p170 = scmp.ne.s32.totalorder %s162, %s165
    %p171 = scmp.eq.s32.totalorder %s14, 0
    %p172 = por %p170, %p171
    %p173 = scmp.ne.s32.totalorder %s162, %s165
    %p174 = scmp.eq.s32.totalorder %s19, 1
    %p175 = por %p173, %p174
    %p176 = scmp.ne.s32.totalorder %s165, %s166
    %p177 = scmp.eq.s32.totalorder %s19, 0
    %p178 = por %p176, %p177
    %p179 = scmp.ne.s32.totalorder %s165, %s166
    %p180 = scmp.eq.s32.totalorder %s20, 1
    %p181 = por %p179, %p180
    %p183 = scmp.ne.s32.totalorder %s166, %s182
    %p184 = scmp.eq.s32.totalorder %s20, 0
    %p185 = por %p183, %p184
    %s186 = ssub.s32 %s21, %s33
    %s187 = ssub.s32 %s22, %s29
    %s188 = sor.u32 %s186, %s187
    %p189 = scmp.eq.s32.totalorder %s188, 0
    %s191 = sadd.s32 %s190, 1
    %s192 = scalar_select %p189, %s190, %s191
    %p195 = pneg %p189
    %p196 = scmp.eq.s32.totalorder %s14, 1
    %p197 = por %p195, %p196
    %p198 = scmp.ne.s32.totalorder %s190, %s193
    %p199 = scmp.eq.s32.totalorder %s14, 0
    %p200 = por %p198, %p199
    %p201 = scmp.ne.s32.totalorder %s190, %s193
    %p202 = scmp.eq.s32.totalorder %s19, 1
    %p203 = por %p201, %p202
    %p204 = scmp.ne.s32.totalorder %s193, %s194
    %p205 = scmp.eq.s32.totalorder %s19, 0
    %p206 = por %p204, %p205
    %p207 = scmp.ne.s32.totalorder %s193, %s194
    %p208 = scmp.eq.s32.totalorder %s20, 1
    %p209 = por %p207, %p208
    %p211 = scmp.ne.s32.totalorder %s194, %s210
    %p212 = scmp.eq.s32.totalorder %s20, 0
    %p213 = por %p211, %p212
    %s214 = ssub.s32 %s21, %s33
    %s215 = ssub.s32 %s22, %s29
    %s216 = sor.u32 %s214, %s215
    %p217 = scmp.eq.s32.totalorder %s216, 0
    %s219 = sadd.s32 %s218, 1
    %s220 = scalar_select %p217, %s218, %s219
    %p223 = pneg %p217
    %p224 = scmp.eq.s32.totalorder %s14, 1
    %p225 = por %p223, %p224
    %p226 = scmp.ne.s32.totalorder %s218, %s221
    %p227 = scmp.eq.s32.totalorder %s14, 0
    %p228 = por %p226, %p227
    %p229 = scmp.ne.s32.totalorder %s218, %s221
    %p230 = scmp.eq.s32.totalorder %s19, 1
    %p231 = por %p229, %p230
    %p232 = scmp.ne.s32.totalorder %s221, %s222
    %p233 = scmp.eq.s32.totalorder %s19, 0
    %p234 = por %p232, %p233
    %p235 = scmp.ne.s32.totalorder %s221, %s222
    %p236 = scmp.eq.s32.totalorder %s20, 1
    %p237 = por %p235, %p236
    %p239 = scmp.ne.s32.totalorder %s222, %s238
    %p240 = scmp.eq.s32.totalorder %s20, 0
    %p241 = por %p239, %p240
    %p242 = scmp.le.s32.totalorder 1, %s14
    %p243 = scmp.lt.s32.totalorder %s14, 3
    %p244 = pnand %p242, %p243
    %p245 = pneg %p244
    // Predicated region
    $region9: #{base_block_forward.2} parent=5 // pred_check
      _
    $region10: #{base_block_forward.2} parent=5 // pred_check_branch
      %247 = sbr.rel (%p244) target = $region12
    $region11: #{base_block_forward.2} parent=5 // pred_region
      %s248 = ssub.s32 %s14, 1
      // Predicated region
      $region13: #{base_block_forward.2} parent=11 // pred_check
        %p249 = pneg %p103
      $region14: #{base_block_forward.2} parent=11 // pred_check_branch
        %251 = sbr.rel (%p249) target = $region16
      $region15: #{base_block_forward.2} parent=11 // pred_region
        _
      $region16: #{base_block_forward.2} parent=11 // pred_fallthru
        _
      // Predicated region
      $region17: #{base_block_forward.2} parent=11 // pred_check
        %p252 = pneg %p124
      $region18: #{base_block_forward.2} parent=11 // pred_check_branch
        %254 = sbr.rel (%p252) target = $region20
      $region19: #{base_block_forward.2} parent=11 // pred_region
        _
      $region20: #{base_block_forward.2} parent=11 // pred_fallthru
        _
      // Predicated region
      $region21: #{base_block_forward.2} parent=11 // pred_check
        %p255 = pneg %p150
      $region22: #{base_block_forward.2} parent=11 // pred_check_branch
        %257 = sbr.rel (%p255) target = $region24
      $region23: #{base_block_forward.2} parent=11 // pred_region
        %s258 = smul.u32 36, %s24
        %p259 = scmp.lt.s32.totalorder %s258, 35
        %s260 = scalar_select %p259, %s258, 35
        %s261 = smul.addr %s260, 8
        %s262 = scalar_lea.vmem %s4, %s261
        %s263 = smul.u32 36, %s24
      $region24: #{base_block_forward.2} parent=11 // pred_fallthru
        _
    $region12: #{base_block_forward.2} parent=5 // pred_fallthru
      _
    %p264 = scmp.lt.s32.totalorder %s14, 2
    // Predicated region
    $region25: #{base_block_forward.2} parent=5 // pred_check
      %p265 = pneg %p264
    $region26: #{base_block_forward.2} parent=5 // pred_check_branch
      %267 = sbr.rel (%p265) target = $region28
    $region27: #{base_block_forward.2} parent=5 // pred_region
      // Predicated region
      $region29: #{base_block_forward.2} parent=27 // pred_check
        %p268 = pneg %p48
      $region30: #{base_block_forward.2} parent=27 // pred_check_branch
        %270 = sbr.rel (%p268) target = $region32
      $region31: #{base_block_forward.2} parent=27 // pred_region
        %s271 = smul.u32 36, %s22
        %p272 = scmp.lt.s32.totalorder %s21, 1
        %s273 = scalar_select %p272, %s21, 1
        %p274 = scmp.lt.s32.totalorder %s271, 71
        %s275 = scalar_select %p274, %s271, 71
        %s276 = smul.addr %s273, 72
        %s277 = sadd.s32 %s275, %s276
        %s278 = smul.addr %s277, 8
        %s279 = scalar_lea.vmem %s0, %s278
        %s280 = smul.u32 36, %s22
      $region32: #{base_block_forward.2} parent=27 // pred_fallthru
        _
      // Predicated region
      $region33: #{base_block_forward.2} parent=27 // pred_check
        %p281 = pneg %p76
      $region34: #{base_block_forward.2} parent=27 // pred_check_branch
        %283 = sbr.rel (%p281) target = $region36
      $region35: #{base_block_forward.2} parent=27 // pred_region
        %p284 = scmp.lt.s32.totalorder %s21, 1
        %s285 = scalar_select %p284, %s21, 1
        %p286 = scmp.lt.s32.totalorder %s22, 0
        %s287 = scalar_select %p286, %s22, 0
        %s288 = smul.addr %s287, 5
        %s289 = smul.addr %s285, 5
        %s290 = sadd.s32 %s288, %s289
        %s291 = smul.addr %s290, 8
        %s292 = scalar_lea.vmem %s1, %s291
      $region36: #{base_block_forward.2} parent=27 // pred_fallthru
        _
    $region28: #{base_block_forward.2} parent=5 // pred_fallthru
      _
    %p293 = scmp.le.s32.totalorder 1, %s14
    %p294 = scmp.lt.s32.totalorder %s14, 3
    %p295 = pnand %p293, %p294
    %p296 = pneg %p295
    // Predicated region
    $region37: #{base_block_forward.2} parent=5 // pred_check
      _
    $region38: #{base_block_forward.2} parent=5 // pred_check_branch
      %298 = sbr.rel (%p295) target = $region40
    $region39: #{base_block_forward.2} parent=5 // pred_region
      %s299 = ssub.s32 %s14, 1
      %s300 = smul.u32 36, %s24
      %p301 = scmp.lt.s32.totalorder %s23, 1
      %s302 = scalar_select %p301, %s23, 1
      %p303 = scmp.lt.s32.totalorder %s300, 71
      %s304 = scalar_select %p303, %s300, 71
      %s305 = smul.addr %s302, 72
      %s306 = sadd.s32 %s304, %s305
      %s307 = smul.addr %s306, 8
      %s308 = scalar_lea.vmem %s0, %s307
      %p309 = pneg %p54
      %p310 = pneg %p51
      %p311 = scmp.lt.s32.totalorder %s23, 1
      %s312 = scalar_select %p311, %s23, 1
      %p313 = scmp.lt.s32.totalorder %s24, 0
      %s314 = scalar_select %p313, %s24, 0
      %s315 = smul.addr %s314, 5
      %s316 = smul.addr %s312, 5
      %s317 = sadd.s32 %s315, %s316
      %s318 = smul.addr %s317, 8
      %s319 = scalar_lea.vmem %s1, %s318
      %p320 = pneg %p82
      %p321 = pneg %p79
      %p322 = pneg %p103
      %p323 = pneg %p100
      %p324 = pneg %p124
      %p325 = pneg %p121
      %s326 = smul.u32 36, %s24
      %p327 = scmp.lt.s32.totalorder %s326, 35
      %s328 = scalar_select %p327, %s326, 35
      %s329 = smul.addr %s328, 8
      %s330 = scalar_lea.vmem %s4, %s329
      %p331 = pneg %p150
      %p332 = pneg %p147
      %p333 = pneg %p178
      %p334 = pneg %p175
      %s335 = smul.u32 36, %s24
      %p336 = scmp.lt.s32.totalorder %s23, 1
      %s337 = scalar_select %p336, %s23, 1
      %p338 = scmp.lt.s32.totalorder %s335, 35
      %s339 = scalar_select %p338, %s335, 35
      %s340 = smul.addr %s337, 36
      %s341 = sadd.s32 %s339, %s340
      %s342 = smul.addr %s341, 8
      %s343 = scalar_lea.vmem %s5, %s342
      %p344 = pneg %p206
      %p345 = pneg %p203
      %p346 = scmp.lt.s32.totalorder %s23, 1
      %s347 = scalar_select %p346, %s23, 1
      %p348 = scmp.lt.s32.totalorder %s24, 0
      %s349 = scalar_select %p348, %s24, 0
      %s350 = sadd.s32 %s349, %s347
      %s351 = scalar_lea.vmem %s6, %s350
      %p352 = pneg %p234
      %p353 = pneg %p231
      %p354 = scmp.lt.s32.totalorder %s23, 1
      %s355 = scalar_select %p354, %s23, 1
      %p356 = scmp.lt.s32.totalorder %s24, 0
      %s357 = scalar_select %p356, %s24, 0
      %s358 = sadd.s32 %s357, %s355
      %s359 = scalar_lea.vmem %s7, %s358
      %s360 = smul.u32 36, %s24
      %p361 = scmp.lt.s32.totalorder %s23, 1
      %s362 = scalar_select %p361, %s23, 1
      %p363 = scmp.lt.s32.totalorder %s360, 71
      %s364 = scalar_select %p363, %s360, 71
      %s365 = smul.addr %s362, 72
      %s366 = sadd.s32 %s364, %s365
      %s367 = smul.addr %s366, 8
      %s368 = scalar_lea.vmem %s0, %s367
      %s369 = smul.u32 36, %s24
      %p370 = scmp.lt.s32.totalorder %s23, 1
      %s371 = scalar_select %p370, %s23, 1
      %p372 = scmp.lt.s32.totalorder %s24, 0
      %s373 = scalar_select %p372, %s24, 0
      %s374 = smul.addr %s373, 5
      %s375 = smul.addr %s371, 5
      %s376 = sadd.s32 %s374, %s375
      %s377 = smul.addr %s376, 8
      %s378 = scalar_lea.vmem %s1, %s377
      %s379 = smul.u32 36, %s24
      %p380 = scmp.lt.s32.totalorder %s379, 35
      %s381 = scalar_select %p380, %s379, 35
      %s382 = smul.addr %s381, 8
      %s383 = scalar_lea.vmem %s4, %s382
      %s384 = smul.u32 36, %s24
      %s385 = smul.u32 36, %s24
      %p386 = scmp.lt.s32.totalorder %s23, 1
      %s387 = scalar_select %p386, %s23, 1
      %p388 = scmp.lt.s32.totalorder %s385, 35
      %s389 = scalar_select %p388, %s385, 35
      %s390 = smul.addr %s387, 36
      %s391 = sadd.s32 %s389, %s390
      %s392 = smul.addr %s391, 8
      %s393 = scalar_lea.vmem %s5, %s392
      %s394 = smul.u32 36, %s24
      %p395 = scmp.lt.s32.totalorder %s23, 1
      %s396 = scalar_select %p395, %s23, 1
      %p397 = scmp.lt.s32.totalorder %s24, 0
      %s398 = scalar_select %p397, %s24, 0
      %s399 = sadd.s32 %s398, %s396
      %s400 = scalar_lea.vmem %s6, %s399
      %p401 = scmp.lt.s32.totalorder %s23, 1
      %s402 = scalar_select %p401, %s23, 1
      %p403 = scmp.lt.s32.totalorder %s24, 0
      %s404 = scalar_select %p403, %s24, 0
      %s405 = sadd.s32 %s404, %s402
      %s406 = scalar_lea.vmem %s7, %s405
      %v407 = vld [vmem:[%s368] sm:$0xff]
      %v408 = vld [vmem:[%s368 + $0x8] sm:$0xff]
      %v409 = vld [vmem:[%s368 + $0x10] sm:$0xff]
      %v410 = vld [vmem:[%s368 + $0x18] sm:$0xff]
      %v411 = vld [vmem:[%s368 + $0x20] sm:$0xff]
      %v412 = vld [vmem:[%s368 + $0x28] sm:$0xff]
      %v413 = vld [vmem:[%s368 + $0x30] sm:$0xff]
      %v414 = vld [vmem:[%s368 + $0x38] sm:$0xff]
      %v415 = vld [vmem:[%s368 + $0x40] sm:$0xff]
      %v416 = vld [vmem:[%s368 + $0x48] sm:$0xff]
      %v417 = vld [vmem:[%s368 + $0x50] sm:$0xff]
      %v418 = vld [vmem:[%s368 + $0x58] sm:$0xff]
      %v419 = vld [vmem:[%s368 + $0x60] sm:$0xff]
      %v420 = vld [vmem:[%s368 + $0x68] sm:$0xff]
      %v421 = vld [vmem:[%s368 + $0x70] sm:$0xff]
      %v422 = vld [vmem:[%s368 + $0x78] sm:$0xff]
      %v423 = vld [vmem:[%s368 + $0x80] sm:$0xff]
      %v424 = vld [vmem:[%s368 + $0x88] sm:$0xff]
      %v425 = vld [vmem:[%s368 + $0x90] sm:$0xff]
      %v426 = vld [vmem:[%s368 + $0x98] sm:$0xff]
      %v427 = vld [vmem:[%s368 + $0xa0] sm:$0xff]
      %v428 = vld [vmem:[%s368 + $0xa8] sm:$0xff]
      %v429 = vld [vmem:[%s368 + $0xb0] sm:$0xff]
      %v430 = vld [vmem:[%s368 + $0xb8] sm:$0xff]
      %v431 = vld [vmem:[%s368 + $0xc0] sm:$0xff]
      %v432 = vld [vmem:[%s368 + $0xc8] sm:$0xff]
      %v433 = vld [vmem:[%s368 + $0xd0] sm:$0xff]
      %v434 = vld [vmem:[%s368 + $0xd8] sm:$0xff]
      %v435 = vld [vmem:[%s368 + $0xe0] sm:$0xff]
      %v436 = vld [vmem:[%s368 + $0xe8] sm:$0xff]
      %v437 = vld [vmem:[%s368 + $0xf0] sm:$0xff]
      %v438 = vld [vmem:[%s368 + $0xf8] sm:$0xff]
      %v439 = vld [vmem:[%s368 + $0x100] sm:$0xff]
      %v440 = vld [vmem:[%s368 + $0x108] sm:$0xff]
      %v441 = vld [vmem:[%s368 + $0x110] sm:$0xff]
      %v442 = vld [vmem:[%s368 + $0x118] sm:$0xff]
      %vm443 = vcmask 64512
      %444 = vst.msk [vmem:[#allocation2] sm:$0xff] %vm443, %v407
      %445 = vst.msk [vmem:[#allocation2 + $0x8] sm:$0xff] %vm443, %v408
      %446 = vst.msk [vmem:[#allocation2 + $0x10] sm:$0xff] %vm443, %v409
      %447 = vst.msk [vmem:[#allocation2 + $0x18] sm:$0xff] %vm443, %v410
      %448 = vst.msk [vmem:[#allocation2 + $0x20] sm:$0xff] %vm443, %v411
      %449 = vst.msk [vmem:[#allocation2 + $0x28] sm:$0xff] %vm443, %v412
      %450 = vst.msk [vmem:[#allocation2 + $0x30] sm:$0xff] %vm443, %v413
      %451 = vst.msk [vmem:[#allocation2 + $0x38] sm:$0xff] %vm443, %v414
      %452 = vst.msk [vmem:[#allocation2 + $0x40] sm:$0xff] %vm443, %v415
      %453 = vst.msk [vmem:[#allocation2 + $0x48] sm:$0xff] %vm443, %v416
      %454 = vst.msk [vmem:[#allocation2 + $0x50] sm:$0xff] %vm443, %v417
      %455 = vst.msk [vmem:[#allocation2 + $0x58] sm:$0xff] %vm443, %v418
      %456 = vst.msk [vmem:[#allocation2 + $0x60] sm:$0xff] %vm443, %v419
      %457 = vst.msk [vmem:[#allocation2 + $0x68] sm:$0xff] %vm443, %v420
      %458 = vst.msk [vmem:[#allocation2 + $0x70] sm:$0xff] %vm443, %v421
      %459 = vst.msk [vmem:[#allocation2 + $0x78] sm:$0xff] %vm443, %v422
      %460 = vst.msk [vmem:[#allocation2 + $0x80] sm:$0xff] %vm443, %v423
      %461 = vst.msk [vmem:[#allocation2 + $0x88] sm:$0xff] %vm443, %v424
      %462 = vst.msk [vmem:[#allocation2 + $0x90] sm:$0xff] %vm443, %v425
      %463 = vst.msk [vmem:[#allocation2 + $0x98] sm:$0xff] %vm443, %v426
      %464 = vst.msk [vmem:[#allocation2 + $0xa0] sm:$0xff] %vm443, %v427
      %465 = vst.msk [vmem:[#allocation2 + $0xa8] sm:$0xff] %vm443, %v428
      %466 = vst.msk [vmem:[#allocation2 + $0xb0] sm:$0xff] %vm443, %v429
      %467 = vst.msk [vmem:[#allocation2 + $0xb8] sm:$0xff] %vm443, %v430
      %468 = vst.msk [vmem:[#allocation2 + $0xc0] sm:$0xff] %vm443, %v431
      %469 = vst.msk [vmem:[#allocation2 + $0xc8] sm:$0xff] %vm443, %v432
      %470 = vst.msk [vmem:[#allocation2 + $0xd0] sm:$0xff] %vm443, %v433
      %471 = vst.msk [vmem:[#allocation2 + $0xd8] sm:$0xff] %vm443, %v434
      %472 = vst.msk [vmem:[#allocation2 + $0xe0] sm:$0xff] %vm443, %v435
      %473 = vst.msk [vmem:[#allocation2 + $0xe8] sm:$0xff] %vm443, %v436
      %474 = vst.msk [vmem:[#allocation2 + $0xf0] sm:$0xff] %vm443, %v437
      %475 = vst.msk [vmem:[#allocation2 + $0xf8] sm:$0xff] %vm443, %v438
      %476 = vst.msk [vmem:[#allocation2 + $0x100] sm:$0xff] %vm443, %v439
      %477 = vst.msk [vmem:[#allocation2 + $0x108] sm:$0xff] %vm443, %v440
      %478 = vst.msk [vmem:[#allocation2 + $0x110] sm:$0xff] %vm443, %v441
      %479 = vst.msk [vmem:[#allocation2 + $0x118] sm:$0xff] %vm443, %v442
      %v480 = vld [vmem:[%s378] sm:$0xff]
      %v481 = vld [vmem:[%s378 + $0x8] sm:$0xff]
      %v482 = vld [vmem:[%s378 + $0x10] sm:$0xff]
      %v483 = vld [vmem:[%s378 + $0x18] sm:$0xff]
      %v484 = vld [vmem:[%s378 + $0x20] sm:$0xff]
      %485 = vst.msk [vmem:[#allocation2 + $0x120] sm:$0xff] %vm443, %v480
      %486 = vst.msk [vmem:[#allocation2 + $0x128] sm:$0xff] %vm443, %v481
      %487 = vst.msk [vmem:[#allocation2 + $0x130] sm:$0xff] %vm443, %v482
      %488 = vst.msk [vmem:[#allocation2 + $0x138] sm:$0xff] %vm443, %v483
      %489 = vst.msk [vmem:[#allocation2 + $0x140] sm:$0xff] %vm443, %v484
      %v490 = vld [vmem:[#allocation2] sm:$0xff]
      %v491 = vld [vmem:[#allocation2 + $0x8] sm:$0xff]
      %v492 = vld [vmem:[#allocation2 + $0x10] sm:$0xff]
      %v493 = vld [vmem:[#allocation2 + $0x18] sm:$0xff]
      %v494 = vld [vmem:[#allocation2 + $0x20] sm:$0xff]
      %v495 = vld [vmem:[#allocation2 + $0x28] sm:$0xff]
      %v496 = vld [vmem:[#allocation2 + $0x30] sm:$0xff]
      %v497 = vld [vmem:[#allocation2 + $0x38] sm:$0xff]
      %v498 = vld [vmem:[#allocation2 + $0x40] sm:$0xff]
      %v499 = vld [vmem:[#allocation2 + $0x48] sm:$0xff]
      %v500 = vld [vmem:[#allocation2 + $0x50] sm:$0xff]
      %v501 = vld [vmem:[#allocation2 + $0x58] sm:$0xff]
      %v502 = vld [vmem:[#allocation2 + $0x60] sm:$0xff]
      %v503 = vld [vmem:[#allocation2 + $0x68] sm:$0xff]
      %v504 = vld [vmem:[#allocation2 + $0x70] sm:$0xff]
      %v505 = vld [vmem:[#allocation2 + $0x78] sm:$0xff]
      %v506 = vld [vmem:[#allocation2 + $0x80] sm:$0xff]
      %v507 = vld [vmem:[#allocation2 + $0x88] sm:$0xff]
      %v508 = vld [vmem:[#allocation2 + $0x90] sm:$0xff]
      %v509 = vld [vmem:[#allocation2 + $0x98] sm:$0xff]
      %v510 = vld [vmem:[#allocation2 + $0xa0] sm:$0xff]
      %v511 = vld [vmem:[#allocation2 + $0xa8] sm:$0xff]
      %v512 = vld [vmem:[#allocation2 + $0xb0] sm:$0xff]
      %v513 = vld [vmem:[#allocation2 + $0xb8] sm:$0xff]
      %v514 = vld [vmem:[#allocation2 + $0xc0] sm:$0xff]
      %v515 = vld [vmem:[#allocation2 + $0xc8] sm:$0xff]
      %v516 = vld [vmem:[#allocation2 + $0xd0] sm:$0xff]
      %v517 = vld [vmem:[#allocation2 + $0xd8] sm:$0xff]
      %v518 = vld [vmem:[#allocation2 + $0xe0] sm:$0xff]
      %v519 = vld [vmem:[#allocation2 + $0xe8] sm:$0xff]
      %v520 = vld [vmem:[#allocation2 + $0xf0] sm:$0xff]
      %v521 = vld [vmem:[#allocation2 + $0xf8] sm:$0xff]
      %v522 = vld [vmem:[#allocation2 + $0x100] sm:$0xff]
      %v523 = vld [vmem:[#allocation2 + $0x108] sm:$0xff]
      %v524 = vld [vmem:[#allocation2 + $0x110] sm:$0xff]
      %v525 = vld [vmem:[#allocation2 + $0x118] sm:$0xff]
      %v526 = vld [vmem:[%s2] sm:$0xff]
      %v527 = vld [vmem:[#allocation2 + $0x1] sm:$0xff]
      %v528 = vld [vmem:[#allocation2 + $0x9] sm:$0xff]
      %v529 = vld [vmem:[#allocation2 + $0x11] sm:$0xff]
      %v530 = vld [vmem:[#allocation2 + $0x19] sm:$0xff]
      %v531 = vld [vmem:[#allocation2 + $0x21] sm:$0xff]
      %v532 = vld [vmem:[#allocation2 + $0x29] sm:$0xff]
      %v533 = vld [vmem:[#allocation2 + $0x31] sm:$0xff]
      %v534 = vld [vmem:[#allocation2 + $0x39] sm:$0xff]
      %v535 = vld [vmem:[#allocation2 + $0x41] sm:$0xff]
      %v536 = vld [vmem:[#allocation2 + $0x49] sm:$0xff]
      %v537 = vld [vmem:[#allocation2 + $0x51] sm:$0xff]
      %v538 = vld [vmem:[#allocation2 + $0x59] sm:$0xff]
      %v539 = vld [vmem:[#allocation2 + $0x61] sm:$0xff]
      %v540 = vld [vmem:[#allocation2 + $0x69] sm:$0xff]
      %v541 = vld [vmem:[#allocation2 + $0x71] sm:$0xff]
      %v542 = vld [vmem:[#allocation2 + $0x79] sm:$0xff]
      %v543 = vld [vmem:[#allocation2 + $0x81] sm:$0xff]
      %v544 = vld [vmem:[#allocation2 + $0x89] sm:$0xff]
      %v545 = vld [vmem:[#allocation2 + $0x91] sm:$0xff]
      %v546 = vld [vmem:[#allocation2 + $0x99] sm:$0xff]
      %v547 = vld [vmem:[#allocation2 + $0xa1] sm:$0xff]
      %v548 = vld [vmem:[#allocation2 + $0xa9] sm:$0xff]
      %v549 = vld [vmem:[#allocation2 + $0xb1] sm:$0xff]
      %v550 = vld [vmem:[#allocation2 + $0xb9] sm:$0xff]
      %v551 = vld [vmem:[#allocation2 + $0xc1] sm:$0xff]
      %v552 = vld [vmem:[#allocation2 + $0xc9] sm:$0xff]
      %v553 = vld [vmem:[#allocation2 + $0xd1] sm:$0xff]
      %v554 = vld [vmem:[#allocation2 + $0xd9] sm:$0xff]
      %v555 = vld [vmem:[#allocation2 + $0xe1] sm:$0xff]
      %v556 = vld [vmem:[#allocation2 + $0xe9] sm:$0xff]
      %v557 = vld [vmem:[#allocation2 + $0xf1] sm:$0xff]
      %v558 = vld [vmem:[#allocation2 + $0xf9] sm:$0xff]
      %v559 = vld [vmem:[#allocation2 + $0x101] sm:$0xff]
      %v560 = vld [vmem:[#allocation2 + $0x109] sm:$0xff]
      %v561 = vld [vmem:[#allocation2 + $0x111] sm:$0xff]
      %v562 = vld [vmem:[#allocation2 + $0x119] sm:$0xff]
      %s563 = scalar_lea.vmem %s2, 8
      %v564 = vld [vmem:[%s563] sm:$0xff]
      %v566 = vsel %vm443, %v527, 0
      %v569 = vsel %vm443, %v528, 0
      %v572 = vsel %vm443, %v529, 0
      %v575 = vsel %vm443, %v530, 0
      %v578 = vsel %vm443, %v531, 0
      %v581 = vsel %vm443, %v532, 0
      %v584 = vsel %vm443, %v533, 0
      %v587 = vsel %vm443, %v534, 0
      %v590 = vsel %vm443, %v535, 0
      %v593 = vsel %vm443, %v536, 0
      %v596 = vsel %vm443, %v537, 0
      %v599 = vsel %vm443, %v538, 0
      %v602 = vsel %vm443, %v539, 0
      %v605 = vsel %vm443, %v540, 0
      %v608 = vsel %vm443, %v541, 0
      %v611 = vsel %vm443, %v542, 0
      %v614 = vsel %vm443, %v543, 0
      %v617 = vsel %vm443, %v544, 0
      %v620 = vsel %vm443, %v545, 0
      %v623 = vsel %vm443, %v546, 0
      %v626 = vsel %vm443, %v547, 0
      %v629 = vsel %vm443, %v548, 0
      %v632 = vsel %vm443, %v549, 0
      %v635 = vsel %vm443, %v550, 0
      %v638 = vsel %vm443, %v551, 0
      %v641 = vsel %vm443, %v552, 0
      %v644 = vsel %vm443, %v553, 0
      %v647 = vsel %vm443, %v554, 0
      %v650 = vsel %vm443, %v555, 0
      %v653 = vsel %vm443, %v556, 0
      %v656 = vsel %vm443, %v557, 0
      %v659 = vsel %vm443, %v558, 0
      %v662 = vsel %vm443, %v559, 0
      %v665 = vsel %vm443, %v560, 0
      %v668 = vsel %vm443, %v561, 0
      %v671 = vsel %vm443, %v562, 0
      %673 = vmatpush.msra.mxu0 0.0
      %674 = vmatpush.msra.mxu0 0.0
      %675 = vmatpush.msra.mxu0 0.0
      %676 = vmatpush.msra.mxu0 0.0
      %677 = vmatpush.msra.mxu0 0.0
      %678 = vmatpush.msra.mxu0 0.0
      %679 = vmatpush.msra.mxu0 0.0
      %680 = vmatpush.msra.mxu0 0.0
      %681 = vmatpush.msra.mxu0 0.0
      %682 = vmatpush.msra.mxu0 0.0
      %683 = vmatpush.msra.mxu0 0.0
      %684 = vmatpush.msra.mxu0 0.0
      %685 = vmatpush.msra.mxu0 0.0
      %686 = vmatpush.msra.mxu0 0.0
      %687 = vmatpush.msra.mxu0 0.0
      %688 = vmatpush.msra.mxu0 %v564
      %689 = vmatmul.f32.gmra.mxu0 %v566
      %v690 = vpop.f32.mrf.mxu0
      %v691 = vadd.f32 0.0, %v690
      %692 = vmatmul.f32.gmra.mxu0 %v569
      %v693 = vpop.f32.mrf.mxu0
      %v694 = vadd.f32 0.0, %v693
      %695 = vmatmul.f32.gmra.mxu0 %v572
      %v696 = vpop.f32.mrf.mxu0
      %v697 = vadd.f32 0.0, %v696
      %698 = vmatmul.f32.gmra.mxu0 %v575
      %v699 = vpop.f32.mrf.mxu0
      %v700 = vadd.f32 0.0, %v699
      %701 = vmatmul.f32.gmra.mxu0 %v578
      %v702 = vpop.f32.mrf.mxu0
      %v703 = vadd.f32 0.0, %v702
      %704 = vmatmul.f32.gmra.mxu0 %v581
      %v705 = vpop.f32.mrf.mxu0
      %v706 = vadd.f32 0.0, %v705
      %707 = vmatmul.f32.gmra.mxu0 %v584
      %v708 = vpop.f32.mrf.mxu0
      %v709 = vadd.f32 0.0, %v708
      %710 = vmatmul.f32.gmra.mxu0 %v587
      %v711 = vpop.f32.mrf.mxu0
      %v712 = vadd.f32 0.0, %v711
      %713 = vmatmul.f32.gmra.mxu0 %v590
      %v714 = vpop.f32.mrf.mxu0
      %v715 = vadd.f32 0.0, %v714
      %716 = vmatmul.f32.gmra.mxu0 %v593
      %v717 = vpop.f32.mrf.mxu0
      %v718 = vadd.f32 0.0, %v717
      %719 = vmatmul.f32.gmra.mxu0 %v596
      %v720 = vpop.f32.mrf.mxu0
      %v721 = vadd.f32 0.0, %v720
      %722 = vmatmul.f32.gmra.mxu0 %v599
      %v723 = vpop.f32.mrf.mxu0
      %v724 = vadd.f32 0.0, %v723
      %725 = vmatmul.f32.gmra.mxu0 %v602
      %v726 = vpop.f32.mrf.mxu0
      %v727 = vadd.f32 0.0, %v726
      %728 = vmatmul.f32.gmra.mxu0 %v605
      %v729 = vpop.f32.mrf.mxu0
      %v730 = vadd.f32 0.0, %v729
      %731 = vmatmul.f32.gmra.mxu0 %v608
      %v732 = vpop.f32.mrf.mxu0
      %v733 = vadd.f32 0.0, %v732
      %734 = vmatmul.f32.gmra.mxu0 %v611
      %v735 = vpop.f32.mrf.mxu0
      %v736 = vadd.f32 0.0, %v735
      %737 = vmatmul.f32.gmra.mxu0 %v614
      %v738 = vpop.f32.mrf.mxu0
      %v739 = vadd.f32 0.0, %v738
      %740 = vmatmul.f32.gmra.mxu0 %v617
      %v741 = vpop.f32.mrf.mxu0
      %v742 = vadd.f32 0.0, %v741
      %743 = vmatmul.f32.gmra.mxu0 %v620
      %v744 = vpop.f32.mrf.mxu0
      %v745 = vadd.f32 0.0, %v744
      %746 = vmatmul.f32.gmra.mxu0 %v623
      %v747 = vpop.f32.mrf.mxu0
      %v748 = vadd.f32 0.0, %v747
      %749 = vmatmul.f32.gmra.mxu0 %v626
      %v750 = vpop.f32.mrf.mxu0
      %v751 = vadd.f32 0.0, %v750
      %752 = vmatmul.f32.gmra.mxu0 %v629
      %v753 = vpop.f32.mrf.mxu0
      %v754 = vadd.f32 0.0, %v753
      %755 = vmatmul.f32.gmra.mxu0 %v632
      %v756 = vpop.f32.mrf.mxu0
      %v757 = vadd.f32 0.0, %v756
      %758 = vmatmul.f32.gmra.mxu0 %v635
      %v759 = vpop.f32.mrf.mxu0
      %v760 = vadd.f32 0.0, %v759
      %761 = vmatmul.f32.gmra.mxu0 %v638
      %v762 = vpop.f32.mrf.mxu0
      %v763 = vadd.f32 0.0, %v762
      %764 = vmatmul.f32.gmra.mxu0 %v641
      %v765 = vpop.f32.mrf.mxu0
      %v766 = vadd.f32 0.0, %v765
      %767 = vmatmul.f32.gmra.mxu0 %v644
      %v768 = vpop.f32.mrf.mxu0
      %v769 = vadd.f32 0.0, %v768
      %770 = vmatmul.f32.gmra.mxu0 %v647
      %v771 = vpop.f32.mrf.mxu0
      %v772 = vadd.f32 0.0, %v771
      %773 = vmatmul.f32.gmra.mxu0 %v650
      %v774 = vpop.f32.mrf.mxu0
      %v775 = vadd.f32 0.0, %v774
      %776 = vmatmul.f32.gmra.mxu0 %v653
      %v777 = vpop.f32.mrf.mxu0
      %v778 = vadd.f32 0.0, %v777
      %779 = vmatmul.f32.gmra.mxu0 %v656
      %v780 = vpop.f32.mrf.mxu0
      %v781 = vadd.f32 0.0, %v780
      %782 = vmatmul.f32.gmra.mxu0 %v659
      %v783 = vpop.f32.mrf.mxu0
      %v784 = vadd.f32 0.0, %v783
      %785 = vmatmul.f32.gmra.mxu0 %v662
      %v786 = vpop.f32.mrf.mxu0
      %v787 = vadd.f32 0.0, %v786
      %788 = vmatmul.f32.gmra.mxu0 %v665
      %v789 = vpop.f32.mrf.mxu0
      %v790 = vadd.f32 0.0, %v789
      %791 = vmatmul.f32.gmra.mxu0 %v668
      %v792 = vpop.f32.mrf.mxu0
      %v793 = vadd.f32 0.0, %v792
      %794 = vmatmul.f32.gmra.mxu0 %v671
      %v795 = vpop.f32.mrf.mxu0
      %v796 = vadd.f32 0.0, %v795
      %797 = vdwg.mxu0
      %v799 = vsel %vm443, %v490, 0
      %v802 = vsel %vm443, %v491, 0
      %v805 = vsel %vm443, %v492, 0
      %v808 = vsel %vm443, %v493, 0
      %v811 = vsel %vm443, %v494, 0
      %v814 = vsel %vm443, %v495, 0
      %v817 = vsel %vm443, %v496, 0
      %v820 = vsel %vm443, %v497, 0
      %v823 = vsel %vm443, %v498, 0
      %v826 = vsel %vm443, %v499, 0
      %v829 = vsel %vm443, %v500, 0
      %v832 = vsel %vm443, %v501, 0
      %v835 = vsel %vm443, %v502, 0
      %v838 = vsel %vm443, %v503, 0
      %v841 = vsel %vm443, %v504, 0
      %v844 = vsel %vm443, %v505, 0
      %v847 = vsel %vm443, %v506, 0
      %v850 = vsel %vm443, %v507, 0
      %v853 = vsel %vm443, %v508, 0
      %v856 = vsel %vm443, %v509, 0
      %v859 = vsel %vm443, %v510, 0
      %v862 = vsel %vm443, %v511, 0
      %v865 = vsel %vm443, %v512, 0
      %v868 = vsel %vm443, %v513, 0
      %v871 = vsel %vm443, %v514, 0
      %v874 = vsel %vm443, %v515, 0
      %v877 = vsel %vm443, %v516, 0
      %v880 = vsel %vm443, %v517, 0
      %v883 = vsel %vm443, %v518, 0
      %v886 = vsel %vm443, %v519, 0
      %v889 = vsel %vm443, %v520, 0
      %v892 = vsel %vm443, %v521, 0
      %v895 = vsel %vm443, %v522, 0
      %v898 = vsel %vm443, %v523, 0
      %v901 = vsel %vm443, %v524, 0
      %v904 = vsel %vm443, %v525, 0
      %906 = vmatpush.msra.mxu0 0.0
      %907 = vmatpush.msra.mxu0 0.0
      %908 = vmatpush.msra.mxu0 0.0
      %909 = vmatpush.msra.mxu0 0.0
      %910 = vmatpush.msra.mxu0 0.0
      %911 = vmatpush.msra.mxu0 0.0
      %912 = vmatpush.msra.mxu0 0.0
      %913 = vmatpush.msra.mxu0 0.0
      %914 = vmatpush.msra.mxu0 0.0
      %915 = vmatpush.msra.mxu0 0.0
      %916 = vmatpush.msra.mxu0 0.0
      %917 = vmatpush.msra.mxu0 0.0
      %918 = vmatpush.msra.mxu0 0.0
      %919 = vmatpush.msra.mxu0 0.0
      %920 = vmatpush.msra.mxu0 0.0
      %921 = vmatpush.msra.mxu0 %v526
      %922 = vmatmul.f32.gmra.mxu0 %v799
      %v923 = vpop.f32.mrf.mxu0
      %v924 = vadd.f32 %v691, %v923
      %925 = vmatmul.f32.gmra.mxu0 %v802
      %v926 = vpop.f32.mrf.mxu0
      %v927 = vadd.f32 %v694, %v926
      %928 = vmatmul.f32.gmra.mxu0 %v805
      %v929 = vpop.f32.mrf.mxu0
      %v930 = vadd.f32 %v697, %v929
      %931 = vmatmul.f32.gmra.mxu0 %v808
      %v932 = vpop.f32.mrf.mxu0
      %v933 = vadd.f32 %v700, %v932
      %934 = vmatmul.f32.gmra.mxu0 %v811
      %v935 = vpop.f32.mrf.mxu0
      %v936 = vadd.f32 %v703, %v935
      %937 = vmatmul.f32.gmra.mxu0 %v814
      %v938 = vpop.f32.mrf.mxu0
      %v939 = vadd.f32 %v706, %v938
      %940 = vmatmul.f32.gmra.mxu0 %v817
      %v941 = vpop.f32.mrf.mxu0
      %v942 = vadd.f32 %v709, %v941
      %943 = vmatmul.f32.gmra.mxu0 %v820
      %v944 = vpop.f32.mrf.mxu0
      %v945 = vadd.f32 %v712, %v944
      %946 = vmatmul.f32.gmra.mxu0 %v823
      %v947 = vpop.f32.mrf.mxu0
      %v948 = vadd.f32 %v715, %v947
      %949 = vmatmul.f32.gmra.mxu0 %v826
      %v950 = vpop.f32.mrf.mxu0
      %v951 = vadd.f32 %v718, %v950
      %952 = vmatmul.f32.gmra.mxu0 %v829
      %v953 = vpop.f32.mrf.mxu0
      %v954 = vadd.f32 %v721, %v953
      %955 = vmatmul.f32.gmra.mxu0 %v832
      %v956 = vpop.f32.mrf.mxu0
      %v957 = vadd.f32 %v724, %v956
      %958 = vmatmul.f32.gmra.mxu0 %v835
      %v959 = vpop.f32.mrf.mxu0
      %v960 = vadd.f32 %v727, %v959
      %961 = vmatmul.f32.gmra.mxu0 %v838
      %v962 = vpop.f32.mrf.mxu0
      %v963 = vadd.f32 %v730, %v962
      %964 = vmatmul.f32.gmra.mxu0 %v841
      %v965 = vpop.f32.mrf.mxu0
      %v966 = vadd.f32 %v733, %v965
      %967 = vmatmul.f32.gmra.mxu0 %v844
      %v968 = vpop.f32.mrf.mxu0
      %v969 = vadd.f32 %v736, %v968
      %970 = vmatmul.f32.gmra.mxu0 %v847
      %v971 = vpop.f32.mrf.mxu0
      %v972 = vadd.f32 %v739, %v971
      %973 = vmatmul.f32.gmra.mxu0 %v850
      %v974 = vpop.f32.mrf.mxu0
      %v975 = vadd.f32 %v742, %v974
      %976 = vmatmul.f32.gmra.mxu0 %v853
      %v977 = vpop.f32.mrf.mxu0
      %v978 = vadd.f32 %v745, %v977
      %979 = vmatmul.f32.gmra.mxu0 %v856
      %v980 = vpop.f32.mrf.mxu0
      %v981 = vadd.f32 %v748, %v980
      %982 = vmatmul.f32.gmra.mxu0 %v859
      %v983 = vpop.f32.mrf.mxu0
      %v984 = vadd.f32 %v751, %v983
      %985 = vmatmul.f32.gmra.mxu0 %v862
      %v986 = vpop.f32.mrf.mxu0
      %v987 = vadd.f32 %v754, %v986
      %988 = vmatmul.f32.gmra.mxu0 %v865
      %v989 = vpop.f32.mrf.mxu0
      %v990 = vadd.f32 %v757, %v989
      %991 = vmatmul.f32.gmra.mxu0 %v868
      %v992 = vpop.f32.mrf.mxu0
      %v993 = vadd.f32 %v760, %v992
      %994 = vmatmul.f32.gmra.mxu0 %v871
      %v995 = vpop.f32.mrf.mxu0
      %v996 = vadd.f32 %v763, %v995
      %997 = vmatmul.f32.gmra.mxu0 %v874
      %v998 = vpop.f32.mrf.mxu0
      %v999 = vadd.f32 %v766, %v998
      %1000 = vmatmul.f32.gmra.mxu0 %v877
      %v1001 = vpop.f32.mrf.mxu0
      %v1002 = vadd.f32 %v769, %v1001
      %1003 = vmatmul.f32.gmra.mxu0 %v880
      %v1004 = vpop.f32.mrf.mxu0
      %v1005 = vadd.f32 %v772, %v1004
      %1006 = vmatmul.f32.gmra.mxu0 %v883
      %v1007 = vpop.f32.mrf.mxu0
      %v1008 = vadd.f32 %v775, %v1007
      %1009 = vmatmul.f32.gmra.mxu0 %v886
      %v1010 = vpop.f32.mrf.mxu0
      %v1011 = vadd.f32 %v778, %v1010
      %1012 = vmatmul.f32.gmra.mxu0 %v889
      %v1013 = vpop.f32.mrf.mxu0
      %v1014 = vadd.f32 %v781, %v1013
      %1015 = vmatmul.f32.gmra.mxu0 %v892
      %v1016 = vpop.f32.mrf.mxu0
      %v1017 = vadd.f32 %v784, %v1016
      %1018 = vmatmul.f32.gmra.mxu0 %v895
      %v1019 = vpop.f32.mrf.mxu0
      %v1020 = vadd.f32 %v787, %v1019
      %1021 = vmatmul.f32.gmra.mxu0 %v898
      %v1022 = vpop.f32.mrf.mxu0
      %v1023 = vadd.f32 %v790, %v1022
      %1024 = vmatmul.f32.gmra.mxu0 %v901
      %v1025 = vpop.f32.mrf.mxu0
      %v1026 = vadd.f32 %v793, %v1025
      %1027 = vmatmul.f32.gmra.mxu0 %v904
      %v1028 = vpop.f32.mrf.mxu0
      %v1029 = vadd.f32 %v796, %v1028
      %1030 = vdwg.mxu0
      %v1031 = vld [vmem:[#allocation2 + $0x2] sm:$0xff]
      %v1032 = vld [vmem:[#allocation2 + $0xa] sm:$0xff]
      %v1033 = vld [vmem:[#allocation2 + $0x12] sm:$0xff]
      %v1034 = vld [vmem:[#allocation2 + $0x1a] sm:$0xff]
      %v1035 = vld [vmem:[#allocation2 + $0x22] sm:$0xff]
      %v1036 = vld [vmem:[#allocation2 + $0x2a] sm:$0xff]
      %v1037 = vld [vmem:[#allocation2 + $0x32] sm:$0xff]
      %v1038 = vld [vmem:[#allocation2 + $0x3a] sm:$0xff]
      %v1039 = vld [vmem:[#allocation2 + $0x42] sm:$0xff]
      %v1040 = vld [vmem:[#allocation2 + $0x4a] sm:$0xff]
      %v1041 = vld [vmem:[#allocation2 + $0x52] sm:$0xff]
      %v1042 = vld [vmem:[#allocation2 + $0x5a] sm:$0xff]
      %v1043 = vld [vmem:[#allocation2 + $0x62] sm:$0xff]
      %v1044 = vld [vmem:[#allocation2 + $0x6a] sm:$0xff]
      %v1045 = vld [vmem:[#allocation2 + $0x72] sm:$0xff]
      %v1046 = vld [vmem:[#allocation2 + $0x7a] sm:$0xff]
      %v1047 = vld [vmem:[#allocation2 + $0x82] sm:$0xff]
      %v1048 = vld [vmem:[#allocation2 + $0x8a] sm:$0xff]
      %v1049 = vld [vmem:[#allocation2 + $0x92] sm:$0xff]
      %v1050 = vld [vmem:[#allocation2 + $0x9a] sm:$0xff]
      %v1051 = vld [vmem:[#allocation2 + $0xa2] sm:$0xff]
      %v1052 = vld [vmem:[#allocation2 + $0xaa] sm:$0xff]
      %v1053 = vld [vmem:[#allocation2 + $0xb2] sm:$0xff]
      %v1054 = vld [vmem:[#allocation2 + $0xba] sm:$0xff]
      %v1055 = vld [vmem:[#allocation2 + $0xc2] sm:$0xff]
      %v1056 = vld [vmem:[#allocation2 + $0xca] sm:$0xff]
      %v1057 = vld [vmem:[#allocation2 + $0xd2] sm:$0xff]
      %v1058 = vld [vmem:[#allocation2 + $0xda] sm:$0xff]
      %v1059 = vld [vmem:[#allocation2 + $0xe2] sm:$0xff]
      %v1060 = vld [vmem:[#allocation2 + $0xea] sm:$0xff]
      %v1061 = vld [vmem:[#allocation2 + $0xf2] sm:$0xff]
      %v1062 = vld [vmem:[#allocation2 + $0xfa] sm:$0xff]
      %v1063 = vld [vmem:[#allocation2 + $0x102] sm:$0xff]
      %v1064 = vld [vmem:[#allocation2 + $0x10a] sm:$0xff]
      %v1065 = vld [vmem:[#allocation2 + $0x112] sm:$0xff]
      %v1066 = vld [vmem:[#allocation2 + $0x11a] sm:$0xff]
      %s1067 = scalar_lea.vmem %s2, 16
      %v1068 = vld [vmem:[%s1067] sm:$0xff]
      %v1070 = vsel %vm443, %v1031, 0
      %v1073 = vsel %vm443, %v1032, 0
      %v1076 = vsel %vm443, %v1033, 0
      %v1079 = vsel %vm443, %v1034, 0
      %v1082 = vsel %vm443, %v1035, 0
      %v1085 = vsel %vm443, %v1036, 0
      %v1088 = vsel %vm443, %v1037, 0
      %v1091 = vsel %vm443, %v1038, 0
      %v1094 = vsel %vm443, %v1039, 0
      %v1097 = vsel %vm443, %v1040, 0
      %v1100 = vsel %vm443, %v1041, 0
      %v1103 = vsel %vm443, %v1042, 0
      %v1106 = vsel %vm443, %v1043, 0
      %v1109 = vsel %vm443, %v1044, 0
      %v1112 = vsel %vm443, %v1045, 0
      %v1115 = vsel %vm443, %v1046, 0
      %v1118 = vsel %vm443, %v1047, 0
      %v1121 = vsel %vm443, %v1048, 0
      %v1124 = vsel %vm443, %v1049, 0
      %v1127 = vsel %vm443, %v1050, 0
      %v1130 = vsel %vm443, %v1051, 0
      %v1133 = vsel %vm443, %v1052, 0
      %v1136 = vsel %vm443, %v1053, 0
      %v1139 = vsel %vm443, %v1054, 0
      %v1142 = vsel %vm443, %v1055, 0
      %v1145 = vsel %vm443, %v1056, 0
      %v1148 = vsel %vm443, %v1057, 0
      %v1151 = vsel %vm443, %v1058, 0
      %v1154 = vsel %vm443, %v1059, 0
      %v1157 = vsel %vm443, %v1060, 0
      %v1160 = vsel %vm443, %v1061, 0
      %v1163 = vsel %vm443, %v1062, 0
      %v1166 = vsel %vm443, %v1063, 0
      %v1169 = vsel %vm443, %v1064, 0
      %v1172 = vsel %vm443, %v1065, 0
      %v1175 = vsel %vm443, %v1066, 0
      %1177 = vmatpush.msra.mxu0 0.0
      %1178 = vmatpush.msra.mxu0 0.0
      %1179 = vmatpush.msra.mxu0 0.0
      %1180 = vmatpush.msra.mxu0 0.0
      %1181 = vmatpush.msra.mxu0 0.0
      %1182 = vmatpush.msra.mxu0 0.0
      %1183 = vmatpush.msra.mxu0 0.0
      %1184 = vmatpush.msra.mxu0 0.0
      %1185 = vmatpush.msra.mxu0 0.0
      %1186 = vmatpush.msra.mxu0 0.0
      %1187 = vmatpush.msra.mxu0 0.0
      %1188 = vmatpush.msra.mxu0 0.0
      %1189 = vmatpush.msra.mxu0 0.0
      %1190 = vmatpush.msra.mxu0 0.0
      %1191 = vmatpush.msra.mxu0 0.0
      %1192 = vmatpush.msra.mxu0 %v1068
      %1193 = vmatmul.f32.gmra.mxu0 %v1070
      %v1194 = vpop.f32.mrf.mxu0
      %v1195 = vadd.f32 0.0, %v1194
      %1196 = vmatmul.f32.gmra.mxu0 %v1073
      %v1197 = vpop.f32.mrf.mxu0
      %v1198 = vadd.f32 0.0, %v1197
      %1199 = vmatmul.f32.gmra.mxu0 %v1076
      %v1200 = vpop.f32.mrf.mxu0
      %v1201 = vadd.f32 0.0, %v1200
      %1202 = vmatmul.f32.gmra.mxu0 %v1079
      %v1203 = vpop.f32.mrf.mxu0
      %v1204 = vadd.f32 0.0, %v1203
      %1205 = vmatmul.f32.gmra.mxu0 %v1082
      %v1206 = vpop.f32.mrf.mxu0
      %v1207 = vadd.f32 0.0, %v1206
      %1208 = vmatmul.f32.gmra.mxu0 %v1085
      %v1209 = vpop.f32.mrf.mxu0
      %v1210 = vadd.f32 0.0, %v1209
      %1211 = vmatmul.f32.gmra.mxu0 %v1088
      %v1212 = vpop.f32.mrf.mxu0
      %v1213 = vadd.f32 0.0, %v1212
      %1214 = vmatmul.f32.gmra.mxu0 %v1091
      %v1215 = vpop.f32.mrf.mxu0
      %v1216 = vadd.f32 0.0, %v1215
      %1217 = vmatmul.f32.gmra.mxu0 %v1094
      %v1218 = vpop.f32.mrf.mxu0
      %v1219 = vadd.f32 0.0, %v1218
      %1220 = vmatmul.f32.gmra.mxu0 %v1097
      %v1221 = vpop.f32.mrf.mxu0
      %v1222 = vadd.f32 0.0, %v1221
      %1223 = vmatmul.f32.gmra.mxu0 %v1100
      %v1224 = vpop.f32.mrf.mxu0
      %v1225 = vadd.f32 0.0, %v1224
      %1226 = vmatmul.f32.gmra.mxu0 %v1103
      %v1227 = vpop.f32.mrf.mxu0
      %v1228 = vadd.f32 0.0, %v1227
      %1229 = vmatmul.f32.gmra.mxu0 %v1106
      %v1230 = vpop.f32.mrf.mxu0
      %v1231 = vadd.f32 0.0, %v1230
      %1232 = vmatmul.f32.gmra.mxu0 %v1109
      %v1233 = vpop.f32.mrf.mxu0
      %v1234 = vadd.f32 0.0, %v1233
      %1235 = vmatmul.f32.gmra.mxu0 %v1112
      %v1236 = vpop.f32.mrf.mxu0
      %v1237 = vadd.f32 0.0, %v1236
      %1238 = vmatmul.f32.gmra.mxu0 %v1115
      %v1239 = vpop.f32.mrf.mxu0
      %v1240 = vadd.f32 0.0, %v1239
      %1241 = vmatmul.f32.gmra.mxu0 %v1118
      %v1242 = vpop.f32.mrf.mxu0
      %v1243 = vadd.f32 0.0, %v1242
      %1244 = vmatmul.f32.gmra.mxu0 %v1121
      %v1245 = vpop.f32.mrf.mxu0
      %v1246 = vadd.f32 0.0, %v1245
      %1247 = vmatmul.f32.gmra.mxu0 %v1124
      %v1248 = vpop.f32.mrf.mxu0
      %v1249 = vadd.f32 0.0, %v1248
      %1250 = vmatmul.f32.gmra.mxu0 %v1127
      %v1251 = vpop.f32.mrf.mxu0
      %v1252 = vadd.f32 0.0, %v1251
      %1253 = vmatmul.f32.gmra.mxu0 %v1130
      %v1254 = vpop.f32.mrf.mxu0
      %v1255 = vadd.f32 0.0, %v1254
      %1256 = vmatmul.f32.gmra.mxu0 %v1133
      %v1257 = vpop.f32.mrf.mxu0
      %v1258 = vadd.f32 0.0, %v1257
      %1259 = vmatmul.f32.gmra.mxu0 %v1136
      %v1260 = vpop.f32.mrf.mxu0
      %v1261 = vadd.f32 0.0, %v1260
      %1262 = vmatmul.f32.gmra.mxu0 %v1139
      %v1263 = vpop.f32.mrf.mxu0
      %v1264 = vadd.f32 0.0, %v1263
      %1265 = vmatmul.f32.gmra.mxu0 %v1142
      %v1266 = vpop.f32.mrf.mxu0
      %v1267 = vadd.f32 0.0, %v1266
      %1268 = vmatmul.f32.gmra.mxu0 %v1145
      %v1269 = vpop.f32.mrf.mxu0
      %v1270 = vadd.f32 0.0, %v1269
      %1271 = vmatmul.f32.gmra.mxu0 %v1148
      %v1272 = vpop.f32.mrf.mxu0
      %v1273 = vadd.f32 0.0, %v1272
      %1274 = vmatmul.f32.gmra.mxu0 %v1151
      %v1275 = vpop.f32.mrf.mxu0
      %v1276 = vadd.f32 0.0, %v1275
      %1277 = vmatmul.f32.gmra.mxu0 %v1154
      %v1278 = vpop.f32.mrf.mxu0
      %v1279 = vadd.f32 0.0, %v1278
      %1280 = vmatmul.f32.gmra.mxu0 %v1157
      %v1281 = vpop.f32.mrf.mxu0
      %v1282 = vadd.f32 0.0, %v1281
      %1283 = vmatmul.f32.gmra.mxu0 %v1160
      %v1284 = vpop.f32.mrf.mxu0
      %v1285 = vadd.f32 0.0, %v1284
      %1286 = vmatmul.f32.gmra.mxu0 %v1163
      %v1287 = vpop.f32.mrf.mxu0
      %v1288 = vadd.f32 0.0, %v1287
      %1289 = vmatmul.f32.gmra.mxu0 %v1166
      %v1290 = vpop.f32.mrf.mxu0
      %v1291 = vadd.f32 0.0, %v1290
      %1292 = vmatmul.f32.gmra.mxu0 %v1169
      %v1293 = vpop.f32.mrf.mxu0
      %v1294 = vadd.f32 0.0, %v1293
      %1295 = vmatmul.f32.gmra.mxu0 %v1172
      %v1296 = vpop.f32.mrf.mxu0
      %v1297 = vadd.f32 0.0, %v1296
      %1298 = vmatmul.f32.gmra.mxu0 %v1175
      %v1299 = vpop.f32.mrf.mxu0
      %v1300 = vadd.f32 0.0, %v1299
      %1301 = vdwg.mxu0
      %v1302 = vadd.f32 %v924, %v1195
      %v1303 = vadd.f32 %v927, %v1198
      %v1304 = vadd.f32 %v930, %v1201
      %v1305 = vadd.f32 %v933, %v1204
      %v1306 = vadd.f32 %v936, %v1207
      %v1307 = vadd.f32 %v939, %v1210
      %v1308 = vadd.f32 %v942, %v1213
      %v1309 = vadd.f32 %v945, %v1216
      %v1310 = vadd.f32 %v948, %v1219
      %v1311 = vadd.f32 %v951, %v1222
      %v1312 = vadd.f32 %v954, %v1225
      %v1313 = vadd.f32 %v957, %v1228
      %v1314 = vadd.f32 %v960, %v1231
      %v1315 = vadd.f32 %v963, %v1234
      %v1316 = vadd.f32 %v966, %v1237
      %v1317 = vadd.f32 %v969, %v1240
      %v1318 = vadd.f32 %v972, %v1243
      %v1319 = vadd.f32 %v975, %v1246
      %v1320 = vadd.f32 %v978, %v1249
      %v1321 = vadd.f32 %v981, %v1252
      %v1322 = vadd.f32 %v984, %v1255
      %v1323 = vadd.f32 %v987, %v1258
      %v1324 = vadd.f32 %v990, %v1261
      %v1325 = vadd.f32 %v993, %v1264
      %v1326 = vadd.f32 %v996, %v1267
      %v1327 = vadd.f32 %v999, %v1270
      %v1328 = vadd.f32 %v1002, %v1273
      %v1329 = vadd.f32 %v1005, %v1276
      %v1330 = vadd.f32 %v1008, %v1279
      %v1331 = vadd.f32 %v1011, %v1282
      %v1332 = vadd.f32 %v1014, %v1285
      %v1333 = vadd.f32 %v1017, %v1288
      %v1334 = vadd.f32 %v1020, %v1291
      %v1335 = vadd.f32 %v1023, %v1294
      %v1336 = vadd.f32 %v1026, %v1297
      %v1337 = vadd.f32 %v1029, %v1300
      %v1338 = vld [vmem:[#allocation2 + $0x12] sm:$0xff]
      %v1339 = vld [vmem:[#allocation2 + $0x1a] sm:$0xff]
      %v1340 = vld [vmem:[#allocation2 + $0x22] sm:$0xff]
      %v1341 = vld [vmem:[#allocation2 + $0x2a] sm:$0xff]
      %v1342 = vld [vmem:[#allocation2 + $0x32] sm:$0xff]
      %v1343 = vld [vmem:[#allocation2 + $0x3a] sm:$0xff]
      %v1344 = vld [vmem:[#allocation2 + $0x42] sm:$0xff]
      %v1345 = vld [vmem:[#allocation2 + $0x4a] sm:$0xff]
      %v1346 = vld [vmem:[#allocation2 + $0x52] sm:$0xff]
      %v1347 = vld [vmem:[#allocation2 + $0x5a] sm:$0xff]
      %v1348 = vld [vmem:[#allocation2 + $0x62] sm:$0xff]
      %v1349 = vld [vmem:[#allocation2 + $0x6a] sm:$0xff]
      %v1350 = vld [vmem:[#allocation2 + $0x72] sm:$0xff]
      %v1351 = vld [vmem:[#allocation2 + $0x7a] sm:$0xff]
      %v1352 = vld [vmem:[#allocation2 + $0x82] sm:$0xff]
      %v1353 = vld [vmem:[#allocation2 + $0x8a] sm:$0xff]
      %v1354 = vld [vmem:[#allocation2 + $0x92] sm:$0xff]
      %v1355 = vld [vmem:[#allocation2 + $0x9a] sm:$0xff]
      %v1356 = vld [vmem:[#allocation2 + $0xa2] sm:$0xff]
      %v1357 = vld [vmem:[#allocation2 + $0xaa] sm:$0xff]
      %v1358 = vld [vmem:[#allocation2 + $0xb2] sm:$0xff]
      %v1359 = vld [vmem:[#allocation2 + $0xba] sm:$0xff]
      %v1360 = vld [vmem:[#allocation2 + $0xc2] sm:$0xff]
      %v1361 = vld [vmem:[#allocation2 + $0xca] sm:$0xff]
      %v1362 = vld [vmem:[#allocation2 + $0xd2] sm:$0xff]
      %v1363 = vld [vmem:[#allocation2 + $0xda] sm:$0xff]
      %v1364 = vld [vmem:[#allocation2 + $0xe2] sm:$0xff]
      %v1365 = vld [vmem:[#allocation2 + $0xea] sm:$0xff]
      %v1366 = vld [vmem:[#allocation2 + $0xf2] sm:$0xff]
      %v1367 = vld [vmem:[#allocation2 + $0xfa] sm:$0xff]
      %v1368 = vld [vmem:[#allocation2 + $0x102] sm:$0xff]
      %v1369 = vld [vmem:[#allocation2 + $0x10a] sm:$0xff]
      %v1370 = vld [vmem:[#allocation2 + $0x112] sm:$0xff]
      %v1371 = vld [vmem:[#allocation2 + $0x11a] sm:$0xff]
      %v1372 = vld [vmem:[#allocation2 + $0x122] sm:$0xff]
      %v1373 = vld [vmem:[#allocation2 + $0x12a] sm:$0xff]
      %s1374 = scalar_lea.vmem %s2, 24
      %v1375 = vld [vmem:[%s1374] sm:$0xff]
      %v1377 = vsel %vm443, %v1338, 0
      %v1380 = vsel %vm443, %v1339, 0
      %v1383 = vsel %vm443, %v1340, 0
      %v1386 = vsel %vm443, %v1341, 0
      %v1389 = vsel %vm443, %v1342, 0
      %v1392 = vsel %vm443, %v1343, 0
      %v1395 = vsel %vm443, %v1344, 0
      %v1398 = vsel %vm443, %v1345, 0
      %v1401 = vsel %vm443, %v1346, 0
      %v1404 = vsel %vm443, %v1347, 0
      %v1407 = vsel %vm443, %v1348, 0
      %v1410 = vsel %vm443, %v1349, 0
      %v1413 = vsel %vm443, %v1350, 0
      %v1416 = vsel %vm443, %v1351, 0
      %v1419 = vsel %vm443, %v1352, 0
      %v1422 = vsel %vm443, %v1353, 0
      %v1425 = vsel %vm443, %v1354, 0
      %v1428 = vsel %vm443, %v1355, 0
      %v1431 = vsel %vm443, %v1356, 0
      %v1434 = vsel %vm443, %v1357, 0
      %v1437 = vsel %vm443, %v1358, 0
      %v1440 = vsel %vm443, %v1359, 0
      %v1443 = vsel %vm443, %v1360, 0
      %v1446 = vsel %vm443, %v1361, 0
      %v1449 = vsel %vm443, %v1362, 0
      %v1452 = vsel %vm443, %v1363, 0
      %v1455 = vsel %vm443, %v1364, 0
      %v1458 = vsel %vm443, %v1365, 0
      %v1461 = vsel %vm443, %v1366, 0
      %v1464 = vsel %vm443, %v1367, 0
      %v1467 = vsel %vm443, %v1368, 0
      %v1470 = vsel %vm443, %v1369, 0
      %v1473 = vsel %vm443, %v1370, 0
      %v1476 = vsel %vm443, %v1371, 0
      %v1479 = vsel %vm443, %v1372, 0
      %v1482 = vsel %vm443, %v1373, 0
      %1484 = vmatpush.msra.mxu0 0.0
      %1485 = vmatpush.msra.mxu0 0.0
      %1486 = vmatpush.msra.mxu0 0.0
      %1487 = vmatpush.msra.mxu0 0.0
      %1488 = vmatpush.msra.mxu0 0.0
      %1489 = vmatpush.msra.mxu0 0.0
      %1490 = vmatpush.msra.mxu0 0.0
      %1491 = vmatpush.msra.mxu0 0.0
      %1492 = vmatpush.msra.mxu0 0.0
      %1493 = vmatpush.msra.mxu0 0.0
      %1494 = vmatpush.msra.mxu0 0.0
      %1495 = vmatpush.msra.mxu0 0.0
      %1496 = vmatpush.msra.mxu0 0.0
      %1497 = vmatpush.msra.mxu0 0.0
      %1498 = vmatpush.msra.mxu0 0.0
      %1499 = vmatpush.msra.mxu0 %v1375
      %1500 = vmatmul.f32.gmra.mxu0 %v1377
      %v1501 = vpop.f32.mrf.mxu0
      %v1502 = vadd.f32 0.0, %v1501
      %1503 = vmatmul.f32.gmra.mxu0 %v1380
      %v1504 = vpop.f32.mrf.mxu0
      %v1505 = vadd.f32 0.0, %v1504
      %1506 = vmatmul.f32.gmra.mxu0 %v1383
      %v1507 = vpop.f32.mrf.mxu0
      %v1508 = vadd.f32 0.0, %v1507
      %1509 = vmatmul.f32.gmra.mxu0 %v1386
      %v1510 = vpop.f32.mrf.mxu0
      %v1511 = vadd.f32 0.0, %v1510
      %1512 = vmatmul.f32.gmra.mxu0 %v1389
      %v1513 = vpop.f32.mrf.mxu0
      %v1514 = vadd.f32 0.0, %v1513
      %1515 = vmatmul.f32.gmra.mxu0 %v1392
      %v1516 = vpop.f32.mrf.mxu0
      %v1517 = vadd.f32 0.0, %v1516
      %1518 = vmatmul.f32.gmra.mxu0 %v1395
      %v1519 = vpop.f32.mrf.mxu0
      %v1520 = vadd.f32 0.0, %v1519
      %1521 = vmatmul.f32.gmra.mxu0 %v1398
      %v1522 = vpop.f32.mrf.mxu0
      %v1523 = vadd.f32 0.0, %v1522
      %1524 = vmatmul.f32.gmra.mxu0 %v1401
      %v1525 = vpop.f32.mrf.mxu0
      %v1526 = vadd.f32 0.0, %v1525
      %1527 = vmatmul.f32.gmra.mxu0 %v1404
      %v1528 = vpop.f32.mrf.mxu0
      %v1529 = vadd.f32 0.0, %v1528
      %1530 = vmatmul.f32.gmra.mxu0 %v1407
      %v1531 = vpop.f32.mrf.mxu0
      %v1532 = vadd.f32 0.0, %v1531
      %1533 = vmatmul.f32.gmra.mxu0 %v1410
      %v1534 = vpop.f32.mrf.mxu0
      %v1535 = vadd.f32 0.0, %v1534
      %1536 = vmatmul.f32.gmra.mxu0 %v1413
      %v1537 = vpop.f32.mrf.mxu0
      %v1538 = vadd.f32 0.0, %v1537
      %1539 = vmatmul.f32.gmra.mxu0 %v1416
      %v1540 = vpop.f32.mrf.mxu0
      %v1541 = vadd.f32 0.0, %v1540
      %1542 = vmatmul.f32.gmra.mxu0 %v1419
      %v1543 = vpop.f32.mrf.mxu0
      %v1544 = vadd.f32 0.0, %v1543
      %1545 = vmatmul.f32.gmra.mxu0 %v1422
      %v1546 = vpop.f32.mrf.mxu0
      %v1547 = vadd.f32 0.0, %v1546
      %1548 = vmatmul.f32.gmra.mxu0 %v1425
      %v1549 = vpop.f32.mrf.mxu0
      %v1550 = vadd.f32 0.0, %v1549
      %1551 = vmatmul.f32.gmra.mxu0 %v1428
      %v1552 = vpop.f32.mrf.mxu0
      %v1553 = vadd.f32 0.0, %v1552
      %1554 = vmatmul.f32.gmra.mxu0 %v1431
      %v1555 = vpop.f32.mrf.mxu0
      %v1556 = vadd.f32 0.0, %v1555
      %1557 = vmatmul.f32.gmra.mxu0 %v1434
      %v1558 = vpop.f32.mrf.mxu0
      %v1559 = vadd.f32 0.0, %v1558
      %1560 = vmatmul.f32.gmra.mxu0 %v1437
      %v1561 = vpop.f32.mrf.mxu0
      %v1562 = vadd.f32 0.0, %v1561
      %1563 = vmatmul.f32.gmra.mxu0 %v1440
      %v1564 = vpop.f32.mrf.mxu0
      %v1565 = vadd.f32 0.0, %v1564
      %1566 = vmatmul.f32.gmra.mxu0 %v1443
      %v1567 = vpop.f32.mrf.mxu0
      %v1568 = vadd.f32 0.0, %v1567
      %1569 = vmatmul.f32.gmra.mxu0 %v1446
      %v1570 = vpop.f32.mrf.mxu0
      %v1571 = vadd.f32 0.0, %v1570
      %1572 = vmatmul.f32.gmra.mxu0 %v1449
      %v1573 = vpop.f32.mrf.mxu0
      %v1574 = vadd.f32 0.0, %v1573
      %1575 = vmatmul.f32.gmra.mxu0 %v1452
      %v1576 = vpop.f32.mrf.mxu0
      %v1577 = vadd.f32 0.0, %v1576
      %1578 = vmatmul.f32.gmra.mxu0 %v1455
      %v1579 = vpop.f32.mrf.mxu0
      %v1580 = vadd.f32 0.0, %v1579
      %1581 = vmatmul.f32.gmra.mxu0 %v1458
      %v1582 = vpop.f32.mrf.mxu0
      %v1583 = vadd.f32 0.0, %v1582
      %1584 = vmatmul.f32.gmra.mxu0 %v1461
      %v1585 = vpop.f32.mrf.mxu0
      %v1586 = vadd.f32 0.0, %v1585
      %1587 = vmatmul.f32.gmra.mxu0 %v1464
      %v1588 = vpop.f32.mrf.mxu0
      %v1589 = vadd.f32 0.0, %v1588
      %1590 = vmatmul.f32.gmra.mxu0 %v1467
      %v1591 = vpop.f32.mrf.mxu0
      %v1592 = vadd.f32 0.0, %v1591
      %1593 = vmatmul.f32.gmra.mxu0 %v1470
      %v1594 = vpop.f32.mrf.mxu0
      %v1595 = vadd.f32 0.0, %v1594
      %1596 = vmatmul.f32.gmra.mxu0 %v1473
      %v1597 = vpop.f32.mrf.mxu0
      %v1598 = vadd.f32 0.0, %v1597
      %1599 = vmatmul.f32.gmra.mxu0 %v1476
      %v1600 = vpop.f32.mrf.mxu0
      %v1601 = vadd.f32 0.0, %v1600
      %1602 = vmatmul.f32.gmra.mxu0 %v1479
      %v1603 = vpop.f32.mrf.mxu0
      %v1604 = vadd.f32 0.0, %v1603
      %1605 = vmatmul.f32.gmra.mxu0 %v1482
      %v1606 = vpop.f32.mrf.mxu0
      %v1607 = vadd.f32 0.0, %v1606
      %1608 = vdwg.mxu0
      %v1609 = vadd.f32 %v1302, %v1502
      %v1610 = vadd.f32 %v1303, %v1505
      %v1611 = vadd.f32 %v1304, %v1508
      %v1612 = vadd.f32 %v1305, %v1511
      %v1613 = vadd.f32 %v1306, %v1514
      %v1614 = vadd.f32 %v1307, %v1517
      %v1615 = vadd.f32 %v1308, %v1520
      %v1616 = vadd.f32 %v1309, %v1523
      %v1617 = vadd.f32 %v1310, %v1526
      %v1618 = vadd.f32 %v1311, %v1529
      %v1619 = vadd.f32 %v1312, %v1532
      %v1620 = vadd.f32 %v1313, %v1535
      %v1621 = vadd.f32 %v1314, %v1538
      %v1622 = vadd.f32 %v1315, %v1541
      %v1623 = vadd.f32 %v1316, %v1544
      %v1624 = vadd.f32 %v1317, %v1547
      %v1625 = vadd.f32 %v1318, %v1550
      %v1626 = vadd.f32 %v1319, %v1553
      %v1627 = vadd.f32 %v1320, %v1556
      %v1628 = vadd.f32 %v1321, %v1559
      %v1629 = vadd.f32 %v1322, %v1562
      %v1630 = vadd.f32 %v1323, %v1565
      %v1631 = vadd.f32 %v1324, %v1568
      %v1632 = vadd.f32 %v1325, %v1571
      %v1633 = vadd.f32 %v1326, %v1574
      %v1634 = vadd.f32 %v1327, %v1577
      %v1635 = vadd.f32 %v1328, %v1580
      %v1636 = vadd.f32 %v1329, %v1583
      %v1637 = vadd.f32 %v1330, %v1586
      %v1638 = vadd.f32 %v1331, %v1589
      %v1639 = vadd.f32 %v1332, %v1592
      %v1640 = vadd.f32 %v1333, %v1595
      %v1641 = vadd.f32 %v1334, %v1598
      %v1642 = vadd.f32 %v1335, %v1601
      %v1643 = vadd.f32 %v1336, %v1604
      %v1644 = vadd.f32 %v1337, %v1607
      %v1645 = vld [vmem:[#allocation2 + $0x13] sm:$0xff]
      %v1646 = vld [vmem:[#allocation2 + $0x1b] sm:$0xff]
      %v1647 = vld [vmem:[#allocation2 + $0x23] sm:$0xff]
      %v1648 = vld [vmem:[#allocation2 + $0x2b] sm:$0xff]
      %v1649 = vld [vmem:[#allocation2 + $0x33] sm:$0xff]
      %v1650 = vld [vmem:[#allocation2 + $0x3b] sm:$0xff]
      %v1651 = vld [vmem:[#allocation2 + $0x43] sm:$0xff]
      %v1652 = vld [vmem:[#allocation2 + $0x4b] sm:$0xff]
      %v1653 = vld [vmem:[#allocation2 + $0x53] sm:$0xff]
      %v1654 = vld [vmem:[#allocation2 + $0x5b] sm:$0xff]
      %v1655 = vld [vmem:[#allocation2 + $0x63] sm:$0xff]
      %v1656 = vld [vmem:[#allocation2 + $0x6b] sm:$0xff]
      %v1657 = vld [vmem:[#allocation2 + $0x73] sm:$0xff]
      %v1658 = vld [vmem:[#allocation2 + $0x7b] sm:$0xff]
      %v1659 = vld [vmem:[#allocation2 + $0x83] sm:$0xff]
      %v1660 = vld [vmem:[#allocation2 + $0x8b] sm:$0xff]
      %v1661 = vld [vmem:[#allocation2 + $0x93] sm:$0xff]
      %v1662 = vld [vmem:[#allocation2 + $0x9b] sm:$0xff]
      %v1663 = vld [vmem:[#allocation2 + $0xa3] sm:$0xff]
      %v1664 = vld [vmem:[#allocation2 + $0xab] sm:$0xff]
      %v1665 = vld [vmem:[#allocation2 + $0xb3] sm:$0xff]
      %v1666 = vld [vmem:[#allocation2 + $0xbb] sm:$0xff]
      %v1667 = vld [vmem:[#allocation2 + $0xc3] sm:$0xff]
      %v1668 = vld [vmem:[#allocation2 + $0xcb] sm:$0xff]
      %v1669 = vld [vmem:[#allocation2 + $0xd3] sm:$0xff]
      %v1670 = vld [vmem:[#allocation2 + $0xdb] sm:$0xff]
      %v1671 = vld [vmem:[#allocation2 + $0xe3] sm:$0xff]
      %v1672 = vld [vmem:[#allocation2 + $0xeb] sm:$0xff]
      %v1673 = vld [vmem:[#allocation2 + $0xf3] sm:$0xff]
      %v1674 = vld [vmem:[#allocation2 + $0xfb] sm:$0xff]
      %v1675 = vld [vmem:[#allocation2 + $0x103] sm:$0xff]
      %v1676 = vld [vmem:[#allocation2 + $0x10b] sm:$0xff]
      %v1677 = vld [vmem:[#allocation2 + $0x113] sm:$0xff]
      %v1678 = vld [vmem:[#allocation2 + $0x11b] sm:$0xff]
      %v1679 = vld [vmem:[#allocation2 + $0x123] sm:$0xff]
      %v1680 = vld [vmem:[#allocation2 + $0x12b] sm:$0xff]
      %s1681 = scalar_lea.vmem %s2, 32
      %v1682 = vld [vmem:[%s1681] sm:$0xff]
      %v1684 = vsel %vm443, %v1645, 0
      %v1687 = vsel %vm443, %v1646, 0
      %v1690 = vsel %vm443, %v1647, 0
      %v1693 = vsel %vm443, %v1648, 0
      %v1696 = vsel %vm443, %v1649, 0
      %v1699 = vsel %vm443, %v1650, 0
      %v1702 = vsel %vm443, %v1651, 0
      %v1705 = vsel %vm443, %v1652, 0
      %v1708 = vsel %vm443, %v1653, 0
      %v1711 = vsel %vm443, %v1654, 0
      %v1714 = vsel %vm443, %v1655, 0
      %v1717 = vsel %vm443, %v1656, 0
      %v1720 = vsel %vm443, %v1657, 0
      %v1723 = vsel %vm443, %v1658, 0
      %v1726 = vsel %vm443, %v1659, 0
      %v1729 = vsel %vm443, %v1660, 0
      %v1732 = vsel %vm443, %v1661, 0
      %v1735 = vsel %vm443, %v1662, 0
      %v1738 = vsel %vm443, %v1663, 0
      %v1741 = vsel %vm443, %v1664, 0
      %v1744 = vsel %vm443, %v1665, 0
      %v1747 = vsel %vm443, %v1666, 0
      %v1750 = vsel %vm443, %v1667, 0
      %v1753 = vsel %vm443, %v1668, 0
      %v1756 = vsel %vm443, %v1669, 0
      %v1759 = vsel %vm443, %v1670, 0
      %v1762 = vsel %vm443, %v1671, 0
      %v1765 = vsel %vm443, %v1672, 0
      %v1768 = vsel %vm443, %v1673, 0
      %v1771 = vsel %vm443, %v1674, 0
      %v1774 = vsel %vm443, %v1675, 0
      %v1777 = vsel %vm443, %v1676, 0
      %v1780 = vsel %vm443, %v1677, 0
      %v1783 = vsel %vm443, %v1678, 0
      %v1786 = vsel %vm443, %v1679, 0
      %v1789 = vsel %vm443, %v1680, 0
      %1791 = vmatpush.msra.mxu0 0.0
      %1792 = vmatpush.msra.mxu0 0.0
      %1793 = vmatpush.msra.mxu0 0.0
      %1794 = vmatpush.msra.mxu0 0.0
      %1795 = vmatpush.msra.mxu0 0.0
      %1796 = vmatpush.msra.mxu0 0.0
      %1797 = vmatpush.msra.mxu0 0.0
      %1798 = vmatpush.msra.mxu0 0.0
      %1799 = vmatpush.msra.mxu0 0.0
      %1800 = vmatpush.msra.mxu0 0.0
      %1801 = vmatpush.msra.mxu0 0.0
      %1802 = vmatpush.msra.mxu0 0.0
      %1803 = vmatpush.msra.mxu0 0.0
      %1804 = vmatpush.msra.mxu0 0.0
      %1805 = vmatpush.msra.mxu0 0.0
      %1806 = vmatpush.msra.mxu0 %v1682
      %1807 = vmatmul.f32.gmra.mxu0 %v1684
      %v1808 = vpop.f32.mrf.mxu0
      %v1809 = vadd.f32 0.0, %v1808
      %1810 = vmatmul.f32.gmra.mxu0 %v1687
      %v1811 = vpop.f32.mrf.mxu0
      %v1812 = vadd.f32 0.0, %v1811
      %1813 = vmatmul.f32.gmra.mxu0 %v1690
      %v1814 = vpop.f32.mrf.mxu0
      %v1815 = vadd.f32 0.0, %v1814
      %1816 = vmatmul.f32.gmra.mxu0 %v1693
      %v1817 = vpop.f32.mrf.mxu0
      %v1818 = vadd.f32 0.0, %v1817
      %1819 = vmatmul.f32.gmra.mxu0 %v1696
      %v1820 = vpop.f32.mrf.mxu0
      %v1821 = vadd.f32 0.0, %v1820
      %1822 = vmatmul.f32.gmra.mxu0 %v1699
      %v1823 = vpop.f32.mrf.mxu0
      %v1824 = vadd.f32 0.0, %v1823
      %1825 = vmatmul.f32.gmra.mxu0 %v1702
      %v1826 = vpop.f32.mrf.mxu0
      %v1827 = vadd.f32 0.0, %v1826
      %1828 = vmatmul.f32.gmra.mxu0 %v1705
      %v1829 = vpop.f32.mrf.mxu0
      %v1830 = vadd.f32 0.0, %v1829
      %1831 = vmatmul.f32.gmra.mxu0 %v1708
      %v1832 = vpop.f32.mrf.mxu0
      %v1833 = vadd.f32 0.0, %v1832
      %1834 = vmatmul.f32.gmra.mxu0 %v1711
      %v1835 = vpop.f32.mrf.mxu0
      %v1836 = vadd.f32 0.0, %v1835
      %1837 = vmatmul.f32.gmra.mxu0 %v1714
      %v1838 = vpop.f32.mrf.mxu0
      %v1839 = vadd.f32 0.0, %v1838
      %1840 = vmatmul.f32.gmra.mxu0 %v1717
      %v1841 = vpop.f32.mrf.mxu0
      %v1842 = vadd.f32 0.0, %v1841
      %1843 = vmatmul.f32.gmra.mxu0 %v1720
      %v1844 = vpop.f32.mrf.mxu0
      %v1845 = vadd.f32 0.0, %v1844
      %1846 = vmatmul.f32.gmra.mxu0 %v1723
      %v1847 = vpop.f32.mrf.mxu0
      %v1848 = vadd.f32 0.0, %v1847
      %1849 = vmatmul.f32.gmra.mxu0 %v1726
      %v1850 = vpop.f32.mrf.mxu0
      %v1851 = vadd.f32 0.0, %v1850
      %1852 = vmatmul.f32.gmra.mxu0 %v1729
      %v1853 = vpop.f32.mrf.mxu0
      %v1854 = vadd.f32 0.0, %v1853
      %1855 = vmatmul.f32.gmra.mxu0 %v1732
      %v1856 = vpop.f32.mrf.mxu0
      %v1857 = vadd.f32 0.0, %v1856
      %1858 = vmatmul.f32.gmra.mxu0 %v1735
      %v1859 = vpop.f32.mrf.mxu0
      %v1860 = vadd.f32 0.0, %v1859
      %1861 = vmatmul.f32.gmra.mxu0 %v1738
      %v1862 = vpop.f32.mrf.mxu0
      %v1863 = vadd.f32 0.0, %v1862
      %1864 = vmatmul.f32.gmra.mxu0 %v1741
      %v1865 = vpop.f32.mrf.mxu0
      %v1866 = vadd.f32 0.0, %v1865
      %1867 = vmatmul.f32.gmra.mxu0 %v1744
      %v1868 = vpop.f32.mrf.mxu0
      %v1869 = vadd.f32 0.0, %v1868
      %1870 = vmatmul.f32.gmra.mxu0 %v1747
      %v1871 = vpop.f32.mrf.mxu0
      %v1872 = vadd.f32 0.0, %v1871
      %1873 = vmatmul.f32.gmra.mxu0 %v1750
      %v1874 = vpop.f32.mrf.mxu0
      %v1875 = vadd.f32 0.0, %v1874
      %1876 = vmatmul.f32.gmra.mxu0 %v1753
      %v1877 = vpop.f32.mrf.mxu0
      %v1878 = vadd.f32 0.0, %v1877
      %1879 = vmatmul.f32.gmra.mxu0 %v1756
      %v1880 = vpop.f32.mrf.mxu0
      %v1881 = vadd.f32 0.0, %v1880
      %1882 = vmatmul.f32.gmra.mxu0 %v1759
      %v1883 = vpop.f32.mrf.mxu0
      %v1884 = vadd.f32 0.0, %v1883
      %1885 = vmatmul.f32.gmra.mxu0 %v1762
      %v1886 = vpop.f32.mrf.mxu0
      %v1887 = vadd.f32 0.0, %v1886
      %1888 = vmatmul.f32.gmra.mxu0 %v1765
      %v1889 = vpop.f32.mrf.mxu0
      %v1890 = vadd.f32 0.0, %v1889
      %1891 = vmatmul.f32.gmra.mxu0 %v1768
      %v1892 = vpop.f32.mrf.mxu0
      %v1893 = vadd.f32 0.0, %v1892
      %1894 = vmatmul.f32.gmra.mxu0 %v1771
      %v1895 = vpop.f32.mrf.mxu0
      %v1896 = vadd.f32 0.0, %v1895
      %1897 = vmatmul.f32.gmra.mxu0 %v1774
      %v1898 = vpop.f32.mrf.mxu0
      %v1899 = vadd.f32 0.0, %v1898
      %1900 = vmatmul.f32.gmra.mxu0 %v1777
      %v1901 = vpop.f32.mrf.mxu0
      %v1902 = vadd.f32 0.0, %v1901
      %1903 = vmatmul.f32.gmra.mxu0 %v1780
      %v1904 = vpop.f32.mrf.mxu0
      %v1905 = vadd.f32 0.0, %v1904
      %1906 = vmatmul.f32.gmra.mxu0 %v1783
      %v1907 = vpop.f32.mrf.mxu0
      %v1908 = vadd.f32 0.0, %v1907
      %1909 = vmatmul.f32.gmra.mxu0 %v1786
      %v1910 = vpop.f32.mrf.mxu0
      %v1911 = vadd.f32 0.0, %v1910
      %1912 = vmatmul.f32.gmra.mxu0 %v1789
      %v1913 = vpop.f32.mrf.mxu0
      %v1914 = vadd.f32 0.0, %v1913
      %1915 = vdwg.mxu0
      %v1916 = vadd.f32 %v1609, %v1809
      %v1917 = vadd.f32 %v1610, %v1812
      %v1918 = vadd.f32 %v1611, %v1815
      %v1919 = vadd.f32 %v1612, %v1818
      %v1920 = vadd.f32 %v1613, %v1821
      %v1921 = vadd.f32 %v1614, %v1824
      %v1922 = vadd.f32 %v1615, %v1827
      %v1923 = vadd.f32 %v1616, %v1830
      %v1924 = vadd.f32 %v1617, %v1833
      %v1925 = vadd.f32 %v1618, %v1836
      %v1926 = vadd.f32 %v1619, %v1839
      %v1927 = vadd.f32 %v1620, %v1842
      %v1928 = vadd.f32 %v1621, %v1845
      %v1929 = vadd.f32 %v1622, %v1848
      %v1930 = vadd.f32 %v1623, %v1851
      %v1931 = vadd.f32 %v1624, %v1854
      %v1932 = vadd.f32 %v1625, %v1857
      %v1933 = vadd.f32 %v1626, %v1860
      %v1934 = vadd.f32 %v1627, %v1863
      %v1935 = vadd.f32 %v1628, %v1866
      %v1936 = vadd.f32 %v1629, %v1869
      %v1937 = vadd.f32 %v1630, %v1872
      %v1938 = vadd.f32 %v1631, %v1875
      %v1939 = vadd.f32 %v1632, %v1878
      %v1940 = vadd.f32 %v1633, %v1881
      %v1941 = vadd.f32 %v1634, %v1884
      %v1942 = vadd.f32 %v1635, %v1887
      %v1943 = vadd.f32 %v1636, %v1890
      %v1944 = vadd.f32 %v1637, %v1893
      %v1945 = vadd.f32 %v1638, %v1896
      %v1946 = vadd.f32 %v1639, %v1899
      %v1947 = vadd.f32 %v1640, %v1902
      %v1948 = vadd.f32 %v1641, %v1905
      %v1949 = vadd.f32 %v1642, %v1908
      %v1950 = vadd.f32 %v1643, %v1911
      %v1951 = vadd.f32 %v1644, %v1914
      %v1952 = vld [vmem:[#allocation2 + $0x14] sm:$0xff]
      %v1953 = vld [vmem:[#allocation2 + $0x1c] sm:$0xff]
      %v1954 = vld [vmem:[#allocation2 + $0x24] sm:$0xff]
      %v1955 = vld [vmem:[#allocation2 + $0x2c] sm:$0xff]
      %v1956 = vld [vmem:[#allocation2 + $0x34] sm:$0xff]
      %v1957 = vld [vmem:[#allocation2 + $0x3c] sm:$0xff]
      %v1958 = vld [vmem:[#allocation2 + $0x44] sm:$0xff]
      %v1959 = vld [vmem:[#allocation2 + $0x4c] sm:$0xff]
      %v1960 = vld [vmem:[#allocation2 + $0x54] sm:$0xff]
      %v1961 = vld [vmem:[#allocation2 + $0x5c] sm:$0xff]
      %v1962 = vld [vmem:[#allocation2 + $0x64] sm:$0xff]
      %v1963 = vld [vmem:[#allocation2 + $0x6c] sm:$0xff]
      %v1964 = vld [vmem:[#allocation2 + $0x74] sm:$0xff]
      %v1965 = vld [vmem:[#allocation2 + $0x7c] sm:$0xff]
      %v1966 = vld [vmem:[#allocation2 + $0x84] sm:$0xff]
      %v1967 = vld [vmem:[#allocation2 + $0x8c] sm:$0xff]
      %v1968 = vld [vmem:[#allocation2 + $0x94] sm:$0xff]
      %v1969 = vld [vmem:[#allocation2 + $0x9c] sm:$0xff]
      %v1970 = vld [vmem:[#allocation2 + $0xa4] sm:$0xff]
      %v1971 = vld [vmem:[#allocation2 + $0xac] sm:$0xff]
      %v1972 = vld [vmem:[#allocation2 + $0xb4] sm:$0xff]
      %v1973 = vld [vmem:[#allocation2 + $0xbc] sm:$0xff]
      %v1974 = vld [vmem:[#allocation2 + $0xc4] sm:$0xff]
      %v1975 = vld [vmem:[#allocation2 + $0xcc] sm:$0xff]
      %v1976 = vld [vmem:[#allocation2 + $0xd4] sm:$0xff]
      %v1977 = vld [vmem:[#allocation2 + $0xdc] sm:$0xff]
      %v1978 = vld [vmem:[#allocation2 + $0xe4] sm:$0xff]
      %v1979 = vld [vmem:[#allocation2 + $0xec] sm:$0xff]
      %v1980 = vld [vmem:[#allocation2 + $0xf4] sm:$0xff]
      %v1981 = vld [vmem:[#allocation2 + $0xfc] sm:$0xff]
      %v1982 = vld [vmem:[#allocation2 + $0x104] sm:$0xff]
      %v1983 = vld [vmem:[#allocation2 + $0x10c] sm:$0xff]
      %v1984 = vld [vmem:[#allocation2 + $0x114] sm:$0xff]
      %v1985 = vld [vmem:[#allocation2 + $0x11c] sm:$0xff]
      %v1986 = vld [vmem:[#allocation2 + $0x124] sm:$0xff]
      %v1987 = vld [vmem:[#allocation2 + $0x12c] sm:$0xff]
      %s1988 = scalar_lea.vmem %s2, 40
      %v1989 = vld [vmem:[%s1988] sm:$0xff]
      %v1991 = vsel %vm443, %v1952, 0
      %v1994 = vsel %vm443, %v1953, 0
      %v1997 = vsel %vm443, %v1954, 0
      %v2000 = vsel %vm443, %v1955, 0
      %v2003 = vsel %vm443, %v1956, 0
      %v2006 = vsel %vm443, %v1957, 0
      %v2009 = vsel %vm443, %v1958, 0
      %v2012 = vsel %vm443, %v1959, 0
      %v2015 = vsel %vm443, %v1960, 0
      %v2018 = vsel %vm443, %v1961, 0
      %v2021 = vsel %vm443, %v1962, 0
      %v2024 = vsel %vm443, %v1963, 0
      %v2027 = vsel %vm443, %v1964, 0
      %v2030 = vsel %vm443, %v1965, 0
      %v2033 = vsel %vm443, %v1966, 0
      %v2036 = vsel %vm443, %v1967, 0
      %v2039 = vsel %vm443, %v1968, 0
      %v2042 = vsel %vm443, %v1969, 0
      %v2045 = vsel %vm443, %v1970, 0
      %v2048 = vsel %vm443, %v1971, 0
      %v2051 = vsel %vm443, %v1972, 0
      %v2054 = vsel %vm443, %v1973, 0
      %v2057 = vsel %vm443, %v1974, 0
      %v2060 = vsel %vm443, %v1975, 0
      %v2063 = vsel %vm443, %v1976, 0
      %v2066 = vsel %vm443, %v1977, 0
      %v2069 = vsel %vm443, %v1978, 0
      %v2072 = vsel %vm443, %v1979, 0
      %v2075 = vsel %vm443, %v1980, 0
      %v2078 = vsel %vm443, %v1981, 0
      %v2081 = vsel %vm443, %v1982, 0
      %v2084 = vsel %vm443, %v1983, 0
      %v2087 = vsel %vm443, %v1984, 0
      %v2090 = vsel %vm443, %v1985, 0
      %v2093 = vsel %vm443, %v1986, 0
      %v2096 = vsel %vm443, %v1987, 0
      %2098 = vmatpush.msra.mxu0 0.0
      %2099 = vmatpush.msra.mxu0 0.0
      %2100 = vmatpush.msra.mxu0 0.0
      %2101 = vmatpush.msra.mxu0 0.0
      %2102 = vmatpush.msra.mxu0 0.0
      %2103 = vmatpush.msra.mxu0 0.0
      %2104 = vmatpush.msra.mxu0 0.0
      %2105 = vmatpush.msra.mxu0 0.0
      %2106 = vmatpush.msra.mxu0 0.0
      %2107 = vmatpush.msra.mxu0 0.0
      %2108 = vmatpush.msra.mxu0 0.0
      %2109 = vmatpush.msra.mxu0 0.0
      %2110 = vmatpush.msra.mxu0 0.0
      %2111 = vmatpush.msra.mxu0 0.0
      %2112 = vmatpush.msra.mxu0 0.0
      %2113 = vmatpush.msra.mxu0 %v1989
      %2114 = vmatmul.f32.gmra.mxu0 %v1991
      %v2115 = vpop.f32.mrf.mxu0
      %v2116 = vadd.f32 0.0, %v2115
      %2117 = vmatmul.f32.gmra.mxu0 %v1994
      %v2118 = vpop.f32.mrf.mxu0
      %v2119 = vadd.f32 0.0, %v2118
      %2120 = vmatmul.f32.gmra.mxu0 %v1997
      %v2121 = vpop.f32.mrf.mxu0
      %v2122 = vadd.f32 0.0, %v2121
      %2123 = vmatmul.f32.gmra.mxu0 %v2000
      %v2124 = vpop.f32.mrf.mxu0
      %v2125 = vadd.f32 0.0, %v2124
      %2126 = vmatmul.f32.gmra.mxu0 %v2003
      %v2127 = vpop.f32.mrf.mxu0
      %v2128 = vadd.f32 0.0, %v2127
      %2129 = vmatmul.f32.gmra.mxu0 %v2006
      %v2130 = vpop.f32.mrf.mxu0
      %v2131 = vadd.f32 0.0, %v2130
      %2132 = vmatmul.f32.gmra.mxu0 %v2009
      %v2133 = vpop.f32.mrf.mxu0
      %v2134 = vadd.f32 0.0, %v2133
      %2135 = vmatmul.f32.gmra.mxu0 %v2012
      %v2136 = vpop.f32.mrf.mxu0
      %v2137 = vadd.f32 0.0, %v2136
      %2138 = vmatmul.f32.gmra.mxu0 %v2015
      %v2139 = vpop.f32.mrf.mxu0
      %v2140 = vadd.f32 0.0, %v2139
      %2141 = vmatmul.f32.gmra.mxu0 %v2018
      %v2142 = vpop.f32.mrf.mxu0
      %v2143 = vadd.f32 0.0, %v2142
      %2144 = vmatmul.f32.gmra.mxu0 %v2021
      %v2145 = vpop.f32.mrf.mxu0
      %v2146 = vadd.f32 0.0, %v2145
      %2147 = vmatmul.f32.gmra.mxu0 %v2024
      %v2148 = vpop.f32.mrf.mxu0
      %v2149 = vadd.f32 0.0, %v2148
      %2150 = vmatmul.f32.gmra.mxu0 %v2027
      %v2151 = vpop.f32.mrf.mxu0
      %v2152 = vadd.f32 0.0, %v2151
      %2153 = vmatmul.f32.gmra.mxu0 %v2030
      %v2154 = vpop.f32.mrf.mxu0
      %v2155 = vadd.f32 0.0, %v2154
      %2156 = vmatmul.f32.gmra.mxu0 %v2033
      %v2157 = vpop.f32.mrf.mxu0
      %v2158 = vadd.f32 0.0, %v2157
      %2159 = vmatmul.f32.gmra.mxu0 %v2036
      %v2160 = vpop.f32.mrf.mxu0
      %v2161 = vadd.f32 0.0, %v2160
      %2162 = vmatmul.f32.gmra.mxu0 %v2039
      %v2163 = vpop.f32.mrf.mxu0
      %v2164 = vadd.f32 0.0, %v2163
      %2165 = vmatmul.f32.gmra.mxu0 %v2042
      %v2166 = vpop.f32.mrf.mxu0
      %v2167 = vadd.f32 0.0, %v2166
      %2168 = vmatmul.f32.gmra.mxu0 %v2045
      %v2169 = vpop.f32.mrf.mxu0
      %v2170 = vadd.f32 0.0, %v2169
      %2171 = vmatmul.f32.gmra.mxu0 %v2048
      %v2172 = vpop.f32.mrf.mxu0
      %v2173 = vadd.f32 0.0, %v2172
      %2174 = vmatmul.f32.gmra.mxu0 %v2051
      %v2175 = vpop.f32.mrf.mxu0
      %v2176 = vadd.f32 0.0, %v2175
      %2177 = vmatmul.f32.gmra.mxu0 %v2054
      %v2178 = vpop.f32.mrf.mxu0
      %v2179 = vadd.f32 0.0, %v2178
      %2180 = vmatmul.f32.gmra.mxu0 %v2057
      %v2181 = vpop.f32.mrf.mxu0
      %v2182 = vadd.f32 0.0, %v2181
      %2183 = vmatmul.f32.gmra.mxu0 %v2060
      %v2184 = vpop.f32.mrf.mxu0
      %v2185 = vadd.f32 0.0, %v2184
      %2186 = vmatmul.f32.gmra.mxu0 %v2063
      %v2187 = vpop.f32.mrf.mxu0
      %v2188 = vadd.f32 0.0, %v2187
      %2189 = vmatmul.f32.gmra.mxu0 %v2066
      %v2190 = vpop.f32.mrf.mxu0
      %v2191 = vadd.f32 0.0, %v2190
      %2192 = vmatmul.f32.gmra.mxu0 %v2069
      %v2193 = vpop.f32.mrf.mxu0
      %v2194 = vadd.f32 0.0, %v2193
      %2195 = vmatmul.f32.gmra.mxu0 %v2072
      %v2196 = vpop.f32.mrf.mxu0
      %v2197 = vadd.f32 0.0, %v2196
      %2198 = vmatmul.f32.gmra.mxu0 %v2075
      %v2199 = vpop.f32.mrf.mxu0
      %v2200 = vadd.f32 0.0, %v2199
      %2201 = vmatmul.f32.gmra.mxu0 %v2078
      %v2202 = vpop.f32.mrf.mxu0
      %v2203 = vadd.f32 0.0, %v2202
      %2204 = vmatmul.f32.gmra.mxu0 %v2081
      %v2205 = vpop.f32.mrf.mxu0
      %v2206 = vadd.f32 0.0, %v2205
      %2207 = vmatmul.f32.gmra.mxu0 %v2084
      %v2208 = vpop.f32.mrf.mxu0
      %v2209 = vadd.f32 0.0, %v2208
      %2210 = vmatmul.f32.gmra.mxu0 %v2087
      %v2211 = vpop.f32.mrf.mxu0
      %v2212 = vadd.f32 0.0, %v2211
      %2213 = vmatmul.f32.gmra.mxu0 %v2090
      %v2214 = vpop.f32.mrf.mxu0
      %v2215 = vadd.f32 0.0, %v2214
      %2216 = vmatmul.f32.gmra.mxu0 %v2093
      %v2217 = vpop.f32.mrf.mxu0
      %v2218 = vadd.f32 0.0, %v2217
      %2219 = vmatmul.f32.gmra.mxu0 %v2096
      %v2220 = vpop.f32.mrf.mxu0
      %v2221 = vadd.f32 0.0, %v2220
      %2222 = vdwg.mxu0
      %v2223 = vadd.f32 %v1916, %v2116
      %v2224 = vadd.f32 %v1917, %v2119
      %v2225 = vadd.f32 %v1918, %v2122
      %v2226 = vadd.f32 %v1919, %v2125
      %v2227 = vadd.f32 %v1920, %v2128
      %v2228 = vadd.f32 %v1921, %v2131
      %v2229 = vadd.f32 %v1922, %v2134
      %v2230 = vadd.f32 %v1923, %v2137
      %v2231 = vadd.f32 %v1924, %v2140
      %v2232 = vadd.f32 %v1925, %v2143
      %v2233 = vadd.f32 %v1926, %v2146
      %v2234 = vadd.f32 %v1927, %v2149
      %v2235 = vadd.f32 %v1928, %v2152
      %v2236 = vadd.f32 %v1929, %v2155
      %v2237 = vadd.f32 %v1930, %v2158
      %v2238 = vadd.f32 %v1931, %v2161
      %v2239 = vadd.f32 %v1932, %v2164
      %v2240 = vadd.f32 %v1933, %v2167
      %v2241 = vadd.f32 %v1934, %v2170
      %v2242 = vadd.f32 %v1935, %v2173
      %v2243 = vadd.f32 %v1936, %v2176
      %v2244 = vadd.f32 %v1937, %v2179
      %v2245 = vadd.f32 %v1938, %v2182
      %v2246 = vadd.f32 %v1939, %v2185
      %v2247 = vadd.f32 %v1940, %v2188
      %v2248 = vadd.f32 %v1941, %v2191
      %v2249 = vadd.f32 %v1942, %v2194
      %v2250 = vadd.f32 %v1943, %v2197
      %v2251 = vadd.f32 %v1944, %v2200
      %v2252 = vadd.f32 %v1945, %v2203
      %v2253 = vadd.f32 %v1946, %v2206
      %v2254 = vadd.f32 %v1947, %v2209
      %v2255 = vadd.f32 %v1948, %v2212
      %v2256 = vadd.f32 %v1949, %v2215
      %v2257 = vadd.f32 %v1950, %v2218
      %v2258 = vadd.f32 %v1951, %v2221
      %v2259 = vld [vmem:[#allocation2 + $0x24] sm:$0xff]
      %v2260 = vld [vmem:[#allocation2 + $0x2c] sm:$0xff]
      %v2261 = vld [vmem:[#allocation2 + $0x34] sm:$0xff]
      %v2262 = vld [vmem:[#allocation2 + $0x3c] sm:$0xff]
      %v2263 = vld [vmem:[#allocation2 + $0x44] sm:$0xff]
      %v2264 = vld [vmem:[#allocation2 + $0x4c] sm:$0xff]
      %v2265 = vld [vmem:[#allocation2 + $0x54] sm:$0xff]
      %v2266 = vld [vmem:[#allocation2 + $0x5c] sm:$0xff]
      %v2267 = vld [vmem:[#allocation2 + $0x64] sm:$0xff]
      %v2268 = vld [vmem:[#allocation2 + $0x6c] sm:$0xff]
      %v2269 = vld [vmem:[#allocation2 + $0x74] sm:$0xff]
      %v2270 = vld [vmem:[#allocation2 + $0x7c] sm:$0xff]
      %v2271 = vld [vmem:[#allocation2 + $0x84] sm:$0xff]
      %v2272 = vld [vmem:[#allocation2 + $0x8c] sm:$0xff]
      %v2273 = vld [vmem:[#allocation2 + $0x94] sm:$0xff]
      %v2274 = vld [vmem:[#allocation2 + $0x9c] sm:$0xff]
      %v2275 = vld [vmem:[#allocation2 + $0xa4] sm:$0xff]
      %v2276 = vld [vmem:[#allocation2 + $0xac] sm:$0xff]
      %v2277 = vld [vmem:[#allocation2 + $0xb4] sm:$0xff]
      %v2278 = vld [vmem:[#allocation2 + $0xbc] sm:$0xff]
      %v2279 = vld [vmem:[#allocation2 + $0xc4] sm:$0xff]
      %v2280 = vld [vmem:[#allocation2 + $0xcc] sm:$0xff]
      %v2281 = vld [vmem:[#allocation2 + $0xd4] sm:$0xff]
      %v2282 = vld [vmem:[#allocation2 + $0xdc] sm:$0xff]
      %v2283 = vld [vmem:[#allocation2 + $0xe4] sm:$0xff]
      %v2284 = vld [vmem:[#allocation2 + $0xec] sm:$0xff]
      %v2285 = vld [vmem:[#allocation2 + $0xf4] sm:$0xff]
      %v2286 = vld [vmem:[#allocation2 + $0xfc] sm:$0xff]
      %v2287 = vld [vmem:[#allocation2 + $0x104] sm:$0xff]
      %v2288 = vld [vmem:[#allocation2 + $0x10c] sm:$0xff]
      %v2289 = vld [vmem:[#allocation2 + $0x114] sm:$0xff]
      %v2290 = vld [vmem:[#allocation2 + $0x11c] sm:$0xff]
      %v2291 = vld [vmem:[#allocation2 + $0x124] sm:$0xff]
      %v2292 = vld [vmem:[#allocation2 + $0x12c] sm:$0xff]
      %v2293 = vld [vmem:[#allocation2 + $0x134] sm:$0xff]
      %v2294 = vld [vmem:[#allocation2 + $0x13c] sm:$0xff]
      %s2295 = scalar_lea.vmem %s2, 48
      %v2296 = vld [vmem:[%s2295] sm:$0xff]
      %v2298 = vsel %vm443, %v2259, 0
      %v2301 = vsel %vm443, %v2260, 0
      %v2304 = vsel %vm443, %v2261, 0
      %v2307 = vsel %vm443, %v2262, 0
      %v2310 = vsel %vm443, %v2263, 0
      %v2313 = vsel %vm443, %v2264, 0
      %v2316 = vsel %vm443, %v2265, 0
      %v2319 = vsel %vm443, %v2266, 0
      %v2322 = vsel %vm443, %v2267, 0
      %v2325 = vsel %vm443, %v2268, 0
      %v2328 = vsel %vm443, %v2269, 0
      %v2331 = vsel %vm443, %v2270, 0
      %v2334 = vsel %vm443, %v2271, 0
      %v2337 = vsel %vm443, %v2272, 0
      %v2340 = vsel %vm443, %v2273, 0
      %v2343 = vsel %vm443, %v2274, 0
      %v2346 = vsel %vm443, %v2275, 0
      %v2349 = vsel %vm443, %v2276, 0
      %v2352 = vsel %vm443, %v2277, 0
      %v2355 = vsel %vm443, %v2278, 0
      %v2358 = vsel %vm443, %v2279, 0
      %v2361 = vsel %vm443, %v2280, 0
      %v2364 = vsel %vm443, %v2281, 0
      %v2367 = vsel %vm443, %v2282, 0
      %v2370 = vsel %vm443, %v2283, 0
      %v2373 = vsel %vm443, %v2284, 0
      %v2376 = vsel %vm443, %v2285, 0
      %v2379 = vsel %vm443, %v2286, 0
      %v2382 = vsel %vm443, %v2287, 0
      %v2385 = vsel %vm443, %v2288, 0
      %v2388 = vsel %vm443, %v2289, 0
      %v2391 = vsel %vm443, %v2290, 0
      %v2394 = vsel %vm443, %v2291, 0
      %v2397 = vsel %vm443, %v2292, 0
      %v2400 = vsel %vm443, %v2293, 0
      %v2403 = vsel %vm443, %v2294, 0
      %2405 = vmatpush.msra.mxu0 0.0
      %2406 = vmatpush.msra.mxu0 0.0
      %2407 = vmatpush.msra.mxu0 0.0
      %2408 = vmatpush.msra.mxu0 0.0
      %2409 = vmatpush.msra.mxu0 0.0
      %2410 = vmatpush.msra.mxu0 0.0
      %2411 = vmatpush.msra.mxu0 0.0
      %2412 = vmatpush.msra.mxu0 0.0
      %2413 = vmatpush.msra.mxu0 0.0
      %2414 = vmatpush.msra.mxu0 0.0
      %2415 = vmatpush.msra.mxu0 0.0
      %2416 = vmatpush.msra.mxu0 0.0
      %2417 = vmatpush.msra.mxu0 0.0
      %2418 = vmatpush.msra.mxu0 0.0
      %2419 = vmatpush.msra.mxu0 0.0
      %2420 = vmatpush.msra.mxu0 %v2296
      %2421 = vmatmul.f32.gmra.mxu0 %v2298
      %v2422 = vpop.f32.mrf.mxu0
      %v2423 = vadd.f32 0.0, %v2422
      %2424 = vmatmul.f32.gmra.mxu0 %v2301
      %v2425 = vpop.f32.mrf.mxu0
      %v2426 = vadd.f32 0.0, %v2425
      %2427 = vmatmul.f32.gmra.mxu0 %v2304
      %v2428 = vpop.f32.mrf.mxu0
      %v2429 = vadd.f32 0.0, %v2428
      %2430 = vmatmul.f32.gmra.mxu0 %v2307
      %v2431 = vpop.f32.mrf.mxu0
      %v2432 = vadd.f32 0.0, %v2431
      %2433 = vmatmul.f32.gmra.mxu0 %v2310
      %v2434 = vpop.f32.mrf.mxu0
      %v2435 = vadd.f32 0.0, %v2434
      %2436 = vmatmul.f32.gmra.mxu0 %v2313
      %v2437 = vpop.f32.mrf.mxu0
      %v2438 = vadd.f32 0.0, %v2437
      %2439 = vmatmul.f32.gmra.mxu0 %v2316
      %v2440 = vpop.f32.mrf.mxu0
      %v2441 = vadd.f32 0.0, %v2440
      %2442 = vmatmul.f32.gmra.mxu0 %v2319
      %v2443 = vpop.f32.mrf.mxu0
      %v2444 = vadd.f32 0.0, %v2443
      %2445 = vmatmul.f32.gmra.mxu0 %v2322
      %v2446 = vpop.f32.mrf.mxu0
      %v2447 = vadd.f32 0.0, %v2446
      %2448 = vmatmul.f32.gmra.mxu0 %v2325
      %v2449 = vpop.f32.mrf.mxu0
      %v2450 = vadd.f32 0.0, %v2449
      %2451 = vmatmul.f32.gmra.mxu0 %v2328
      %v2452 = vpop.f32.mrf.mxu0
      %v2453 = vadd.f32 0.0, %v2452
      %2454 = vmatmul.f32.gmra.mxu0 %v2331
      %v2455 = vpop.f32.mrf.mxu0
      %v2456 = vadd.f32 0.0, %v2455
      %2457 = vmatmul.f32.gmra.mxu0 %v2334
      %v2458 = vpop.f32.mrf.mxu0
      %v2459 = vadd.f32 0.0, %v2458
      %2460 = vmatmul.f32.gmra.mxu0 %v2337
      %v2461 = vpop.f32.mrf.mxu0
      %v2462 = vadd.f32 0.0, %v2461
      %2463 = vmatmul.f32.gmra.mxu0 %v2340
      %v2464 = vpop.f32.mrf.mxu0
      %v2465 = vadd.f32 0.0, %v2464
      %2466 = vmatmul.f32.gmra.mxu0 %v2343
      %v2467 = vpop.f32.mrf.mxu0
      %v2468 = vadd.f32 0.0, %v2467
      %2469 = vmatmul.f32.gmra.mxu0 %v2346
      %v2470 = vpop.f32.mrf.mxu0
      %v2471 = vadd.f32 0.0, %v2470
      %2472 = vmatmul.f32.gmra.mxu0 %v2349
      %v2473 = vpop.f32.mrf.mxu0
      %v2474 = vadd.f32 0.0, %v2473
      %2475 = vmatmul.f32.gmra.mxu0 %v2352
      %v2476 = vpop.f32.mrf.mxu0
      %v2477 = vadd.f32 0.0, %v2476
      %2478 = vmatmul.f32.gmra.mxu0 %v2355
      %v2479 = vpop.f32.mrf.mxu0
      %v2480 = vadd.f32 0.0, %v2479
      %2481 = vmatmul.f32.gmra.mxu0 %v2358
      %v2482 = vpop.f32.mrf.mxu0
      %v2483 = vadd.f32 0.0, %v2482
      %2484 = vmatmul.f32.gmra.mxu0 %v2361
      %v2485 = vpop.f32.mrf.mxu0
      %v2486 = vadd.f32 0.0, %v2485
      %2487 = vmatmul.f32.gmra.mxu0 %v2364
      %v2488 = vpop.f32.mrf.mxu0
      %v2489 = vadd.f32 0.0, %v2488
      %2490 = vmatmul.f32.gmra.mxu0 %v2367
      %v2491 = vpop.f32.mrf.mxu0
      %v2492 = vadd.f32 0.0, %v2491
      %2493 = vmatmul.f32.gmra.mxu0 %v2370
      %v2494 = vpop.f32.mrf.mxu0
      %v2495 = vadd.f32 0.0, %v2494
      %2496 = vmatmul.f32.gmra.mxu0 %v2373
      %v2497 = vpop.f32.mrf.mxu0
      %v2498 = vadd.f32 0.0, %v2497
      %2499 = vmatmul.f32.gmra.mxu0 %v2376
      %v2500 = vpop.f32.mrf.mxu0
      %v2501 = vadd.f32 0.0, %v2500
      %2502 = vmatmul.f32.gmra.mxu0 %v2379
      %v2503 = vpop.f32.mrf.mxu0
      %v2504 = vadd.f32 0.0, %v2503
      %2505 = vmatmul.f32.gmra.mxu0 %v2382
      %v2506 = vpop.f32.mrf.mxu0
      %v2507 = vadd.f32 0.0, %v2506
      %2508 = vmatmul.f32.gmra.mxu0 %v2385
      %v2509 = vpop.f32.mrf.mxu0
      %v2510 = vadd.f32 0.0, %v2509
      %2511 = vmatmul.f32.gmra.mxu0 %v2388
      %v2512 = vpop.f32.mrf.mxu0
      %v2513 = vadd.f32 0.0, %v2512
      %2514 = vmatmul.f32.gmra.mxu0 %v2391
      %v2515 = vpop.f32.mrf.mxu0
      %v2516 = vadd.f32 0.0, %v2515
      %2517 = vmatmul.f32.gmra.mxu0 %v2394
      %v2518 = vpop.f32.mrf.mxu0
      %v2519 = vadd.f32 0.0, %v2518
      %2520 = vmatmul.f32.gmra.mxu0 %v2397
      %v2521 = vpop.f32.mrf.mxu0
      %v2522 = vadd.f32 0.0, %v2521
      %2523 = vmatmul.f32.gmra.mxu0 %v2400
      %v2524 = vpop.f32.mrf.mxu0
      %v2525 = vadd.f32 0.0, %v2524
      %2526 = vmatmul.f32.gmra.mxu0 %v2403
      %v2527 = vpop.f32.mrf.mxu0
      %v2528 = vadd.f32 0.0, %v2527
      %2529 = vdwg.mxu0
      %v2530 = vadd.f32 %v2223, %v2423
      %v2531 = vadd.f32 %v2224, %v2426
      %v2532 = vadd.f32 %v2225, %v2429
      %v2533 = vadd.f32 %v2226, %v2432
      %v2534 = vadd.f32 %v2227, %v2435
      %v2535 = vadd.f32 %v2228, %v2438
      %v2536 = vadd.f32 %v2229, %v2441
      %v2537 = vadd.f32 %v2230, %v2444
      %v2538 = vadd.f32 %v2231, %v2447
      %v2539 = vadd.f32 %v2232, %v2450
      %v2540 = vadd.f32 %v2233, %v2453
      %v2541 = vadd.f32 %v2234, %v2456
      %v2542 = vadd.f32 %v2235, %v2459
      %v2543 = vadd.f32 %v2236, %v2462
      %v2544 = vadd.f32 %v2237, %v2465
      %v2545 = vadd.f32 %v2238, %v2468
      %v2546 = vadd.f32 %v2239, %v2471
      %v2547 = vadd.f32 %v2240, %v2474
      %v2548 = vadd.f32 %v2241, %v2477
      %v2549 = vadd.f32 %v2242, %v2480
      %v2550 = vadd.f32 %v2243, %v2483
      %v2551 = vadd.f32 %v2244, %v2486
      %v2552 = vadd.f32 %v2245, %v2489
      %v2553 = vadd.f32 %v2246, %v2492
      %v2554 = vadd.f32 %v2247, %v2495
      %v2555 = vadd.f32 %v2248, %v2498
      %v2556 = vadd.f32 %v2249, %v2501
      %v2557 = vadd.f32 %v2250, %v2504
      %v2558 = vadd.f32 %v2251, %v2507
      %v2559 = vadd.f32 %v2252, %v2510
      %v2560 = vadd.f32 %v2253, %v2513
      %v2561 = vadd.f32 %v2254, %v2516
      %v2562 = vadd.f32 %v2255, %v2519
      %v2563 = vadd.f32 %v2256, %v2522
      %v2564 = vadd.f32 %v2257, %v2525
      %v2565 = vadd.f32 %v2258, %v2528
      %v2566 = vld [vmem:[#allocation2 + $0x25] sm:$0xff]
      %v2567 = vld [vmem:[#allocation2 + $0x2d] sm:$0xff]
      %v2568 = vld [vmem:[#allocation2 + $0x35] sm:$0xff]
      %v2569 = vld [vmem:[#allocation2 + $0x3d] sm:$0xff]
      %v2570 = vld [vmem:[#allocation2 + $0x45] sm:$0xff]
      %v2571 = vld [vmem:[#allocation2 + $0x4d] sm:$0xff]
      %v2572 = vld [vmem:[#allocation2 + $0x55] sm:$0xff]
      %v2573 = vld [vmem:[#allocation2 + $0x5d] sm:$0xff]
      %v2574 = vld [vmem:[#allocation2 + $0x65] sm:$0xff]
      %v2575 = vld [vmem:[#allocation2 + $0x6d] sm:$0xff]
      %v2576 = vld [vmem:[#allocation2 + $0x75] sm:$0xff]
      %v2577 = vld [vmem:[#allocation2 + $0x7d] sm:$0xff]
      %v2578 = vld [vmem:[#allocation2 + $0x85] sm:$0xff]
      %v2579 = vld [vmem:[#allocation2 + $0x8d] sm:$0xff]
      %v2580 = vld [vmem:[#allocation2 + $0x95] sm:$0xff]
      %v2581 = vld [vmem:[#allocation2 + $0x9d] sm:$0xff]
      %v2582 = vld [vmem:[#allocation2 + $0xa5] sm:$0xff]
      %v2583 = vld [vmem:[#allocation2 + $0xad] sm:$0xff]
      %v2584 = vld [vmem:[#allocation2 + $0xb5] sm:$0xff]
      %v2585 = vld [vmem:[#allocation2 + $0xbd] sm:$0xff]
      %v2586 = vld [vmem:[#allocation2 + $0xc5] sm:$0xff]
      %v2587 = vld [vmem:[#allocation2 + $0xcd] sm:$0xff]
      %v2588 = vld [vmem:[#allocation2 + $0xd5] sm:$0xff]
      %v2589 = vld [vmem:[#allocation2 + $0xdd] sm:$0xff]
      %v2590 = vld [vmem:[#allocation2 + $0xe5] sm:$0xff]
      %v2591 = vld [vmem:[#allocation2 + $0xed] sm:$0xff]
      %v2592 = vld [vmem:[#allocation2 + $0xf5] sm:$0xff]
      %v2593 = vld [vmem:[#allocation2 + $0xfd] sm:$0xff]
      %v2594 = vld [vmem:[#allocation2 + $0x105] sm:$0xff]
      %v2595 = vld [vmem:[#allocation2 + $0x10d] sm:$0xff]
      %v2596 = vld [vmem:[#allocation2 + $0x115] sm:$0xff]
      %v2597 = vld [vmem:[#allocation2 + $0x11d] sm:$0xff]
      %v2598 = vld [vmem:[#allocation2 + $0x125] sm:$0xff]
      %v2599 = vld [vmem:[#allocation2 + $0x12d] sm:$0xff]
      %v2600 = vld [vmem:[#allocation2 + $0x135] sm:$0xff]
      %v2601 = vld [vmem:[#allocation2 + $0x13d] sm:$0xff]
      %s2602 = scalar_lea.vmem %s2, 56
      %v2603 = vld [vmem:[%s2602] sm:$0xff]
      %v2605 = vsel %vm443, %v2566, 0
      %v2608 = vsel %vm443, %v2567, 0
      %v2611 = vsel %vm443, %v2568, 0
      %v2614 = vsel %vm443, %v2569, 0
      %v2617 = vsel %vm443, %v2570, 0
      %v2620 = vsel %vm443, %v2571, 0
      %v2623 = vsel %vm443, %v2572, 0
      %v2626 = vsel %vm443, %v2573, 0
      %v2629 = vsel %vm443, %v2574, 0
      %v2632 = vsel %vm443, %v2575, 0
      %v2635 = vsel %vm443, %v2576, 0
      %v2638 = vsel %vm443, %v2577, 0
      %v2641 = vsel %vm443, %v2578, 0
      %v2644 = vsel %vm443, %v2579, 0
      %v2647 = vsel %vm443, %v2580, 0
      %v2650 = vsel %vm443, %v2581, 0
      %v2653 = vsel %vm443, %v2582, 0
      %v2656 = vsel %vm443, %v2583, 0
      %v2659 = vsel %vm443, %v2584, 0
      %v2662 = vsel %vm443, %v2585, 0
      %v2665 = vsel %vm443, %v2586, 0
      %v2668 = vsel %vm443, %v2587, 0
      %v2671 = vsel %vm443, %v2588, 0
      %v2674 = vsel %vm443, %v2589, 0
      %v2677 = vsel %vm443, %v2590, 0
      %v2680 = vsel %vm443, %v2591, 0
      %v2683 = vsel %vm443, %v2592, 0
      %v2686 = vsel %vm443, %v2593, 0
      %v2689 = vsel %vm443, %v2594, 0
      %v2692 = vsel %vm443, %v2595, 0
      %v2695 = vsel %vm443, %v2596, 0
      %v2698 = vsel %vm443, %v2597, 0
      %v2701 = vsel %vm443, %v2598, 0
      %v2704 = vsel %vm443, %v2599, 0
      %v2707 = vsel %vm443, %v2600, 0
      %v2710 = vsel %vm443, %v2601, 0
      %2712 = vmatpush.msra.mxu0 0.0
      %2713 = vmatpush.msra.mxu0 0.0
      %2714 = vmatpush.msra.mxu0 0.0
      %2715 = vmatpush.msra.mxu0 0.0
      %2716 = vmatpush.msra.mxu0 0.0
      %2717 = vmatpush.msra.mxu0 0.0
      %2718 = vmatpush.msra.mxu0 0.0
      %2719 = vmatpush.msra.mxu0 0.0
      %2720 = vmatpush.msra.mxu0 0.0
      %2721 = vmatpush.msra.mxu0 0.0
      %2722 = vmatpush.msra.mxu0 0.0
      %2723 = vmatpush.msra.mxu0 0.0
      %2724 = vmatpush.msra.mxu0 0.0
      %2725 = vmatpush.msra.mxu0 0.0
      %2726 = vmatpush.msra.mxu0 0.0
      %2727 = vmatpush.msra.mxu0 %v2603
      %2728 = vmatmul.f32.gmra.mxu0 %v2605
      %v2729 = vpop.f32.mrf.mxu0
      %v2730 = vadd.f32 0.0, %v2729
      %2731 = vmatmul.f32.gmra.mxu0 %v2608
      %v2732 = vpop.f32.mrf.mxu0
      %v2733 = vadd.f32 0.0, %v2732
      %2734 = vmatmul.f32.gmra.mxu0 %v2611
      %v2735 = vpop.f32.mrf.mxu0
      %v2736 = vadd.f32 0.0, %v2735
      %2737 = vmatmul.f32.gmra.mxu0 %v2614
      %v2738 = vpop.f32.mrf.mxu0
      %v2739 = vadd.f32 0.0, %v2738
      %2740 = vmatmul.f32.gmra.mxu0 %v2617
      %v2741 = vpop.f32.mrf.mxu0
      %v2742 = vadd.f32 0.0, %v2741
      %2743 = vmatmul.f32.gmra.mxu0 %v2620
      %v2744 = vpop.f32.mrf.mxu0
      %v2745 = vadd.f32 0.0, %v2744
      %2746 = vmatmul.f32.gmra.mxu0 %v2623
      %v2747 = vpop.f32.mrf.mxu0
      %v2748 = vadd.f32 0.0, %v2747
      %2749 = vmatmul.f32.gmra.mxu0 %v2626
      %v2750 = vpop.f32.mrf.mxu0
      %v2751 = vadd.f32 0.0, %v2750
      %2752 = vmatmul.f32.gmra.mxu0 %v2629
      %v2753 = vpop.f32.mrf.mxu0
      %v2754 = vadd.f32 0.0, %v2753
      %2755 = vmatmul.f32.gmra.mxu0 %v2632
      %v2756 = vpop.f32.mrf.mxu0
      %v2757 = vadd.f32 0.0, %v2756
      %2758 = vmatmul.f32.gmra.mxu0 %v2635
      %v2759 = vpop.f32.mrf.mxu0
      %v2760 = vadd.f32 0.0, %v2759
      %2761 = vmatmul.f32.gmra.mxu0 %v2638
      %v2762 = vpop.f32.mrf.mxu0
      %v2763 = vadd.f32 0.0, %v2762
      %2764 = vmatmul.f32.gmra.mxu0 %v2641
      %v2765 = vpop.f32.mrf.mxu0
      %v2766 = vadd.f32 0.0, %v2765
      %2767 = vmatmul.f32.gmra.mxu0 %v2644
      %v2768 = vpop.f32.mrf.mxu0
      %v2769 = vadd.f32 0.0, %v2768
      %2770 = vmatmul.f32.gmra.mxu0 %v2647
      %v2771 = vpop.f32.mrf.mxu0
      %v2772 = vadd.f32 0.0, %v2771
      %2773 = vmatmul.f32.gmra.mxu0 %v2650
      %v2774 = vpop.f32.mrf.mxu0
      %v2775 = vadd.f32 0.0, %v2774
      %2776 = vmatmul.f32.gmra.mxu0 %v2653
      %v2777 = vpop.f32.mrf.mxu0
      %v2778 = vadd.f32 0.0, %v2777
      %2779 = vmatmul.f32.gmra.mxu0 %v2656
      %v2780 = vpop.f32.mrf.mxu0
      %v2781 = vadd.f32 0.0, %v2780
      %2782 = vmatmul.f32.gmra.mxu0 %v2659
      %v2783 = vpop.f32.mrf.mxu0
      %v2784 = vadd.f32 0.0, %v2783
      %2785 = vmatmul.f32.gmra.mxu0 %v2662
      %v2786 = vpop.f32.mrf.mxu0
      %v2787 = vadd.f32 0.0, %v2786
      %2788 = vmatmul.f32.gmra.mxu0 %v2665
      %v2789 = vpop.f32.mrf.mxu0
      %v2790 = vadd.f32 0.0, %v2789
      %2791 = vmatmul.f32.gmra.mxu0 %v2668
      %v2792 = vpop.f32.mrf.mxu0
      %v2793 = vadd.f32 0.0, %v2792
      %2794 = vmatmul.f32.gmra.mxu0 %v2671
      %v2795 = vpop.f32.mrf.mxu0
      %v2796 = vadd.f32 0.0, %v2795
      %2797 = vmatmul.f32.gmra.mxu0 %v2674
      %v2798 = vpop.f32.mrf.mxu0
      %v2799 = vadd.f32 0.0, %v2798
      %2800 = vmatmul.f32.gmra.mxu0 %v2677
      %v2801 = vpop.f32.mrf.mxu0
      %v2802 = vadd.f32 0.0, %v2801
      %2803 = vmatmul.f32.gmra.mxu0 %v2680
      %v2804 = vpop.f32.mrf.mxu0
      %v2805 = vadd.f32 0.0, %v2804
      %2806 = vmatmul.f32.gmra.mxu0 %v2683
      %v2807 = vpop.f32.mrf.mxu0
      %v2808 = vadd.f32 0.0, %v2807
      %2809 = vmatmul.f32.gmra.mxu0 %v2686
      %v2810 = vpop.f32.mrf.mxu0
      %v2811 = vadd.f32 0.0, %v2810
      %2812 = vmatmul.f32.gmra.mxu0 %v2689
      %v2813 = vpop.f32.mrf.mxu0
      %v2814 = vadd.f32 0.0, %v2813
      %2815 = vmatmul.f32.gmra.mxu0 %v2692
      %v2816 = vpop.f32.mrf.mxu0
      %v2817 = vadd.f32 0.0, %v2816
      %2818 = vmatmul.f32.gmra.mxu0 %v2695
      %v2819 = vpop.f32.mrf.mxu0
      %v2820 = vadd.f32 0.0, %v2819
      %2821 = vmatmul.f32.gmra.mxu0 %v2698
      %v2822 = vpop.f32.mrf.mxu0
      %v2823 = vadd.f32 0.0, %v2822
      %2824 = vmatmul.f32.gmra.mxu0 %v2701
      %v2825 = vpop.f32.mrf.mxu0
      %v2826 = vadd.f32 0.0, %v2825
      %2827 = vmatmul.f32.gmra.mxu0 %v2704
      %v2828 = vpop.f32.mrf.mxu0
      %v2829 = vadd.f32 0.0, %v2828
      %2830 = vmatmul.f32.gmra.mxu0 %v2707
      %v2831 = vpop.f32.mrf.mxu0
      %v2832 = vadd.f32 0.0, %v2831
      %2833 = vmatmul.f32.gmra.mxu0 %v2710
      %v2834 = vpop.f32.mrf.mxu0
      %v2835 = vadd.f32 0.0, %v2834
      %2836 = vdwg.mxu0
      %v2837 = vadd.f32 %v2530, %v2730
      %v2838 = vadd.f32 %v2531, %v2733
      %v2839 = vadd.f32 %v2532, %v2736
      %v2840 = vadd.f32 %v2533, %v2739
      %v2841 = vadd.f32 %v2534, %v2742
      %v2842 = vadd.f32 %v2535, %v2745
      %v2843 = vadd.f32 %v2536, %v2748
      %v2844 = vadd.f32 %v2537, %v2751
      %v2845 = vadd.f32 %v2538, %v2754
      %v2846 = vadd.f32 %v2539, %v2757
      %v2847 = vadd.f32 %v2540, %v2760
      %v2848 = vadd.f32 %v2541, %v2763
      %v2849 = vadd.f32 %v2542, %v2766
      %v2850 = vadd.f32 %v2543, %v2769
      %v2851 = vadd.f32 %v2544, %v2772
      %v2852 = vadd.f32 %v2545, %v2775
      %v2853 = vadd.f32 %v2546, %v2778
      %v2854 = vadd.f32 %v2547, %v2781
      %v2855 = vadd.f32 %v2548, %v2784
      %v2856 = vadd.f32 %v2549, %v2787
      %v2857 = vadd.f32 %v2550, %v2790
      %v2858 = vadd.f32 %v2551, %v2793
      %v2859 = vadd.f32 %v2552, %v2796
      %v2860 = vadd.f32 %v2553, %v2799
      %v2861 = vadd.f32 %v2554, %v2802
      %v2862 = vadd.f32 %v2555, %v2805
      %v2863 = vadd.f32 %v2556, %v2808
      %v2864 = vadd.f32 %v2557, %v2811
      %v2865 = vadd.f32 %v2558, %v2814
      %v2866 = vadd.f32 %v2559, %v2817
      %v2867 = vadd.f32 %v2560, %v2820
      %v2868 = vadd.f32 %v2561, %v2823
      %v2869 = vadd.f32 %v2562, %v2826
      %v2870 = vadd.f32 %v2563, %v2829
      %v2871 = vadd.f32 %v2564, %v2832
      %v2872 = vadd.f32 %v2565, %v2835
      %v2873 = vld [vmem:[#allocation2 + $0x26] sm:$0xff]
      %v2874 = vld [vmem:[#allocation2 + $0x2e] sm:$0xff]
      %v2875 = vld [vmem:[#allocation2 + $0x36] sm:$0xff]
      %v2876 = vld [vmem:[#allocation2 + $0x3e] sm:$0xff]
      %v2877 = vld [vmem:[#allocation2 + $0x46] sm:$0xff]
      %v2878 = vld [vmem:[#allocation2 + $0x4e] sm:$0xff]
      %v2879 = vld [vmem:[#allocation2 + $0x56] sm:$0xff]
      %v2880 = vld [vmem:[#allocation2 + $0x5e] sm:$0xff]
      %v2881 = vld [vmem:[#allocation2 + $0x66] sm:$0xff]
      %v2882 = vld [vmem:[#allocation2 + $0x6e] sm:$0xff]
      %v2883 = vld [vmem:[#allocation2 + $0x76] sm:$0xff]
      %v2884 = vld [vmem:[#allocation2 + $0x7e] sm:$0xff]
      %v2885 = vld [vmem:[#allocation2 + $0x86] sm:$0xff]
      %v2886 = vld [vmem:[#allocation2 + $0x8e] sm:$0xff]
      %v2887 = vld [vmem:[#allocation2 + $0x96] sm:$0xff]
      %v2888 = vld [vmem:[#allocation2 + $0x9e] sm:$0xff]
      %v2889 = vld [vmem:[#allocation2 + $0xa6] sm:$0xff]
      %v2890 = vld [vmem:[#allocation2 + $0xae] sm:$0xff]
      %v2891 = vld [vmem:[#allocation2 + $0xb6] sm:$0xff]
      %v2892 = vld [vmem:[#allocation2 + $0xbe] sm:$0xff]
      %v2893 = vld [vmem:[#allocation2 + $0xc6] sm:$0xff]
      %v2894 = vld [vmem:[#allocation2 + $0xce] sm:$0xff]
      %v2895 = vld [vmem:[#allocation2 + $0xd6] sm:$0xff]
      %v2896 = vld [vmem:[#allocation2 + $0xde] sm:$0xff]
      %v2897 = vld [vmem:[#allocation2 + $0xe6] sm:$0xff]
      %v2898 = vld [vmem:[#allocation2 + $0xee] sm:$0xff]
      %v2899 = vld [vmem:[#allocation2 + $0xf6] sm:$0xff]
      %v2900 = vld [vmem:[#allocation2 + $0xfe] sm:$0xff]
      %v2901 = vld [vmem:[#allocation2 + $0x106] sm:$0xff]
      %v2902 = vld [vmem:[#allocation2 + $0x10e] sm:$0xff]
      %v2903 = vld [vmem:[#allocation2 + $0x116] sm:$0xff]
      %v2904 = vld [vmem:[#allocation2 + $0x11e] sm:$0xff]
      %v2905 = vld [vmem:[#allocation2 + $0x126] sm:$0xff]
      %v2906 = vld [vmem:[#allocation2 + $0x12e] sm:$0xff]
      %v2907 = vld [vmem:[#allocation2 + $0x136] sm:$0xff]
      %v2908 = vld [vmem:[#allocation2 + $0x13e] sm:$0xff]
      %s2909 = scalar_lea.vmem %s2, 64
      %v2910 = vld [vmem:[%s2909] sm:$0xff]
      %v2912 = vsel %vm443, %v2873, 0
      %v2915 = vsel %vm443, %v2874, 0
      %v2918 = vsel %vm443, %v2875, 0
      %v2921 = vsel %vm443, %v2876, 0
      %v2924 = vsel %vm443, %v2877, 0
      %v2927 = vsel %vm443, %v2878, 0
      %v2930 = vsel %vm443, %v2879, 0
      %v2933 = vsel %vm443, %v2880, 0
      %v2936 = vsel %vm443, %v2881, 0
      %v2939 = vsel %vm443, %v2882, 0
      %v2942 = vsel %vm443, %v2883, 0
      %v2945 = vsel %vm443, %v2884, 0
      %v2948 = vsel %vm443, %v2885, 0
      %v2951 = vsel %vm443, %v2886, 0
      %v2954 = vsel %vm443, %v2887, 0
      %v2957 = vsel %vm443, %v2888, 0
      %v2960 = vsel %vm443, %v2889, 0
      %v2963 = vsel %vm443, %v2890, 0
      %v2966 = vsel %vm443, %v2891, 0
      %v2969 = vsel %vm443, %v2892, 0
      %v2972 = vsel %vm443, %v2893, 0
      %v2975 = vsel %vm443, %v2894, 0
      %v2978 = vsel %vm443, %v2895, 0
      %v2981 = vsel %vm443, %v2896, 0
      %v2984 = vsel %vm443, %v2897, 0
      %v2987 = vsel %vm443, %v2898, 0
      %v2990 = vsel %vm443, %v2899, 0
      %v2993 = vsel %vm443, %v2900, 0
      %v2996 = vsel %vm443, %v2901, 0
      %v2999 = vsel %vm443, %v2902, 0
      %v3002 = vsel %vm443, %v2903, 0
      %v3005 = vsel %vm443, %v2904, 0
      %v3008 = vsel %vm443, %v2905, 0
      %v3011 = vsel %vm443, %v2906, 0
      %v3014 = vsel %vm443, %v2907, 0
      %v3017 = vsel %vm443, %v2908, 0
      %3019 = vmatpush.msra.mxu0 0.0
      %3020 = vmatpush.msra.mxu0 0.0
      %3021 = vmatpush.msra.mxu0 0.0
      %3022 = vmatpush.msra.mxu0 0.0
      %3023 = vmatpush.msra.mxu0 0.0
      %3024 = vmatpush.msra.mxu0 0.0
      %3025 = vmatpush.msra.mxu0 0.0
      %3026 = vmatpush.msra.mxu0 0.0
      %3027 = vmatpush.msra.mxu0 0.0
      %3028 = vmatpush.msra.mxu0 0.0
      %3029 = vmatpush.msra.mxu0 0.0
      %3030 = vmatpush.msra.mxu0 0.0
      %3031 = vmatpush.msra.mxu0 0.0
      %3032 = vmatpush.msra.mxu0 0.0
      %3033 = vmatpush.msra.mxu0 0.0
      %3034 = vmatpush.msra.mxu0 %v2910
      %3035 = vmatmul.f32.gmra.mxu0 %v2912
      %v3036 = vpop.f32.mrf.mxu0
      %v3037 = vadd.f32 0.0, %v3036
      %3038 = vmatmul.f32.gmra.mxu0 %v2915
      %v3039 = vpop.f32.mrf.mxu0
      %v3040 = vadd.f32 0.0, %v3039
      %3041 = vmatmul.f32.gmra.mxu0 %v2918
      %v3042 = vpop.f32.mrf.mxu0
      %v3043 = vadd.f32 0.0, %v3042
      %3044 = vmatmul.f32.gmra.mxu0 %v2921
      %v3045 = vpop.f32.mrf.mxu0
      %v3046 = vadd.f32 0.0, %v3045
      %3047 = vmatmul.f32.gmra.mxu0 %v2924
      %v3048 = vpop.f32.mrf.mxu0
      %v3049 = vadd.f32 0.0, %v3048
      %3050 = vmatmul.f32.gmra.mxu0 %v2927
      %v3051 = vpop.f32.mrf.mxu0
      %v3052 = vadd.f32 0.0, %v3051
      %3053 = vmatmul.f32.gmra.mxu0 %v2930
      %v3054 = vpop.f32.mrf.mxu0
      %v3055 = vadd.f32 0.0, %v3054
      %3056 = vmatmul.f32.gmra.mxu0 %v2933
      %v3057 = vpop.f32.mrf.mxu0
      %v3058 = vadd.f32 0.0, %v3057
      %3059 = vmatmul.f32.gmra.mxu0 %v2936
      %v3060 = vpop.f32.mrf.mxu0
      %v3061 = vadd.f32 0.0, %v3060
      %3062 = vmatmul.f32.gmra.mxu0 %v2939
      %v3063 = vpop.f32.mrf.mxu0
      %v3064 = vadd.f32 0.0, %v3063
      %3065 = vmatmul.f32.gmra.mxu0 %v2942
      %v3066 = vpop.f32.mrf.mxu0
      %v3067 = vadd.f32 0.0, %v3066
      %3068 = vmatmul.f32.gmra.mxu0 %v2945
      %v3069 = vpop.f32.mrf.mxu0
      %v3070 = vadd.f32 0.0, %v3069
      %3071 = vmatmul.f32.gmra.mxu0 %v2948
      %v3072 = vpop.f32.mrf.mxu0
      %v3073 = vadd.f32 0.0, %v3072
      %3074 = vmatmul.f32.gmra.mxu0 %v2951
      %v3075 = vpop.f32.mrf.mxu0
      %v3076 = vadd.f32 0.0, %v3075
      %3077 = vmatmul.f32.gmra.mxu0 %v2954
      %v3078 = vpop.f32.mrf.mxu0
      %v3079 = vadd.f32 0.0, %v3078
      %3080 = vmatmul.f32.gmra.mxu0 %v2957
      %v3081 = vpop.f32.mrf.mxu0
      %v3082 = vadd.f32 0.0, %v3081
      %3083 = vmatmul.f32.gmra.mxu0 %v2960
      %v3084 = vpop.f32.mrf.mxu0
      %v3085 = vadd.f32 0.0, %v3084
      %3086 = vmatmul.f32.gmra.mxu0 %v2963
      %v3087 = vpop.f32.mrf.mxu0
      %v3088 = vadd.f32 0.0, %v3087
      %3089 = vmatmul.f32.gmra.mxu0 %v2966
      %v3090 = vpop.f32.mrf.mxu0
      %v3091 = vadd.f32 0.0, %v3090
      %3092 = vmatmul.f32.gmra.mxu0 %v2969
      %v3093 = vpop.f32.mrf.mxu0
      %v3094 = vadd.f32 0.0, %v3093
      %3095 = vmatmul.f32.gmra.mxu0 %v2972
      %v3096 = vpop.f32.mrf.mxu0
      %v3097 = vadd.f32 0.0, %v3096
      %3098 = vmatmul.f32.gmra.mxu0 %v2975
      %v3099 = vpop.f32.mrf.mxu0
      %v3100 = vadd.f32 0.0, %v3099
      %3101 = vmatmul.f32.gmra.mxu0 %v2978
      %v3102 = vpop.f32.mrf.mxu0
      %v3103 = vadd.f32 0.0, %v3102
      %3104 = vmatmul.f32.gmra.mxu0 %v2981
      %v3105 = vpop.f32.mrf.mxu0
      %v3106 = vadd.f32 0.0, %v3105
      %3107 = vmatmul.f32.gmra.mxu0 %v2984
      %v3108 = vpop.f32.mrf.mxu0
      %v3109 = vadd.f32 0.0, %v3108
      %3110 = vmatmul.f32.gmra.mxu0 %v2987
      %v3111 = vpop.f32.mrf.mxu0
      %v3112 = vadd.f32 0.0, %v3111
      %3113 = vmatmul.f32.gmra.mxu0 %v2990
      %v3114 = vpop.f32.mrf.mxu0
      %v3115 = vadd.f32 0.0, %v3114
      %3116 = vmatmul.f32.gmra.mxu0 %v2993
      %v3117 = vpop.f32.mrf.mxu0
      %v3118 = vadd.f32 0.0, %v3117
      %3119 = vmatmul.f32.gmra.mxu0 %v2996
      %v3120 = vpop.f32.mrf.mxu0
      %v3121 = vadd.f32 0.0, %v3120
      %3122 = vmatmul.f32.gmra.mxu0 %v2999
      %v3123 = vpop.f32.mrf.mxu0
      %v3124 = vadd.f32 0.0, %v3123
      %3125 = vmatmul.f32.gmra.mxu0 %v3002
      %v3126 = vpop.f32.mrf.mxu0
      %v3127 = vadd.f32 0.0, %v3126
      %3128 = vmatmul.f32.gmra.mxu0 %v3005
      %v3129 = vpop.f32.mrf.mxu0
      %v3130 = vadd.f32 0.0, %v3129
      %3131 = vmatmul.f32.gmra.mxu0 %v3008
      %v3132 = vpop.f32.mrf.mxu0
      %v3133 = vadd.f32 0.0, %v3132
      %3134 = vmatmul.f32.gmra.mxu0 %v3011
      %v3135 = vpop.f32.mrf.mxu0
      %v3136 = vadd.f32 0.0, %v3135
      %3137 = vmatmul.f32.gmra.mxu0 %v3014
      %v3138 = vpop.f32.mrf.mxu0
      %v3139 = vadd.f32 0.0, %v3138
      %3140 = vmatmul.f32.gmra.mxu0 %v3017
      %v3141 = vpop.f32.mrf.mxu0
      %v3142 = vadd.f32 0.0, %v3141
      %3143 = vdwg.mxu0
      %v3144 = vadd.f32 %v2837, %v3037
      %v3145 = vadd.f32 %v2838, %v3040
      %v3146 = vadd.f32 %v2839, %v3043
      %v3147 = vadd.f32 %v2840, %v3046
      %v3148 = vadd.f32 %v2841, %v3049
      %v3149 = vadd.f32 %v2842, %v3052
      %v3150 = vadd.f32 %v2843, %v3055
      %v3151 = vadd.f32 %v2844, %v3058
      %v3152 = vadd.f32 %v2845, %v3061
      %v3153 = vadd.f32 %v2846, %v3064
      %v3154 = vadd.f32 %v2847, %v3067
      %v3155 = vadd.f32 %v2848, %v3070
      %v3156 = vadd.f32 %v2849, %v3073
      %v3157 = vadd.f32 %v2850, %v3076
      %v3158 = vadd.f32 %v2851, %v3079
      %v3159 = vadd.f32 %v2852, %v3082
      %v3160 = vadd.f32 %v2853, %v3085
      %v3161 = vadd.f32 %v2854, %v3088
      %v3162 = vadd.f32 %v2855, %v3091
      %v3163 = vadd.f32 %v2856, %v3094
      %v3164 = vadd.f32 %v2857, %v3097
      %v3165 = vadd.f32 %v2858, %v3100
      %v3166 = vadd.f32 %v2859, %v3103
      %v3167 = vadd.f32 %v2860, %v3106
      %v3168 = vadd.f32 %v2861, %v3109
      %v3169 = vadd.f32 %v2862, %v3112
      %v3170 = vadd.f32 %v2863, %v3115
      %v3171 = vadd.f32 %v2864, %v3118
      %v3172 = vadd.f32 %v2865, %v3121
      %v3173 = vadd.f32 %v2866, %v3124
      %v3174 = vadd.f32 %v2867, %v3127
      %v3175 = vadd.f32 %v2868, %v3130
      %v3176 = vadd.f32 %v2869, %v3133
      %v3177 = vadd.f32 %v2870, %v3136
      %v3178 = vadd.f32 %v2871, %v3139
      %v3179 = vadd.f32 %v2872, %v3142
      %v3180 = vld [vmem:[%s3] sm:$0x1]
      %v3182 = vperm.slane %v3180, 0
      %v3184 = vadd.f32 %v3144, %v3182
      %v3185 = vadd.f32 %v3145, %v3182
      %v3186 = vadd.f32 %v3146, %v3182
      %v3187 = vadd.f32 %v3147, %v3182
      %v3188 = vadd.f32 %v3148, %v3182
      %v3189 = vadd.f32 %v3149, %v3182
      %v3190 = vadd.f32 %v3150, %v3182
      %v3191 = vadd.f32 %v3151, %v3182
      %v3192 = vadd.f32 %v3152, %v3182
      %v3193 = vadd.f32 %v3153, %v3182
      %v3194 = vadd.f32 %v3154, %v3182
      %v3195 = vadd.f32 %v3155, %v3182
      %v3196 = vadd.f32 %v3156, %v3182
      %v3197 = vadd.f32 %v3157, %v3182
      %v3198 = vadd.f32 %v3158, %v3182
      %v3199 = vadd.f32 %v3159, %v3182
      %v3200 = vadd.f32 %v3160, %v3182
      %v3201 = vadd.f32 %v3161, %v3182
      %v3202 = vadd.f32 %v3162, %v3182
      %v3203 = vadd.f32 %v3163, %v3182
      %v3204 = vadd.f32 %v3164, %v3182
      %v3205 = vadd.f32 %v3165, %v3182
      %v3206 = vadd.f32 %v3166, %v3182
      %v3207 = vadd.f32 %v3167, %v3182
      %v3208 = vadd.f32 %v3168, %v3182
      %v3209 = vadd.f32 %v3169, %v3182
      %v3210 = vadd.f32 %v3170, %v3182
      %v3211 = vadd.f32 %v3171, %v3182
      %v3212 = vadd.f32 %v3172, %v3182
      %v3213 = vadd.f32 %v3173, %v3182
      %v3214 = vadd.f32 %v3174, %v3182
      %v3215 = vadd.f32 %v3175, %v3182
      %v3216 = vadd.f32 %v3176, %v3182
      %v3217 = vadd.f32 %v3177, %v3182
      %v3218 = vadd.f32 %v3178, %v3182
      %v3219 = vadd.f32 %v3179, %v3182
      %v3220 = vsub.f32 0.0, %v3184
      %v3221 = vsub.f32 0.0, %v3185
      %v3222 = vsub.f32 0.0, %v3186
      %v3223 = vsub.f32 0.0, %v3187
      %v3224 = vsub.f32 0.0, %v3188
      %v3225 = vsub.f32 0.0, %v3189
      %v3226 = vsub.f32 0.0, %v3190
      %v3227 = vsub.f32 0.0, %v3191
      %v3228 = vsub.f32 0.0, %v3192
      %v3229 = vsub.f32 0.0, %v3193
      %v3230 = vsub.f32 0.0, %v3194
      %v3231 = vsub.f32 0.0, %v3195
      %v3232 = vsub.f32 0.0, %v3196
      %v3233 = vsub.f32 0.0, %v3197
      %v3234 = vsub.f32 0.0, %v3198
      %v3235 = vsub.f32 0.0, %v3199
      %v3236 = vsub.f32 0.0, %v3200
      %v3237 = vsub.f32 0.0, %v3201
      %v3238 = vsub.f32 0.0, %v3202
      %v3239 = vsub.f32 0.0, %v3203
      %v3240 = vsub.f32 0.0, %v3204
      %v3241 = vsub.f32 0.0, %v3205
      %v3242 = vsub.f32 0.0, %v3206
      %v3243 = vsub.f32 0.0, %v3207
      %v3244 = vsub.f32 0.0, %v3208
      %v3245 = vsub.f32 0.0, %v3209
      %v3246 = vsub.f32 0.0, %v3210
      %v3247 = vsub.f32 0.0, %v3211
      %v3248 = vsub.f32 0.0, %v3212
      %v3249 = vsub.f32 0.0, %v3213
      %v3250 = vsub.f32 0.0, %v3214
      %v3251 = vsub.f32 0.0, %v3215
      %v3252 = vsub.f32 0.0, %v3216
      %v3253 = vsub.f32 0.0, %v3217
      %v3254 = vsub.f32 0.0, %v3218
      %v3255 = vsub.f32 0.0, %v3219
      %v3256 = vmul.f32 %v3220, 1.442695
      %v3257 = vpow.pop %v3256
      %v3258 = vmul.f32 %v3221, 1.442695
      %v3259 = vpow.pop %v3258
      %v3260 = vmul.f32 %v3222, 1.442695
      %v3261 = vpow.pop %v3260
      %v3262 = vmul.f32 %v3223, 1.442695
      %v3263 = vpow.pop %v3262
      %v3264 = vmul.f32 %v3224, 1.442695
      %v3265 = vpow.pop %v3264
      %v3266 = vmul.f32 %v3225, 1.442695
      %v3267 = vpow.pop %v3266
      %v3268 = vmul.f32 %v3226, 1.442695
      %v3269 = vpow.pop %v3268
      %v3270 = vmul.f32 %v3227, 1.442695
      %v3271 = vpow.pop %v3270
      %v3272 = vmul.f32 %v3228, 1.442695
      %v3273 = vpow.pop %v3272
      %v3274 = vmul.f32 %v3229, 1.442695
      %v3275 = vpow.pop %v3274
      %v3276 = vmul.f32 %v3230, 1.442695
      %v3277 = vpow.pop %v3276
      %v3278 = vmul.f32 %v3231, 1.442695
      %v3279 = vpow.pop %v3278
      %v3280 = vmul.f32 %v3232, 1.442695
      %v3281 = vpow.pop %v3280
      %v3282 = vmul.f32 %v3233, 1.442695
      %v3283 = vpow.pop %v3282
      %v3284 = vmul.f32 %v3234, 1.442695
      %v3285 = vpow.pop %v3284
      %v3286 = vmul.f32 %v3235, 1.442695
      %v3287 = vpow.pop %v3286
      %v3288 = vmul.f32 %v3236, 1.442695
      %v3289 = vpow.pop %v3288
      %v3290 = vmul.f32 %v3237, 1.442695
      %v3291 = vpow.pop %v3290
      %v3292 = vmul.f32 %v3238, 1.442695
      %v3293 = vpow.pop %v3292
      %v3294 = vmul.f32 %v3239, 1.442695
      %v3295 = vpow.pop %v3294
      %v3296 = vmul.f32 %v3240, 1.442695
      %v3297 = vpow.pop %v3296
      %v3298 = vmul.f32 %v3241, 1.442695
      %v3299 = vpow.pop %v3298
      %v3300 = vmul.f32 %v3242, 1.442695
      %v3301 = vpow.pop %v3300
      %v3302 = vmul.f32 %v3243, 1.442695
      %v3303 = vpow.pop %v3302
      %v3304 = vmul.f32 %v3244, 1.442695
      %v3305 = vpow.pop %v3304
      %v3306 = vmul.f32 %v3245, 1.442695
      %v3307 = vpow.pop %v3306
      %v3308 = vmul.f32 %v3246, 1.442695
      %v3309 = vpow.pop %v3308
      %v3310 = vmul.f32 %v3247, 1.442695
      %v3311 = vpow.pop %v3310
      %v3312 = vmul.f32 %v3248, 1.442695
      %v3313 = vpow.pop %v3312
      %v3314 = vmul.f32 %v3249, 1.442695
      %v3315 = vpow.pop %v3314
      %v3316 = vmul.f32 %v3250, 1.442695
      %v3317 = vpow.pop %v3316
      %v3318 = vmul.f32 %v3251, 1.442695
      %v3319 = vpow.pop %v3318
      %v3320 = vmul.f32 %v3252, 1.442695
      %v3321 = vpow.pop %v3320
      %v3322 = vmul.f32 %v3253, 1.442695
      %v3323 = vpow.pop %v3322
      %v3324 = vmul.f32 %v3254, 1.442695
      %v3325 = vpow.pop %v3324
      %v3326 = vmul.f32 %v3255, 1.442695
      %v3327 = vpow.pop %v3326
      %v3328 = vadd.f32 %v3257, 1.0
      %v3329 = vadd.f32 %v3259, 1.0
      %v3330 = vadd.f32 %v3261, 1.0
      %v3331 = vadd.f32 %v3263, 1.0
      %v3332 = vadd.f32 %v3265, 1.0
      %v3333 = vadd.f32 %v3267, 1.0
      %v3334 = vadd.f32 %v3269, 1.0
      %v3335 = vadd.f32 %v3271, 1.0
      %v3336 = vadd.f32 %v3273, 1.0
      %v3337 = vadd.f32 %v3275, 1.0
      %v3338 = vadd.f32 %v3277, 1.0
      %v3339 = vadd.f32 %v3279, 1.0
      %v3340 = vadd.f32 %v3281, 1.0
      %v3341 = vadd.f32 %v3283, 1.0
      %v3342 = vadd.f32 %v3285, 1.0
      %v3343 = vadd.f32 %v3287, 1.0
      %v3344 = vadd.f32 %v3289, 1.0
      %v3345 = vadd.f32 %v3291, 1.0
      %v3346 = vadd.f32 %v3293, 1.0
      %v3347 = vadd.f32 %v3295, 1.0
      %v3348 = vadd.f32 %v3297, 1.0
      %v3349 = vadd.f32 %v3299, 1.0
      %v3350 = vadd.f32 %v3301, 1.0
      %v3351 = vadd.f32 %v3303, 1.0
      %v3352 = vadd.f32 %v3305, 1.0
      %v3353 = vadd.f32 %v3307, 1.0
      %v3354 = vadd.f32 %v3309, 1.0
      %v3355 = vadd.f32 %v3311, 1.0
      %v3356 = vadd.f32 %v3313, 1.0
      %v3357 = vadd.f32 %v3315, 1.0
      %v3358 = vadd.f32 %v3317, 1.0
      %v3359 = vadd.f32 %v3319, 1.0
      %v3360 = vadd.f32 %v3321, 1.0
      %v3361 = vadd.f32 %v3323, 1.0
      %v3362 = vadd.f32 %v3325, 1.0
      %v3363 = vadd.f32 %v3327, 1.0
      %v3364 = vrcp.pop %v3328
      %v3365 = vrcp.pop %v3329
      %v3366 = vrcp.pop %v3330
      %v3367 = vrcp.pop %v3331
      %v3368 = vrcp.pop %v3332
      %v3369 = vrcp.pop %v3333
      %v3370 = vrcp.pop %v3334
      %v3371 = vrcp.pop %v3335
      %v3372 = vrcp.pop %v3336
      %v3373 = vrcp.pop %v3337
      %v3374 = vrcp.pop %v3338
      %v3375 = vrcp.pop %v3339
      %v3376 = vrcp.pop %v3340
      %v3377 = vrcp.pop %v3341
      %v3378 = vrcp.pop %v3342
      %v3379 = vrcp.pop %v3343
      %v3380 = vrcp.pop %v3344
      %v3381 = vrcp.pop %v3345
      %v3382 = vrcp.pop %v3346
      %v3383 = vrcp.pop %v3347
      %v3384 = vrcp.pop %v3348
      %v3385 = vrcp.pop %v3349
      %v3386 = vrcp.pop %v3350
      %v3387 = vrcp.pop %v3351
      %v3388 = vrcp.pop %v3352
      %v3389 = vrcp.pop %v3353
      %v3390 = vrcp.pop %v3354
      %v3391 = vrcp.pop %v3355
      %v3392 = vrcp.pop %v3356
      %v3393 = vrcp.pop %v3357
      %v3394 = vrcp.pop %v3358
      %v3395 = vrcp.pop %v3359
      %v3396 = vrcp.pop %v3360
      %v3397 = vrcp.pop %v3361
      %v3398 = vrcp.pop %v3362
      %v3399 = vrcp.pop %v3363
      %v3400 = vmul.f32 %v3184, %v3364
      %v3401 = vmul.f32 %v3185, %v3365
      %v3402 = vmul.f32 %v3186, %v3366
      %v3403 = vmul.f32 %v3187, %v3367
      %v3404 = vmul.f32 %v3188, %v3368
      %v3405 = vmul.f32 %v3189, %v3369
      %v3406 = vmul.f32 %v3190, %v3370
      %v3407 = vmul.f32 %v3191, %v3371
      %v3408 = vmul.f32 %v3192, %v3372
      %v3409 = vmul.f32 %v3193, %v3373
      %v3410 = vmul.f32 %v3194, %v3374
      %v3411 = vmul.f32 %v3195, %v3375
      %v3412 = vmul.f32 %v3196, %v3376
      %v3413 = vmul.f32 %v3197, %v3377
      %v3414 = vmul.f32 %v3198, %v3378
      %v3415 = vmul.f32 %v3199, %v3379
      %v3416 = vmul.f32 %v3200, %v3380
      %v3417 = vmul.f32 %v3201, %v3381
      %v3418 = vmul.f32 %v3202, %v3382
      %v3419 = vmul.f32 %v3203, %v3383
      %v3420 = vmul.f32 %v3204, %v3384
      %v3421 = vmul.f32 %v3205, %v3385
      %v3422 = vmul.f32 %v3206, %v3386
      %v3423 = vmul.f32 %v3207, %v3387
      %v3424 = vmul.f32 %v3208, %v3388
      %v3425 = vmul.f32 %v3209, %v3389
      %v3426 = vmul.f32 %v3210, %v3390
      %v3427 = vmul.f32 %v3211, %v3391
      %v3428 = vmul.f32 %v3212, %v3392
      %v3429 = vmul.f32 %v3213, %v3393
      %v3430 = vmul.f32 %v3214, %v3394
      %v3431 = vmul.f32 %v3215, %v3395
      %v3432 = vmul.f32 %v3216, %v3396
      %v3433 = vmul.f32 %v3217, %v3397
      %v3434 = vmul.f32 %v3218, %v3398
      %v3435 = vmul.f32 %v3219, %v3399
      %3436 = vst [vmem:[%s393] sm:$0xff] %v3400
      %3437 = vst [vmem:[%s393 + $0x8] sm:$0xff] %v3401
      %3438 = vst [vmem:[%s393 + $0x10] sm:$0xff] %v3402
      %3439 = vst [vmem:[%s393 + $0x18] sm:$0xff] %v3403
      %3440 = vst [vmem:[%s393 + $0x20] sm:$0xff] %v3404
      %3441 = vst [vmem:[%s393 + $0x28] sm:$0xff] %v3405
      %3442 = vst [vmem:[%s393 + $0x30] sm:$0xff] %v3406
      %3443 = vst [vmem:[%s393 + $0x38] sm:$0xff] %v3407
      %3444 = vst [vmem:[%s393 + $0x40] sm:$0xff] %v3408
      %3445 = vst [vmem:[%s393 + $0x48] sm:$0xff] %v3409
      %3446 = vst [vmem:[%s393 + $0x50] sm:$0xff] %v3410
      %3447 = vst [vmem:[%s393 + $0x58] sm:$0xff] %v3411
      %3448 = vst [vmem:[%s393 + $0x60] sm:$0xff] %v3412
      %3449 = vst [vmem:[%s393 + $0x68] sm:$0xff] %v3413
      %3450 = vst [vmem:[%s393 + $0x70] sm:$0xff] %v3414
      %3451 = vst [vmem:[%s393 + $0x78] sm:$0xff] %v3415
      %3452 = vst [vmem:[%s393 + $0x80] sm:$0xff] %v3416
      %3453 = vst [vmem:[%s393 + $0x88] sm:$0xff] %v3417
      %3454 = vst [vmem:[%s393 + $0x90] sm:$0xff] %v3418
      %3455 = vst [vmem:[%s393 + $0x98] sm:$0xff] %v3419
      %3456 = vst [vmem:[%s393 + $0xa0] sm:$0xff] %v3420
      %3457 = vst [vmem:[%s393 + $0xa8] sm:$0xff] %v3421
      %3458 = vst [vmem:[%s393 + $0xb0] sm:$0xff] %v3422
      %3459 = vst [vmem:[%s393 + $0xb8] sm:$0xff] %v3423
      %3460 = vst [vmem:[%s393 + $0xc0] sm:$0xff] %v3424
      %3461 = vst [vmem:[%s393 + $0xc8] sm:$0xff] %v3425
      %3462 = vst [vmem:[%s393 + $0xd0] sm:$0xff] %v3426
      %3463 = vst [vmem:[%s393 + $0xd8] sm:$0xff] %v3427
      %3464 = vst [vmem:[%s393 + $0xe0] sm:$0xff] %v3428
      %3465 = vst [vmem:[%s393 + $0xe8] sm:$0xff] %v3429
      %3466 = vst [vmem:[%s393 + $0xf0] sm:$0xff] %v3430
      %3467 = vst [vmem:[%s393 + $0xf8] sm:$0xff] %v3431
      %3468 = vst [vmem:[%s393 + $0x100] sm:$0xff] %v3432
      %3469 = vst [vmem:[%s393 + $0x108] sm:$0xff] %v3433
      %3470 = vst [vmem:[%s393 + $0x110] sm:$0xff] %v3434
      %3471 = vst [vmem:[%s393 + $0x118] sm:$0xff] %v3435
      %v3472 = vld [vmem:[%s383] sm:$0xff]
      %v3473 = vld [vmem:[%s383 + $0x8] sm:$0xff]
      %v3474 = vld [vmem:[%s383 + $0x10] sm:$0xff]
      %v3475 = vld [vmem:[%s383 + $0x18] sm:$0xff]
      %v3476 = vld [vmem:[%s383 + $0x20] sm:$0xff]
      %v3477 = vld [vmem:[%s383 + $0x28] sm:$0xff]
      %v3478 = vld [vmem:[%s383 + $0x30] sm:$0xff]
      %v3479 = vld [vmem:[%s383 + $0x38] sm:$0xff]
      %v3480 = vld [vmem:[%s383 + $0x40] sm:$0xff]
      %v3481 = vld [vmem:[%s383 + $0x48] sm:$0xff]
      %v3482 = vld [vmem:[%s383 + $0x50] sm:$0xff]
      %v3483 = vld [vmem:[%s383 + $0x58] sm:$0xff]
      %v3484 = vld [vmem:[%s383 + $0x60] sm:$0xff]
      %v3485 = vld [vmem:[%s383 + $0x68] sm:$0xff]
      %v3486 = vld [vmem:[%s383 + $0x70] sm:$0xff]
      %v3487 = vld [vmem:[%s383 + $0x78] sm:$0xff]
      %v3488 = vld [vmem:[%s383 + $0x80] sm:$0xff]
      %v3489 = vld [vmem:[%s383 + $0x88] sm:$0xff]
      %v3490 = vld [vmem:[%s383 + $0x90] sm:$0xff]
      %v3491 = vld [vmem:[%s383 + $0x98] sm:$0xff]
      %v3492 = vld [vmem:[%s383 + $0xa0] sm:$0xff]
      %v3493 = vld [vmem:[%s383 + $0xa8] sm:$0xff]
      %v3494 = vld [vmem:[%s383 + $0xb0] sm:$0xff]
      %v3495 = vld [vmem:[%s383 + $0xb8] sm:$0xff]
      %v3496 = vld [vmem:[%s383 + $0xc0] sm:$0xff]
      %v3497 = vld [vmem:[%s383 + $0xc8] sm:$0xff]
      %v3498 = vld [vmem:[%s383 + $0xd0] sm:$0xff]
      %v3499 = vld [vmem:[%s383 + $0xd8] sm:$0xff]
      %v3500 = vld [vmem:[%s383 + $0xe0] sm:$0xff]
      %v3501 = vld [vmem:[%s383 + $0xe8] sm:$0xff]
      %v3502 = vld [vmem:[%s383 + $0xf0] sm:$0xff]
      %v3503 = vld [vmem:[%s383 + $0xf8] sm:$0xff]
      %v3504 = vld [vmem:[%s383 + $0x100] sm:$0xff]
      %v3505 = vld [vmem:[%s383 + $0x108] sm:$0xff]
      %v3506 = vld [vmem:[%s383 + $0x110] sm:$0xff]
      %v3507 = vld [vmem:[%s383 + $0x118] sm:$0xff]
      %3509 = vset.pattern.permute.xlu0 0
      %3510 = vperm.xlu0 %3509, %v3472
      %v3511 = vpop.permute.xlu0 %3510
      %3514 = vset.pattern.permute.xlu0 0
      %3515 = vperm.xlu0 %3514, %v3473
      %v3516 = vpop.permute.xlu0 %3515
      %3519 = vset.pattern.permute.xlu0 0
      %3520 = vperm.xlu0 %3519, %v3474
      %v3521 = vpop.permute.xlu0 %3520
      %3524 = vset.pattern.permute.xlu0 0
      %3525 = vperm.xlu0 %3524, %v3475
      %v3526 = vpop.permute.xlu0 %3525
      %3529 = vset.pattern.permute.xlu0 0
      %3530 = vperm.xlu0 %3529, %v3476
      %v3531 = vpop.permute.xlu0 %3530
      %3534 = vset.pattern.permute.xlu0 0
      %3535 = vperm.xlu0 %3534, %v3477
      %v3536 = vpop.permute.xlu0 %3535
      %3539 = vset.pattern.permute.xlu0 0
      %3540 = vperm.xlu0 %3539, %v3478
      %v3541 = vpop.permute.xlu0 %3540
      %3544 = vset.pattern.permute.xlu0 0
      %3545 = vperm.xlu0 %3544, %v3479
      %v3546 = vpop.permute.xlu0 %3545
      %3549 = vset.pattern.permute.xlu0 0
      %3550 = vperm.xlu0 %3549, %v3480
      %v3551 = vpop.permute.xlu0 %3550
      %3554 = vset.pattern.permute.xlu0 0
      %3555 = vperm.xlu0 %3554, %v3481
      %v3556 = vpop.permute.xlu0 %3555
      %3559 = vset.pattern.permute.xlu0 0
      %3560 = vperm.xlu0 %3559, %v3482
      %v3561 = vpop.permute.xlu0 %3560
      %3564 = vset.pattern.permute.xlu0 0
      %3565 = vperm.xlu0 %3564, %v3483
      %v3566 = vpop.permute.xlu0 %3565
      %3569 = vset.pattern.permute.xlu0 0
      %3570 = vperm.xlu0 %3569, %v3484
      %v3571 = vpop.permute.xlu0 %3570
      %3574 = vset.pattern.permute.xlu0 0
      %3575 = vperm.xlu0 %3574, %v3485
      %v3576 = vpop.permute.xlu0 %3575
      %3579 = vset.pattern.permute.xlu0 0
      %3580 = vperm.xlu0 %3579, %v3486
      %v3581 = vpop.permute.xlu0 %3580
      %3584 = vset.pattern.permute.xlu0 0
      %3585 = vperm.xlu0 %3584, %v3487
      %v3586 = vpop.permute.xlu0 %3585
      %3589 = vset.pattern.permute.xlu0 0
      %3590 = vperm.xlu0 %3589, %v3488
      %v3591 = vpop.permute.xlu0 %3590
      %3594 = vset.pattern.permute.xlu0 0
      %3595 = vperm.xlu0 %3594, %v3489
      %v3596 = vpop.permute.xlu0 %3595
      %3599 = vset.pattern.permute.xlu0 0
      %3600 = vperm.xlu0 %3599, %v3490
      %v3601 = vpop.permute.xlu0 %3600
      %3604 = vset.pattern.permute.xlu0 0
      %3605 = vperm.xlu0 %3604, %v3491
      %v3606 = vpop.permute.xlu0 %3605
      %3609 = vset.pattern.permute.xlu0 0
      %3610 = vperm.xlu0 %3609, %v3492
      %v3611 = vpop.permute.xlu0 %3610
      %3614 = vset.pattern.permute.xlu0 0
      %3615 = vperm.xlu0 %3614, %v3493
      %v3616 = vpop.permute.xlu0 %3615
      %3619 = vset.pattern.permute.xlu0 0
      %3620 = vperm.xlu0 %3619, %v3494
      %v3621 = vpop.permute.xlu0 %3620
      %3624 = vset.pattern.permute.xlu0 0
      %3625 = vperm.xlu0 %3624, %v3495
      %v3626 = vpop.permute.xlu0 %3625
      %3629 = vset.pattern.permute.xlu0 0
      %3630 = vperm.xlu0 %3629, %v3496
      %v3631 = vpop.permute.xlu0 %3630
      %3634 = vset.pattern.permute.xlu0 0
      %3635 = vperm.xlu0 %3634, %v3497
      %v3636 = vpop.permute.xlu0 %3635
      %3639 = vset.pattern.permute.xlu0 0
      %3640 = vperm.xlu0 %3639, %v3498
      %v3641 = vpop.permute.xlu0 %3640
      %3644 = vset.pattern.permute.xlu0 0
      %3645 = vperm.xlu0 %3644, %v3499
      %v3646 = vpop.permute.xlu0 %3645
      %3649 = vset.pattern.permute.xlu0 0
      %3650 = vperm.xlu0 %3649, %v3500
      %v3651 = vpop.permute.xlu0 %3650
      %3654 = vset.pattern.permute.xlu0 0
      %3655 = vperm.xlu0 %3654, %v3501
      %v3656 = vpop.permute.xlu0 %3655
      %3659 = vset.pattern.permute.xlu0 0
      %3660 = vperm.xlu0 %3659, %v3502
      %v3661 = vpop.permute.xlu0 %3660
      %3664 = vset.pattern.permute.xlu0 0
      %3665 = vperm.xlu0 %3664, %v3503
      %v3666 = vpop.permute.xlu0 %3665
      %3669 = vset.pattern.permute.xlu0 0
      %3670 = vperm.xlu0 %3669, %v3504
      %v3671 = vpop.permute.xlu0 %3670
      %3674 = vset.pattern.permute.xlu0 0
      %3675 = vperm.xlu0 %3674, %v3505
      %v3676 = vpop.permute.xlu0 %3675
      %3679 = vset.pattern.permute.xlu0 0
      %3680 = vperm.xlu0 %3679, %v3506
      %v3681 = vpop.permute.xlu0 %3680
      %3684 = vset.pattern.permute.xlu0 0
      %3685 = vperm.xlu0 %3684, %v3507
      %v3686 = vpop.permute.xlu0 %3685
      %v3688 = vmul.f32 %v3400, %v3511
      %v3689 = vmul.f32 %v3401, %v3516
      %v3690 = vmul.f32 %v3402, %v3521
      %v3691 = vmul.f32 %v3403, %v3526
      %v3692 = vmul.f32 %v3404, %v3531
      %v3693 = vmul.f32 %v3405, %v3536
      %v3694 = vmul.f32 %v3406, %v3541
      %v3695 = vmul.f32 %v3407, %v3546
      %v3696 = vmul.f32 %v3408, %v3551
      %v3697 = vmul.f32 %v3409, %v3556
      %v3698 = vmul.f32 %v3410, %v3561
      %v3699 = vmul.f32 %v3411, %v3566
      %v3700 = vmul.f32 %v3412, %v3571
      %v3701 = vmul.f32 %v3413, %v3576
      %v3702 = vmul.f32 %v3414, %v3581
      %v3703 = vmul.f32 %v3415, %v3586
      %v3704 = vmul.f32 %v3416, %v3591
      %v3705 = vmul.f32 %v3417, %v3596
      %v3706 = vmul.f32 %v3418, %v3601
      %v3707 = vmul.f32 %v3419, %v3606
      %v3708 = vmul.f32 %v3420, %v3611
      %v3709 = vmul.f32 %v3421, %v3616
      %v3710 = vmul.f32 %v3422, %v3621
      %v3711 = vmul.f32 %v3423, %v3626
      %v3712 = vmul.f32 %v3424, %v3631
      %v3713 = vmul.f32 %v3425, %v3636
      %v3714 = vmul.f32 %v3426, %v3641
      %v3715 = vmul.f32 %v3427, %v3646
      %v3716 = vmul.f32 %v3428, %v3651
      %v3717 = vmul.f32 %v3429, %v3656
      %v3718 = vmul.f32 %v3430, %v3661
      %v3719 = vmul.f32 %v3431, %v3666
      %v3720 = vmul.f32 %v3432, %v3671
      %v3721 = vmul.f32 %v3433, %v3676
      %v3722 = vmul.f32 %v3434, %v3681
      %v3723 = vmul.f32 %v3435, %v3686
      %v3724 = vadd.f32 %v3688, %v3689
      %v3725 = vadd.f32 %v3724, %v3690
      %v3726 = vadd.f32 %v3725, %v3691
      %v3727 = vadd.f32 %v3726, %v3692
      %v3728 = vadd.f32 %v3727, %v3693
      %v3729 = vadd.f32 %v3728, %v3694
      %v3730 = vadd.f32 %v3729, %v3695
      %v3731 = vadd.f32 %v3730, %v3696
      %v3732 = vadd.f32 %v3731, %v3697
      %v3733 = vadd.f32 %v3732, %v3698
      %v3734 = vadd.f32 %v3733, %v3699
      %v3735 = vadd.f32 %v3734, %v3700
      %v3736 = vadd.f32 %v3735, %v3701
      %v3737 = vadd.f32 %v3736, %v3702
      %v3738 = vadd.f32 %v3737, %v3703
      %v3739 = vadd.f32 %v3738, %v3704
      %v3740 = vadd.f32 %v3739, %v3705
      %v3741 = vadd.f32 %v3740, %v3706
      %v3742 = vadd.f32 %v3741, %v3707
      %v3743 = vadd.f32 %v3742, %v3708
      %v3744 = vadd.f32 %v3743, %v3709
      %v3745 = vadd.f32 %v3744, %v3710
      %v3746 = vadd.f32 %v3745, %v3711
      %v3747 = vadd.f32 %v3746, %v3712
      %v3748 = vadd.f32 %v3747, %v3713
      %v3749 = vadd.f32 %v3748, %v3714
      %v3750 = vadd.f32 %v3749, %v3715
      %v3751 = vadd.f32 %v3750, %v3716
      %v3752 = vadd.f32 %v3751, %v3717
      %v3753 = vadd.f32 %v3752, %v3718
      %v3754 = vadd.f32 %v3753, %v3719
      %v3755 = vadd.f32 %v3754, %v3720
      %v3756 = vadd.f32 %v3755, %v3721
      %v3757 = vadd.f32 %v3756, %v3722
      %v3758 = vadd.f32 %v3757, %v3723
      %v3759 = vrot.slane %v3758, 4
      %v3760 = vadd.f32 %v3758, %v3759
      %v3761 = vrot.slane %v3760, 2
      %v3762 = vadd.f32 %v3760, %v3761
      %v3763 = vrot.slane %v3762, 1
      %v3764 = vadd.f32 %v3762, %v3763
      %3765 = vst [vmem:[%s400] sm:$0x1] %v3764
      %v3766 = vmul.f32 %v3688, %v3400
      %v3767 = vmul.f32 %v3689, %v3401
      %v3768 = vmul.f32 %v3690, %v3402
      %v3769 = vmul.f32 %v3691, %v3403
      %v3770 = vmul.f32 %v3692, %v3404
      %v3771 = vmul.f32 %v3693, %v3405
      %v3772 = vmul.f32 %v3694, %v3406
      %v3773 = vmul.f32 %v3695, %v3407
      %v3774 = vmul.f32 %v3696, %v3408
      %v3775 = vmul.f32 %v3697, %v3409
      %v3776 = vmul.f32 %v3698, %v3410
      %v3777 = vmul.f32 %v3699, %v3411
      %v3778 = vmul.f32 %v3700, %v3412
      %v3779 = vmul.f32 %v3701, %v3413
      %v3780 = vmul.f32 %v3702, %v3414
      %v3781 = vmul.f32 %v3703, %v3415
      %v3782 = vmul.f32 %v3704, %v3416
      %v3783 = vmul.f32 %v3705, %v3417
      %v3784 = vmul.f32 %v3706, %v3418
      %v3785 = vmul.f32 %v3707, %v3419
      %v3786 = vmul.f32 %v3708, %v3420
      %v3787 = vmul.f32 %v3709, %v3421
      %v3788 = vmul.f32 %v3710, %v3422
      %v3789 = vmul.f32 %v3711, %v3423
      %v3790 = vmul.f32 %v3712, %v3424
      %v3791 = vmul.f32 %v3713, %v3425
      %v3792 = vmul.f32 %v3714, %v3426
      %v3793 = vmul.f32 %v3715, %v3427
      %v3794 = vmul.f32 %v3716, %v3428
      %v3795 = vmul.f32 %v3717, %v3429
      %v3796 = vmul.f32 %v3718, %v3430
      %v3797 = vmul.f32 %v3719, %v3431
      %v3798 = vmul.f32 %v3720, %v3432
      %v3799 = vmul.f32 %v3721, %v3433
      %v3800 = vmul.f32 %v3722, %v3434
      %v3801 = vmul.f32 %v3723, %v3435
      %v3802 = vadd.f32 %v3766, %v3767
      %v3803 = vadd.f32 %v3802, %v3768
      %v3804 = vadd.f32 %v3803, %v3769
      %v3805 = vadd.f32 %v3804, %v3770
      %v3806 = vadd.f32 %v3805, %v3771
      %v3807 = vadd.f32 %v3806, %v3772
      %v3808 = vadd.f32 %v3807, %v3773
      %v3809 = vadd.f32 %v3808, %v3774
      %v3810 = vadd.f32 %v3809, %v3775
      %v3811 = vadd.f32 %v3810, %v3776
      %v3812 = vadd.f32 %v3811, %v3777
      %v3813 = vadd.f32 %v3812, %v3778
      %v3814 = vadd.f32 %v3813, %v3779
      %v3815 = vadd.f32 %v3814, %v3780
      %v3816 = vadd.f32 %v3815, %v3781
      %v3817 = vadd.f32 %v3816, %v3782
      %v3818 = vadd.f32 %v3817, %v3783
      %v3819 = vadd.f32 %v3818, %v3784
      %v3820 = vadd.f32 %v3819, %v3785
      %v3821 = vadd.f32 %v3820, %v3786
      %v3822 = vadd.f32 %v3821, %v3787
      %v3823 = vadd.f32 %v3822, %v3788
      %v3824 = vadd.f32 %v3823, %v3789
      %v3825 = vadd.f32 %v3824, %v3790
      %v3826 = vadd.f32 %v3825, %v3791
      %v3827 = vadd.f32 %v3826, %v3792
      %v3828 = vadd.f32 %v3827, %v3793
      %v3829 = vadd.f32 %v3828, %v3794
      %v3830 = vadd.f32 %v3829, %v3795
      %v3831 = vadd.f32 %v3830, %v3796
      %v3832 = vadd.f32 %v3831, %v3797
      %v3833 = vadd.f32 %v3832, %v3798
      %v3834 = vadd.f32 %v3833, %v3799
      %v3835 = vadd.f32 %v3834, %v3800
      %v3836 = vadd.f32 %v3835, %v3801
      %v3837 = vrot.slane %v3836, 4
      %v3838 = vadd.f32 %v3836, %v3837
      %v3839 = vrot.slane %v3838, 2
      %v3840 = vadd.f32 %v3838, %v3839
      %v3841 = vrot.slane %v3840, 1
      %v3842 = vadd.f32 %v3840, %v3841
      %3843 = vst [vmem:[%s406] sm:$0x1] %v3842
      %s3844 = smul.u32 36, %s24
      %p3845 = scmp.lt.s32.totalorder %s23, 1
      %s3846 = scalar_select %p3845, %s23, 1
      %p3847 = scmp.lt.s32.totalorder %s3844, 35
      %s3848 = scalar_select %p3847, %s3844, 35
      %s3849 = smul.addr %s3846, 36
      %s3850 = sadd.s32 %s3848, %s3849
      %s3851 = smul.addr %s3850, 8
      %s3852 = scalar_lea.vmem %s5, %s3851
      %p3853 = scmp.lt.s32.totalorder %s23, 1
      %s3854 = scalar_select %p3853, %s23, 1
      %p3855 = scmp.lt.s32.totalorder %s24, 0
      %s3856 = scalar_select %p3855, %s24, 0
      %s3857 = sadd.s32 %s3856, %s3854
      %s3858 = scalar_lea.vmem %s6, %s3857
      %p3859 = scmp.lt.s32.totalorder %s23, 1
      %s3860 = scalar_select %p3859, %s23, 1
      %p3861 = scmp.lt.s32.totalorder %s24, 0
      %s3862 = scalar_select %p3861, %s24, 0
      %s3863 = sadd.s32 %s3862, %s3860
      %s3864 = scalar_lea.vmem %s7, %s3863
      // Predicated region
      $region41: #{base_block_forward.2} parent=39 // pred_check
        %p3865 = pneg %p175
      $region42: #{base_block_forward.2} parent=39 // pred_check_branch
        %3867 = sbr.rel (%p3865) target = $region44
      $region43: #{base_block_forward.2} parent=39 // pred_region
        %s3868 = smul.u32 36, %s24
      $region44: #{base_block_forward.2} parent=39 // pred_fallthru
        _
      // Predicated region
      $region45: #{base_block_forward.2} parent=39 // pred_check
        %p3869 = pneg %p203
      $region46: #{base_block_forward.2} parent=39 // pred_check_branch
        %3871 = sbr.rel (%p3869) target = $region48
      $region47: #{base_block_forward.2} parent=39 // pred_region
        _
      $region48: #{base_block_forward.2} parent=39 // pred_fallthru
        _
      // Predicated region
      $region49: #{base_block_forward.2} parent=39 // pred_check
        %p3872 = pneg %p231
      $region50: #{base_block_forward.2} parent=39 // pred_check_branch
        %3874 = sbr.rel (%p3872) target = $region52
      $region51: #{base_block_forward.2} parent=39 // pred_region
        _
      $region52: #{base_block_forward.2} parent=39 // pred_fallthru
        _
    $region40: #{base_block_forward.2} parent=5 // pred_fallthru
      _
    %p3875 = scmp.le.s32.totalorder 2, %s14
    // Predicated region
    $region53: #{base_block_forward.2} parent=5 // pred_check
      %p3876 = pneg %p3875
    $region54: #{base_block_forward.2} parent=5 // pred_check_branch
      %3878 = sbr.rel (%p3876) target = $region56
    $region55: #{base_block_forward.2} parent=5 // pred_region
      %s3879 = ssub.s32 %s14, 2
      // Predicated region
      $region57: #{base_block_forward.2} parent=55 // pred_check
        %p3880 = pneg %p181
      $region58: #{base_block_forward.2} parent=55 // pred_check_branch
        %3882 = sbr.rel (%p3880) target = $region60
      $region59: #{base_block_forward.2} parent=55 // pred_region
        %s3883 = smul.u32 36, %s26
        %p3884 = scmp.lt.s32.totalorder %s25, 1
        %s3885 = scalar_select %p3884, %s25, 1
        %p3886 = scmp.lt.s32.totalorder %s3883, 35
        %s3887 = scalar_select %p3886, %s3883, 35
        %s3888 = smul.addr %s3885, 36
        %s3889 = sadd.s32 %s3887, %s3888
        %s3890 = smul.addr %s3889, 8
        %s3891 = scalar_lea.vmem %s5, %s3890
      $region60: #{base_block_forward.2} parent=55 // pred_fallthru
        _
      // Predicated region
      $region61: #{base_block_forward.2} parent=55 // pred_check
        %p3892 = pneg %p209
      $region62: #{base_block_forward.2} parent=55 // pred_check_branch
        %3894 = sbr.rel (%p3892) target = $region64
      $region63: #{base_block_forward.2} parent=55 // pred_region
        %p3895 = scmp.lt.s32.totalorder %s25, 1
        %s3896 = scalar_select %p3895, %s25, 1
        %p3897 = scmp.lt.s32.totalorder %s26, 0
        %s3898 = scalar_select %p3897, %s26, 0
        %s3899 = sadd.s32 %s3898, %s3896
        %s3900 = scalar_lea.vmem %s6, %s3899
      $region64: #{base_block_forward.2} parent=55 // pred_fallthru
        _
      // Predicated region
      $region65: #{base_block_forward.2} parent=55 // pred_check
        %p3901 = pneg %p237
      $region66: #{base_block_forward.2} parent=55 // pred_check_branch
        %3903 = sbr.rel (%p3901) target = $region68
      $region67: #{base_block_forward.2} parent=55 // pred_region
        %p3904 = scmp.lt.s32.totalorder %s25, 1
        %s3905 = scalar_select %p3904, %s25, 1
        %p3906 = scmp.lt.s32.totalorder %s26, 0
        %s3907 = scalar_select %p3906, %s26, 0
        %s3908 = sadd.s32 %s3907, %s3905
        %s3909 = scalar_lea.vmem %s7, %s3908
      $region68: #{base_block_forward.2} parent=55 // pred_fallthru
        _
    $region56: #{base_block_forward.2} parent=5 // pred_fallthru
      _
  $region6: #{base_block_forward.2} parent=0 // loop_footer
    %s18 = sadd.s32 1, %s14
  $region7: #{base_block_forward.2} parent=0 // loop_footer_branch
    %13 = sbr.rel target = $region3
  $region8: #{base_block_forward.2} parent=0 // loop_exit
    _

</llo_original>
